<compile_context>
chip_gen: v6e
topology: v6e:2x2x1
jax: 0.10.0
libtpu: 0.0.40
codegen_flags: <defaults>
</compile_context>

<pallas_src>
import functools

import numpy as np
import jax
import jax.numpy as jnp
from jax.experimental import pallas as pl
from jax.experimental.pallas import tpu as pltpu

WINDOW_SIZE = 11
SIGMA = 1.5
C1 = 0.01 ** 2
C2 = 0.03 ** 2

_SMALL_SPATIAL = 64          # H, W <= this  ->  VPU shifted-FMA conv path


# ---------------------------------------------------------------------------
# Parameter setup (matches gaussian()/create_window() in the PyTorch reference)
# ---------------------------------------------------------------------------
def _gaussian_1d(window_size, sigma):
    xs = np.arange(window_size, dtype=np.float64)
    g = np.exp(-((xs - window_size // 2) ** 2) / (2.0 * sigma ** 2))
    return (g / g.sum()).astype(np.float32)


def _band_conv_matrices(H, W, window_size=WINDOW_SIZE, sigma=SIGMA):
    """conv2d(x, gauss_2d, padding=ws//2) == ah @ x @ aw (zero padding baked into bands)."""
    g = _gaussian_1d(window_size, sigma)
    half = window_size // 2

    def band_out_in(n_out, n_in):
        o = np.arange(n_out)[:, None]
        i = np.arange(n_in)[None, :]
        d = i - o + half
        valid = (d >= 0) & (d < window_size)
        return np.where(valid, g[np.clip(d, 0, window_size - 1)], 0.0).astype(np.float32)

    ah = band_out_in(H, H)        # (H_out, H_in): apply as ah @ x
    aw = band_out_in(W, W).T      # (W_in, W_out): apply as x @ aw
    return jnp.asarray(ah), jnp.asarray(aw)


# ---------------------------------------------------------------------------
# Generation-aware VMEM budgeting & channel-block picking
# ---------------------------------------------------------------------------
def _vmem_budgets():
    """(per-block VMEM budget bytes, vmem_limit_bytes), derived from the chip generation."""
    try:
        cap = int(pltpu.get_tpu_info().vmem_capacity_bytes)
    except Exception:
        cap = 64 * 1024 * 1024                      # conservative (v7x-sized) fallback
    if cap >= 96 * 1024 * 1024:                     # v5e / v6e: 128 MiB VMEM
        return 28 * 1024 * 1024, 96 * 1024 * 1024   # big blocks, few fat grid steps
    return 6 * 1024 * 1024, 40 * 1024 * 1024        # v7x: 64 MiB per TensorCore


def _pick_block_channels(n, per_chan_bytes, budget_bytes):
    """Largest channel block that divides n, fits the VMEM budget, and (when possible)
    keeps an even number (>=2) of grid steps so both v7x TensorCores get work."""
    cap = max(1, budget_bytes // max(per_chan_bytes, 1))
    divisors = [d for d in range(1, n + 1) if n % d == 0 and d <= cap]
    if not divisors:
        divisors = [1]
    even = [d for d in divisors if (n // d) >= 2 and (n // d) % 2 == 0]
    multi = [d for d in divisors if (n // d) >= 2]
    pool = even or multi or divisors
    return max(pool)


# ---------------------------------------------------------------------------
# Small-spatial kernel: separable 11-tap conv as shifted VPU FMAs (no MXU)
# ---------------------------------------------------------------------------
def _ssim_small_kernel(x1p_ref, x2p_ref, out_ref, *, taps, half):
    bn, hp, wp = x1p_ref.shape
    H = hp - 2 * half
    W = wp - 2 * half
    x1 = x1p_ref[...]                    # (bn, H+2*half, W+2*half) zero-padded
    x2 = x2p_ref[...]

    def sep_conv(xp):
        # Lane (W) direction then sublane (H) direction: 11 shifted FMAs each.
        yw = taps[0] * xp[:, :, 0:W]
        for k in range(1, len(taps)):
            yw = yw + taps[k] * xp[:, :, k:k + W]
        z = taps[0] * yw[:, 0:H, :]
        for k in range(1, len(taps)):
            z = z + taps[k] * yw[:, k:k + H, :]
        return z

    mu1 = sep_conv(x1)
    mu2 = sep_conv(x2)
    e11 = sep_conv(x1 * x1)
    e22 = sep_conv(x2 * x2)
    e12 = sep_conv(x1 * x2)

    mu1_sq = mu1 * mu1
    mu2_sq = mu2 * mu2
    mu12 = mu1 * mu2
    sigma1_sq = e11 - mu1_sq
    sigma2_sq = e22 - mu2_sq
    sigma12 = e12 - mu12

    num = (2.0 * mu12 + C1) * (2.0 * sigma12 + C2)
    den = (mu1_sq + mu2_sq + C1) * (sigma1_sq + sigma2_sq + C2)
    # Exact divide here: at tiny H/W there is no MXU work to hide an EUP op behind,
    # and it keeps full f32 accuracy on the small-shape (correctness-checked) path.
    ssim_map = num / den

    partial = jnp.sum(ssim_map)
    out_ref[...] = jnp.full(out_ref.shape, partial, dtype=out_ref.dtype)


def _ssim_sum_small(x1, x2, window_size, sigma, block_budget, vmem_limit):
    N, H, W = x1.shape
    half = window_size // 2
    pad = ((0, 0), (half, half), (half, half))
    # Zero padding done once on the host: the kernel then needs only static slices + FMAs
    # (no in-kernel concatenate copies at all).
    x1p = jnp.pad(x1, pad)
    x2p = jnp.pad(x2, pad)
    hp, wp = H + 2 * half, W + 2 * half

    # Rough per-channel VMEM: double-buffered padded inputs + ~16 live f32 temporaries.
    per_chan = 4 * (2 * 2 * hp * wp + 16 * H * W)
    bn = _pick_block_channels(N, per_chan, block_budget)
    G = N // bn

    taps = tuple(float(v) for v in _gaussian_1d(window_size, sigma))
    kernel = functools.partial(_ssim_small_kernel, taps=taps, half=half)

    partials = pl.pallas_call(
        kernel,
        out_shape=jax.ShapeDtypeStruct((G, 1, 128), jnp.float32),
        grid=(G,),
        in_specs=[
            pl.BlockSpec((bn, hp, wp), lambda i: (i, 0, 0)),
            pl.BlockSpec((bn, hp, wp), lambda i: (i, 0, 0)),
        ],
        out_specs=pl.BlockSpec((1, 1, 128), lambda i: (i, 0, 0)),
        compiler_params=pltpu.CompilerParams(
            dimension_semantics=("parallel",),
            vmem_limit_bytes=vmem_limit,
        ),
    )(x1p, x2p)
    return jnp.sum(partials[:, 0, 0])


# ---------------------------------------------------------------------------
# Large-spatial kernel: separable conv as two bf16 band-matrix matmuls (MXU)
# ---------------------------------------------------------------------------
def _ssim_mxu_kernel(x1_ref, x2_ref, ah_t_ref, aw_ref, out_ref, xs_ref):
    bn, H, W = x1_ref.shape
    x1 = x1_ref[...]
    x2 = x2_ref[...]

    # Stage the 5 conv inputs (all bn channels) into a bf16 VMEM scratch: removes the
    # jnp.concatenate copy and halves the staging footprint.
    xs_ref[0 * bn:1 * bn] = x1.astype(xs_ref.dtype)
    xs_ref[1 * bn:2 * bn] = x2.astype(xs_ref.dtype)
    xs_ref[2 * bn:3 * bn] = (x1 * x1).astype(xs_ref.dtype)
    xs_ref[3 * bn:4 * bn] = (x2 * x2).astype(xs_ref.dtype)
    xs_ref[4 * bn:5 * bn] = (x1 * x2).astype(xs_ref.dtype)
    xs = xs_ref[...]                                         # (5*bn, H, W) bf16

    # W-direction conv: ONE (5*bn*H, W) @ (W, W) bf16 matmul, f32 accumulation.
    y = jnp.dot(xs.reshape(5 * bn * H, W), aw_ref[...],
                preferred_element_type=jnp.float32)
    y = y.reshape(5 * bn, H, W)

    # H-direction conv: minor-dim transpose (XLU) + ONE weight-stationary
    # (5*bn*W, H) @ (H, H) bf16 matmul - no broadcast_to / batched einsum.
    yt = jnp.swapaxes(y, 1, 2).reshape(5 * bn * W, H).astype(jnp.bfloat16)
    z = jnp.dot(yt, ah_t_ref[...], preferred_element_type=jnp.float32)
    z = z.reshape(5 * bn, W, H)            # (W, H) orientation; elementwise math + sum
                                           # downstream are orientation-agnostic.
    mu1 = z[0 * bn:1 * bn]
    mu2 = z[1 * bn:2 * bn]
    e11 = z[2 * bn:3 * bn]
    e22 = z[3 * bn:4 * bn]
    e12 = z[4 * bn:5 * bn]

    mu1_sq = mu1 * mu1
    mu2_sq = mu2 * mu2
    mu12 = mu1 * mu2
    sigma1_sq = e11 - mu1_sq
    sigma2_sq = e22 - mu2_sq
    sigma12 = e12 - mu12

    num = (2.0 * mu12 + C1) * (2.0 * sigma12 + C2)
    den = (mu1_sq + mu2_sq + C1) * (sigma1_sq + sigma2_sq + C2)
    ssim_map = num * pl.reciprocal(den, approx=True)         # EUP slot, hidden by the MXU

    # Keep the lane (H) axis in the partial reduce; lane + grid sums finish outside.
    out_ref[...] = jnp.sum(ssim_map, axis=(0, 1)).reshape(1, 1, H)


def _ssim_sum_mxu(x1, x2, window_size, sigma, block_budget, vmem_limit):
    N, H, W = x1.shape
    ah, aw = _band_conv_matrices(H, W, window_size, sigma)
    # bf16 MXU operands (~3-6x MXU throughput); accumulation / post-conv math stay f32.
    ah_t = ah.T.astype(jnp.bfloat16)        # (H_in, H_out): applied from the right
    aw_b = aw.astype(jnp.bfloat16)          # (W_in, W_out)

    # Per-channel VMEM: double-buffered f32 inputs + bf16 stack + f32 conv results and
    # elementwise temporaries (~110 B/pixel); band matrices are single-buffered bf16.
    fixed = 2 * (H * H + W * W)
    per_chan = 110 * H * W
    bn = _pick_block_channels(N, per_chan, max(block_budget - fixed, per_chan))
    G = N // bn

    # TODO(synk): for very large H/W (e.g. 4K) add spatial tiling / block-banded band
    #             matrices so a single channel cannot overflow the block budget.
    # TODO(synk): pad H/W to multiples of 128 (256 contraction) for lane-dense stores and
    #             full MXU occupancy - needs masking since SSIM of the zero padding is 1.

    partials = pl.pallas_call(
        _ssim_mxu_kernel,
        out_shape=jax.ShapeDtypeStruct((G, 1, H), jnp.float32),
        grid=(G,),
        in_specs=[
            pl.BlockSpec((bn, H, W), lambda i: (i, 0, 0)),
            pl.BlockSpec((bn, H, W), lambda i: (i, 0, 0)),
            # Constant index_map -> fetched once; Buffered(1) skips double-buffering.
            pl.BlockSpec((H, H), lambda i: (0, 0), pipeline_mode=pl.Buffered(1)),
            pl.BlockSpec((W, W), lambda i: (0, 0), pipeline_mode=pl.Buffered(1)),
        ],
        out_specs=pl.BlockSpec((1, 1, H), lambda i: (i, 0, 0)),
        scratch_shapes=[pltpu.VMEM((5 * bn, H, W), jnp.bfloat16)],
        compiler_params=pltpu.CompilerParams(
            dimension_semantics=("parallel",),
            vmem_limit_bytes=vmem_limit,
        ),
    )(x1, x2, ah_t, aw_b)
    return jnp.sum(partials[:, 0, :])


# ---------------------------------------------------------------------------
# Wrapper: SSIMLoss.forward(img1, img2) == 1 - ssim_map.mean()
# ---------------------------------------------------------------------------
def ssim_loss(img1, img2, window_size=WINDOW_SIZE, sigma=SIGMA):
    # TODO(synk): size_average=False (per-image mean) branch not implemented.
    img1 = img1.astype(jnp.float32)
    img2 = img2.astype(jnp.float32)
    B, C, H, W = img1.shape
    N = B * C
    x1 = img1.reshape(N, H, W)
    x2 = img2.reshape(N, H, W)

    block_budget, vmem_limit = _vmem_budgets()
    if H <= _SMALL_SPATIAL and W <= _SMALL_SPATIAL:
        total = _ssim_sum_small(x1, x2, window_size, sigma, block_budget, vmem_limit)
    else:
        total = _ssim_sum_mxu(x1, x2, window_size, sigma, block_budget, vmem_limit)
    return 1.0 - total / float(N * H * W)


# Pure-JAX (non-Pallas) reference, used only for the self-check in __main__.
def _ssim_loss_reference(img1, img2, window_size=WINDOW_SIZE, sigma=SIGMA):
    B, C, H, W = img1.shape
    ah, aw = _band_conv_matrices(H, W, window_size, sigma)
    x1 = img1.astype(jnp.float32).reshape(B * C, H, W)
    x2 = img2.astype(jnp.float32).reshape(B * C, H, W)

    def conv(v):
        return jnp.einsum('oh,khw,wp->kop', ah, v, aw)

    mu1, mu2 = conv(x1), conv(x2)
    e11, e22, e12 = conv(x1 * x1), conv(x2 * x2), conv(x1 * x2)
    mu1_sq, mu2_sq, mu12 = mu1 * mu1, mu2 * mu2, mu1 * mu2
    num = (2.0 * mu12 + C1) * (2.0 * (e12 - mu12) + C2)
    den = (mu1_sq + mu2_sq + C1) * ((e11 - mu1_sq) + (e22 - mu2_sq) + C2)
    return 1.0 - jnp.mean(num / den)


if __name__ == "__main__":
    key = jax.random.PRNGKey(0)
    k1, k2 = jax.random.split(key)
    B, C, H, W = 2, 4, 16, 16

    img1 = jax.random.uniform(k1, (B, C, H, W), jnp.float32)
    img2 = jax.random.uniform(k2, (B, C, H, W), jnp.float32)

    loss = ssim_loss(img1, img2)
    jax.block_until_ready(loss)

    ref = _ssim_loss_reference(img1, img2)
    assert abs(float(loss) - float(ref)) < 1e-3, (float(loss), float(ref))
    print("KERNEL_OK")
</pallas_src>

<mosaic_0001>
module attributes {stable_mosaic.version = 11 : i64} {
  func.func @_ssim_small_kernel(%arg0: i32, %arg1: memref<4x26x26xf32, #tpu.memory_space<vmem>>, %arg2: memref<4x26x26xf32, #tpu.memory_space<vmem>>, %arg3: memref<1x1x128xf32, #tpu.memory_space<vmem>>) attributes {dimension_semantics = [#tpu.dimension_semantics<parallel>], iteration_bounds = array<i64: 2>, scalar_prefetch = 0 : i64, scratch_operands = 0 : i64, tpu.core_type = #tpu.core_type<tc>, window_params = [{transform_indices = @transform_0, window_bounds = array<i64: 4, 26, 26>}, {transform_indices = @transform_1, window_bounds = array<i64: 4, 26, 26>}, {transform_indices = @transform_2, window_bounds = array<i64: 1, 1, 128>}]} {
    %c0 = arith.constant 0 : index
    %c0_0 = arith.constant 0 : index
    %c0_1 = arith.constant 0 : index
    %0 = vector.load %arg1[%c0, %c0_0, %c0_1] : memref<4x26x26xf32, #tpu.memory_space<vmem>>, vector<4x26x26xf32>
    %c0_2 = arith.constant 0 : index
    %c0_3 = arith.constant 0 : index
    %c0_4 = arith.constant 0 : index
    %1 = vector.load %arg2[%c0_2, %c0_3, %c0_4] : memref<4x26x26xf32, #tpu.memory_space<vmem>>, vector<4x26x26xf32>
    %2 = vector.extract_strided_slice %0 {offsets = [0, 0, 0], sizes = [4, 26, 16], strides = [1, 1, 1]} : vector<4x26x26xf32> to vector<4x26x16xf32>
    %cst = arith.constant 0.00102838012 : f32
    %3 = vector.broadcast %cst : f32 to vector<4x26x16xf32>
    %4 = arith.mulf %3, %2 : vector<4x26x16xf32>
    %5 = vector.extract_strided_slice %0 {offsets = [0, 0, 1], sizes = [4, 26, 16], strides = [1, 1, 1]} : vector<4x26x26xf32> to vector<4x26x16xf32>
    %cst_5 = arith.constant 0.00759875821 : f32
    %6 = vector.broadcast %cst_5 : f32 to vector<4x26x16xf32>
    %7 = arith.mulf %6, %5 : vector<4x26x16xf32>
    %8 = arith.addf %4, %7 : vector<4x26x16xf32>
    %9 = vector.extract_strided_slice %0 {offsets = [0, 0, 2], sizes = [4, 26, 16], strides = [1, 1, 1]} : vector<4x26x26xf32> to vector<4x26x16xf32>
    %cst_6 = arith.constant 0.0360007733 : f32
    %10 = vector.broadcast %cst_6 : f32 to vector<4x26x16xf32>
    %11 = arith.mulf %10, %9 : vector<4x26x16xf32>
    %12 = arith.addf %8, %11 : vector<4x26x16xf32>
    %13 = vector.extract_strided_slice %0 {offsets = [0, 0, 3], sizes = [4, 26, 16], strides = [1, 1, 1]} : vector<4x26x26xf32> to vector<4x26x16xf32>
    %cst_7 = arith.constant 0.109360687 : f32
    %14 = vector.broadcast %cst_7 : f32 to vector<4x26x16xf32>
    %15 = arith.mulf %14, %13 : vector<4x26x16xf32>
    %16 = arith.addf %12, %15 : vector<4x26x16xf32>
    %17 = vector.extract_strided_slice %0 {offsets = [0, 0, 4], sizes = [4, 26, 16], strides = [1, 1, 1]} : vector<4x26x26xf32> to vector<4x26x16xf32>
    %cst_8 = arith.constant 0.213005543 : f32
    %18 = vector.broadcast %cst_8 : f32 to vector<4x26x16xf32>
    %19 = arith.mulf %18, %17 : vector<4x26x16xf32>
    %20 = arith.addf %16, %19 : vector<4x26x16xf32>
    %21 = vector.extract_strided_slice %0 {offsets = [0, 0, 5], sizes = [4, 26, 16], strides = [1, 1, 1]} : vector<4x26x26xf32> to vector<4x26x16xf32>
    %cst_9 = arith.constant 0.266011715 : f32
    %22 = vector.broadcast %cst_9 : f32 to vector<4x26x16xf32>
    %23 = arith.mulf %22, %21 : vector<4x26x16xf32>
    %24 = arith.addf %20, %23 : vector<4x26x16xf32>
    %25 = vector.extract_strided_slice %0 {offsets = [0, 0, 6], sizes = [4, 26, 16], strides = [1, 1, 1]} : vector<4x26x26xf32> to vector<4x26x16xf32>
    %cst_10 = arith.constant 0.213005543 : f32
    %26 = vector.broadcast %cst_10 : f32 to vector<4x26x16xf32>
    %27 = arith.mulf %26, %25 : vector<4x26x16xf32>
    %28 = arith.addf %24, %27 : vector<4x26x16xf32>
    %29 = vector.extract_strided_slice %0 {offsets = [0, 0, 7], sizes = [4, 26, 16], strides = [1, 1, 1]} : vector<4x26x26xf32> to vector<4x26x16xf32>
    %cst_11 = arith.constant 0.109360687 : f32
    %30 = vector.broadcast %cst_11 : f32 to vector<4x26x16xf32>
    %31 = arith.mulf %30, %29 : vector<4x26x16xf32>
    %32 = arith.addf %28, %31 : vector<4x26x16xf32>
    %33 = vector.extract_strided_slice %0 {offsets = [0, 0, 8], sizes = [4, 26, 16], strides = [1, 1, 1]} : vector<4x26x26xf32> to vector<4x26x16xf32>
    %cst_12 = arith.constant 0.0360007733 : f32
    %34 = vector.broadcast %cst_12 : f32 to vector<4x26x16xf32>
    %35 = arith.mulf %34, %33 : vector<4x26x16xf32>
    %36 = arith.addf %32, %35 : vector<4x26x16xf32>
    %37 = vector.extract_strided_slice %0 {offsets = [0, 0, 9], sizes = [4, 26, 16], strides = [1, 1, 1]} : vector<4x26x26xf32> to vector<4x26x16xf32>
    %cst_13 = arith.constant 0.00759875821 : f32
    %38 = vector.broadcast %cst_13 : f32 to vector<4x26x16xf32>
    %39 = arith.mulf %38, %37 : vector<4x26x16xf32>
    %40 = arith.addf %36, %39 : vector<4x26x16xf32>
    %41 = vector.extract_strided_slice %0 {offsets = [0, 0, 10], sizes = [4, 26, 16], strides = [1, 1, 1]} : vector<4x26x26xf32> to vector<4x26x16xf32>
    %cst_14 = arith.constant 0.00102838012 : f32
    %42 = vector.broadcast %cst_14 : f32 to vector<4x26x16xf32>
    %43 = arith.mulf %42, %41 : vector<4x26x16xf32>
    %44 = arith.addf %40, %43 : vector<4x26x16xf32>
    %45 = vector.extract_strided_slice %44 {offsets = [0, 0, 0], sizes = [4, 16, 16], strides = [1, 1, 1]} : vector<4x26x16xf32> to vector<4x16x16xf32>
    %cst_15 = arith.constant 0.00102838012 : f32
    %46 = vector.broadcast %cst_15 : f32 to vector<4x16x16xf32>
    %47 = arith.mulf %46, %45 : vector<4x16x16xf32>
    %48 = vector.extract_strided_slice %44 {offsets = [0, 1, 0], sizes = [4, 16, 16], strides = [1, 1, 1]} : vector<4x26x16xf32> to vector<4x16x16xf32>
    %cst_16 = arith.constant 0.00759875821 : f32
    %49 = vector.broadcast %cst_16 : f32 to vector<4x16x16xf32>
    %50 = arith.mulf %49, %48 : vector<4x16x16xf32>
    %51 = arith.addf %47, %50 : vector<4x16x16xf32>
    %52 = vector.extract_strided_slice %44 {offsets = [0, 2, 0], sizes = [4, 16, 16], strides = [1, 1, 1]} : vector<4x26x16xf32> to vector<4x16x16xf32>
    %cst_17 = arith.constant 0.0360007733 : f32
    %53 = vector.broadcast %cst_17 : f32 to vector<4x16x16xf32>
    %54 = arith.mulf %53, %52 : vector<4x16x16xf32>
    %55 = arith.addf %51, %54 : vector<4x16x16xf32>
    %56 = vector.extract_strided_slice %44 {offsets = [0, 3, 0], sizes = [4, 16, 16], strides = [1, 1, 1]} : vector<4x26x16xf32> to vector<4x16x16xf32>
    %cst_18 = arith.constant 0.109360687 : f32
    %57 = vector.broadcast %cst_18 : f32 to vector<4x16x16xf32>
    %58 = arith.mulf %57, %56 : vector<4x16x16xf32>
    %59 = arith.addf %55, %58 : vector<4x16x16xf32>
    %60 = vector.extract_strided_slice %44 {offsets = [0, 4, 0], sizes = [4, 16, 16], strides = [1, 1, 1]} : vector<4x26x16xf32> to vector<4x16x16xf32>
    %cst_19 = arith.constant 0.213005543 : f32
    %61 = vector.broadcast %cst_19 : f32 to vector<4x16x16xf32>
    %62 = arith.mulf %61, %60 : vector<4x16x16xf32>
    %63 = arith.addf %59, %62 : vector<4x16x16xf32>
    %64 = vector.extract_strided_slice %44 {offsets = [0, 5, 0], sizes = [4, 16, 16], strides = [1, 1, 1]} : vector<4x26x16xf32> to vector<4x16x16xf32>
    %cst_20 = arith.constant 0.266011715 : f32
    %65 = vector.broadcast %cst_20 : f32 to vector<4x16x16xf32>
    %66 = arith.mulf %65, %64 : vector<4x16x16xf32>
    %67 = arith.addf %63, %66 : vector<4x16x16xf32>
    %68 = vector.extract_strided_slice %44 {offsets = [0, 6, 0], sizes = [4, 16, 16], strides = [1, 1, 1]} : vector<4x26x16xf32> to vector<4x16x16xf32>
    %cst_21 = arith.constant 0.213005543 : f32
    %69 = vector.broadcast %cst_21 : f32 to vector<4x16x16xf32>
    %70 = arith.mulf %69, %68 : vector<4x16x16xf32>
    %71 = arith.addf %67, %70 : vector<4x16x16xf32>
    %72 = vector.extract_strided_slice %44 {offsets = [0, 7, 0], sizes = [4, 16, 16], strides = [1, 1, 1]} : vector<4x26x16xf32> to vector<4x16x16xf32>
    %cst_22 = arith.constant 0.109360687 : f32
    %73 = vector.broadcast %cst_22 : f32 to vector<4x16x16xf32>
    %74 = arith.mulf %73, %72 : vector<4x16x16xf32>
    %75 = arith.addf %71, %74 : vector<4x16x16xf32>
    %76 = vector.extract_strided_slice %44 {offsets = [0, 8, 0], sizes = [4, 16, 16], strides = [1, 1, 1]} : vector<4x26x16xf32> to vector<4x16x16xf32>
    %cst_23 = arith.constant 0.0360007733 : f32
    %77 = vector.broadcast %cst_23 : f32 to vector<4x16x16xf32>
    %78 = arith.mulf %77, %76 : vector<4x16x16xf32>
    %79 = arith.addf %75, %78 : vector<4x16x16xf32>
    %80 = vector.extract_strided_slice %44 {offsets = [0, 9, 0], sizes = [4, 16, 16], strides = [1, 1, 1]} : vector<4x26x16xf32> to vector<4x16x16xf32>
    %cst_24 = arith.constant 0.00759875821 : f32
    %81 = vector.broadcast %cst_24 : f32 to vector<4x16x16xf32>
    %82 = arith.mulf %81, %80 : vector<4x16x16xf32>
    %83 = arith.addf %79, %82 : vector<4x16x16xf32>
    %84 = vector.extract_strided_slice %44 {offsets = [0, 10, 0], sizes = [4, 16, 16], strides = [1, 1, 1]} : vector<4x26x16xf32> to vector<4x16x16xf32>
    %cst_25 = arith.constant 0.00102838012 : f32
    %85 = vector.broadcast %cst_25 : f32 to vector<4x16x16xf32>
    %86 = arith.mulf %85, %84 : vector<4x16x16xf32>
    %87 = arith.addf %83, %86 : vector<4x16x16xf32>
    %88 = vector.extract_strided_slice %1 {offsets = [0, 0, 0], sizes = [4, 26, 16], strides = [1, 1, 1]} : vector<4x26x26xf32> to vector<4x26x16xf32>
    %cst_26 = arith.constant 0.00102838012 : f32
    %89 = vector.broadcast %cst_26 : f32 to vector<4x26x16xf32>
    %90 = arith.mulf %89, %88 : vector<4x26x16xf32>
    %91 = vector.extract_strided_slice %1 {offsets = [0, 0, 1], sizes = [4, 26, 16], strides = [1, 1, 1]} : vector<4x26x26xf32> to vector<4x26x16xf32>
    %cst_27 = arith.constant 0.00759875821 : f32
    %92 = vector.broadcast %cst_27 : f32 to vector<4x26x16xf32>
    %93 = arith.mulf %92, %91 : vector<4x26x16xf32>
    %94 = arith.addf %90, %93 : vector<4x26x16xf32>
    %95 = vector.extract_strided_slice %1 {offsets = [0, 0, 2], sizes = [4, 26, 16], strides = [1, 1, 1]} : vector<4x26x26xf32> to vector<4x26x16xf32>
    %cst_28 = arith.constant 0.0360007733 : f32
    %96 = vector.broadcast %cst_28 : f32 to vector<4x26x16xf32>
    %97 = arith.mulf %96, %95 : vector<4x26x16xf32>
    %98 = arith.addf %94, %97 : vector<4x26x16xf32>
    %99 = vector.extract_strided_slice %1 {offsets = [0, 0, 3], sizes = [4, 26, 16], strides = [1, 1, 1]} : vector<4x26x26xf32> to vector<4x26x16xf32>
    %cst_29 = arith.constant 0.109360687 : f32
    %100 = vector.broadcast %cst_29 : f32 to vector<4x26x16xf32>
    %101 = arith.mulf %100, %99 : vector<4x26x16xf32>
    %102 = arith.addf %98, %101 : vector<4x26x16xf32>
    %103 = vector.extract_strided_slice %1 {offsets = [0, 0, 4], sizes = [4, 26, 16], strides = [1, 1, 1]} : vector<4x26x26xf32> to vector<4x26x16xf32>
    %cst_30 = arith.constant 0.213005543 : f32
    %104 = vector.broadcast %cst_30 : f32 to vector<4x26x16xf32>
    %105 = arith.mulf %104, %103 : vector<4x26x16xf32>
    %106 = arith.addf %102, %105 : vector<4x26x16xf32>
    %107 = vector.extract_strided_slice %1 {offsets = [0, 0, 5], sizes = [4, 26, 16], strides = [1, 1, 1]} : vector<4x26x26xf32> to vector<4x26x16xf32>
    %cst_31 = arith.constant 0.266011715 : f32
    %108 = vector.broadcast %cst_31 : f32 to vector<4x26x16xf32>
    %109 = arith.mulf %108, %107 : vector<4x26x16xf32>
    %110 = arith.addf %106, %109 : vector<4x26x16xf32>
    %111 = vector.extract_strided_slice %1 {offsets = [0, 0, 6], sizes = [4, 26, 16], strides = [1, 1, 1]} : vector<4x26x26xf32> to vector<4x26x16xf32>
    %cst_32 = arith.constant 0.213005543 : f32
    %112 = vector.broadcast %cst_32 : f32 to vector<4x26x16xf32>
    %113 = arith.mulf %112, %111 : vector<4x26x16xf32>
    %114 = arith.addf %110, %113 : vector<4x26x16xf32>
    %115 = vector.extract_strided_slice %1 {offsets = [0, 0, 7], sizes = [4, 26, 16], strides = [1, 1, 1]} : vector<4x26x26xf32> to vector<4x26x16xf32>
    %cst_33 = arith.constant 0.109360687 : f32
    %116 = vector.broadcast %cst_33 : f32 to vector<4x26x16xf32>
    %117 = arith.mulf %116, %115 : vector<4x26x16xf32>
    %118 = arith.addf %114, %117 : vector<4x26x16xf32>
    %119 = vector.extract_strided_slice %1 {offsets = [0, 0, 8], sizes = [4, 26, 16], strides = [1, 1, 1]} : vector<4x26x26xf32> to vector<4x26x16xf32>
    %cst_34 = arith.constant 0.0360007733 : f32
    %120 = vector.broadcast %cst_34 : f32 to vector<4x26x16xf32>
    %121 = arith.mulf %120, %119 : vector<4x26x16xf32>
    %122 = arith.addf %118, %121 : vector<4x26x16xf32>
    %123 = vector.extract_strided_slice %1 {offsets = [0, 0, 9], sizes = [4, 26, 16], strides = [1, 1, 1]} : vector<4x26x26xf32> to vector<4x26x16xf32>
    %cst_35 = arith.constant 0.00759875821 : f32
    %124 = vector.broadcast %cst_35 : f32 to vector<4x26x16xf32>
    %125 = arith.mulf %124, %123 : vector<4x26x16xf32>
    %126 = arith.addf %122, %125 : vector<4x26x16xf32>
    %127 = vector.extract_strided_slice %1 {offsets = [0, 0, 10], sizes = [4, 26, 16], strides = [1, 1, 1]} : vector<4x26x26xf32> to vector<4x26x16xf32>
    %cst_36 = arith.constant 0.00102838012 : f32
    %128 = vector.broadcast %cst_36 : f32 to vector<4x26x16xf32>
    %129 = arith.mulf %128, %127 : vector<4x26x16xf32>
    %130 = arith.addf %126, %129 : vector<4x26x16xf32>
    %131 = vector.extract_strided_slice %130 {offsets = [0, 0, 0], sizes = [4, 16, 16], strides = [1, 1, 1]} : vector<4x26x16xf32> to vector<4x16x16xf32>
    %cst_37 = arith.constant 0.00102838012 : f32
    %132 = vector.broadcast %cst_37 : f32 to vector<4x16x16xf32>
    %133 = arith.mulf %132, %131 : vector<4x16x16xf32>
    %134 = vector.extract_strided_slice %130 {offsets = [0, 1, 0], sizes = [4, 16, 16], strides = [1, 1, 1]} : vector<4x26x16xf32> to vector<4x16x16xf32>
    %cst_38 = arith.constant 0.00759875821 : f32
    %135 = vector.broadcast %cst_38 : f32 to vector<4x16x16xf32>
    %136 = arith.mulf %135, %134 : vector<4x16x16xf32>
    %137 = arith.addf %133, %136 : vector<4x16x16xf32>
    %138 = vector.extract_strided_slice %130 {offsets = [0, 2, 0], sizes = [4, 16, 16], strides = [1, 1, 1]} : vector<4x26x16xf32> to vector<4x16x16xf32>
    %cst_39 = arith.constant 0.0360007733 : f32
    %139 = vector.broadcast %cst_39 : f32 to vector<4x16x16xf32>
    %140 = arith.mulf %139, %138 : vector<4x16x16xf32>
    %141 = arith.addf %137, %140 : vector<4x16x16xf32>
    %142 = vector.extract_strided_slice %130 {offsets = [0, 3, 0], sizes = [4, 16, 16], strides = [1, 1, 1]} : vector<4x26x16xf32> to vector<4x16x16xf32>
    %cst_40 = arith.constant 0.109360687 : f32
    %143 = vector.broadcast %cst_40 : f32 to vector<4x16x16xf32>
    %144 = arith.mulf %143, %142 : vector<4x16x16xf32>
    %145 = arith.addf %141, %144 : vector<4x16x16xf32>
    %146 = vector.extract_strided_slice %130 {offsets = [0, 4, 0], sizes = [4, 16, 16], strides = [1, 1, 1]} : vector<4x26x16xf32> to vector<4x16x16xf32>
    %cst_41 = arith.constant 0.213005543 : f32
    %147 = vector.broadcast %cst_41 : f32 to vector<4x16x16xf32>
    %148 = arith.mulf %147, %146 : vector<4x16x16xf32>
    %149 = arith.addf %145, %148 : vector<4x16x16xf32>
    %150 = vector.extract_strided_slice %130 {offsets = [0, 5, 0], sizes = [4, 16, 16], strides = [1, 1, 1]} : vector<4x26x16xf32> to vector<4x16x16xf32>
    %cst_42 = arith.constant 0.266011715 : f32
    %151 = vector.broadcast %cst_42 : f32 to vector<4x16x16xf32>
    %152 = arith.mulf %151, %150 : vector<4x16x16xf32>
    %153 = arith.addf %149, %152 : vector<4x16x16xf32>
    %154 = vector.extract_strided_slice %130 {offsets = [0, 6, 0], sizes = [4, 16, 16], strides = [1, 1, 1]} : vector<4x26x16xf32> to vector<4x16x16xf32>
    %cst_43 = arith.constant 0.213005543 : f32
    %155 = vector.broadcast %cst_43 : f32 to vector<4x16x16xf32>
    %156 = arith.mulf %155, %154 : vector<4x16x16xf32>
    %157 = arith.addf %153, %156 : vector<4x16x16xf32>
    %158 = vector.extract_strided_slice %130 {offsets = [0, 7, 0], sizes = [4, 16, 16], strides = [1, 1, 1]} : vector<4x26x16xf32> to vector<4x16x16xf32>
    %cst_44 = arith.constant 0.109360687 : f32
    %159 = vector.broadcast %cst_44 : f32 to vector<4x16x16xf32>
    %160 = arith.mulf %159, %158 : vector<4x16x16xf32>
    %161 = arith.addf %157, %160 : vector<4x16x16xf32>
    %162 = vector.extract_strided_slice %130 {offsets = [0, 8, 0], sizes = [4, 16, 16], strides = [1, 1, 1]} : vector<4x26x16xf32> to vector<4x16x16xf32>
    %cst_45 = arith.constant 0.0360007733 : f32
    %163 = vector.broadcast %cst_45 : f32 to vector<4x16x16xf32>
    %164 = arith.mulf %163, %162 : vector<4x16x16xf32>
    %165 = arith.addf %161, %164 : vector<4x16x16xf32>
    %166 = vector.extract_strided_slice %130 {offsets = [0, 9, 0], sizes = [4, 16, 16], strides = [1, 1, 1]} : vector<4x26x16xf32> to vector<4x16x16xf32>
    %cst_46 = arith.constant 0.00759875821 : f32
    %167 = vector.broadcast %cst_46 : f32 to vector<4x16x16xf32>
    %168 = arith.mulf %167, %166 : vector<4x16x16xf32>
    %169 = arith.addf %165, %168 : vector<4x16x16xf32>
    %170 = vector.extract_strided_slice %130 {offsets = [0, 10, 0], sizes = [4, 16, 16], strides = [1, 1, 1]} : vector<4x26x16xf32> to vector<4x16x16xf32>
    %cst_47 = arith.constant 0.00102838012 : f32
    %171 = vector.broadcast %cst_47 : f32 to vector<4x16x16xf32>
    %172 = arith.mulf %171, %170 : vector<4x16x16xf32>
    %173 = arith.addf %169, %172 : vector<4x16x16xf32>
    %174 = arith.mulf %0, %0 : vector<4x26x26xf32>
    %175 = vector.extract_strided_slice %174 {offsets = [0, 0, 0], sizes = [4, 26, 16], strides = [1, 1, 1]} : vector<4x26x26xf32> to vector<4x26x16xf32>
    %cst_48 = arith.constant 0.00102838012 : f32
    %176 = vector.broadcast %cst_48 : f32 to vector<4x26x16xf32>
    %177 = arith.mulf %176, %175 : vector<4x26x16xf32>
    %178 = vector.extract_strided_slice %174 {offsets = [0, 0, 1], sizes = [4, 26, 16], strides = [1, 1, 1]} : vector<4x26x26xf32> to vector<4x26x16xf32>
    %cst_49 = arith.constant 0.00759875821 : f32
    %179 = vector.broadcast %cst_49 : f32 to vector<4x26x16xf32>
    %180 = arith.mulf %179, %178 : vector<4x26x16xf32>
    %181 = arith.addf %177, %180 : vector<4x26x16xf32>
    %182 = vector.extract_strided_slice %174 {offsets = [0, 0, 2], sizes = [4, 26, 16], strides = [1, 1, 1]} : vector<4x26x26xf32> to vector<4x26x16xf32>
    %cst_50 = arith.constant 0.0360007733 : f32
    %183 = vector.broadcast %cst_50 : f32 to vector<4x26x16xf32>
    %184 = arith.mulf %183, %182 : vector<4x26x16xf32>
    %185 = arith.addf %181, %184 : vector<4x26x16xf32>
    %186 = vector.extract_strided_slice %174 {offsets = [0, 0, 3], sizes = [4, 26, 16], strides = [1, 1, 1]} : vector<4x26x26xf32> to vector<4x26x16xf32>
    %cst_51 = arith.constant 0.109360687 : f32
    %187 = vector.broadcast %cst_51 : f32 to vector<4x26x16xf32>
    %188 = arith.mulf %187, %186 : vector<4x26x16xf32>
    %189 = arith.addf %185, %188 : vector<4x26x16xf32>
    %190 = vector.extract_strided_slice %174 {offsets = [0, 0, 4], sizes = [4, 26, 16], strides = [1, 1, 1]} : vector<4x26x26xf32> to vector<4x26x16xf32>
    %cst_52 = arith.constant 0.213005543 : f32
    %191 = vector.broadcast %cst_52 : f32 to vector<4x26x16xf32>
    %192 = arith.mulf %191, %190 : vector<4x26x16xf32>
    %193 = arith.addf %189, %192 : vector<4x26x16xf32>
    %194 = vector.extract_strided_slice %174 {offsets = [0, 0, 5], sizes = [4, 26, 16], strides = [1, 1, 1]} : vector<4x26x26xf32> to vector<4x26x16xf32>
    %cst_53 = arith.constant 0.266011715 : f32
    %195 = vector.broadcast %cst_53 : f32 to vector<4x26x16xf32>
    %196 = arith.mulf %195, %194 : vector<4x26x16xf32>
    %197 = arith.addf %193, %196 : vector<4x26x16xf32>
    %198 = vector.extract_strided_slice %174 {offsets = [0, 0, 6], sizes = [4, 26, 16], strides = [1, 1, 1]} : vector<4x26x26xf32> to vector<4x26x16xf32>
    %cst_54 = arith.constant 0.213005543 : f32
    %199 = vector.broadcast %cst_54 : f32 to vector<4x26x16xf32>
    %200 = arith.mulf %199, %198 : vector<4x26x16xf32>
    %201 = arith.addf %197, %200 : vector<4x26x16xf32>
    %202 = vector.extract_strided_slice %174 {offsets = [0, 0, 7], sizes = [4, 26, 16], strides = [1, 1, 1]} : vector<4x26x26xf32> to vector<4x26x16xf32>
    %cst_55 = arith.constant 0.109360687 : f32
    %203 = vector.broadcast %cst_55 : f32 to vector<4x26x16xf32>
    %204 = arith.mulf %203, %202 : vector<4x26x16xf32>
    %205 = arith.addf %201, %204 : vector<4x26x16xf32>
    %206 = vector.extract_strided_slice %174 {offsets = [0, 0, 8], sizes = [4, 26, 16], strides = [1, 1, 1]} : vector<4x26x26xf32> to vector<4x26x16xf32>
    %cst_56 = arith.constant 0.0360007733 : f32
    %207 = vector.broadcast %cst_56 : f32 to vector<4x26x16xf32>
    %208 = arith.mulf %207, %206 : vector<4x26x16xf32>
    %209 = arith.addf %205, %208 : vector<4x26x16xf32>
    %210 = vector.extract_strided_slice %174 {offsets = [0, 0, 9], sizes = [4, 26, 16], strides = [1, 1, 1]} : vector<4x26x26xf32> to vector<4x26x16xf32>
    %cst_57 = arith.constant 0.00759875821 : f32
    %211 = vector.broadcast %cst_57 : f32 to vector<4x26x16xf32>
    %212 = arith.mulf %211, %210 : vector<4x26x16xf32>
    %213 = arith.addf %209, %212 : vector<4x26x16xf32>
    %214 = vector.extract_strided_slice %174 {offsets = [0, 0, 10], sizes = [4, 26, 16], strides = [1, 1, 1]} : vector<4x26x26xf32> to vector<4x26x16xf32>
    %cst_58 = arith.constant 0.00102838012 : f32
    %215 = vector.broadcast %cst_58 : f32 to vector<4x26x16xf32>
    %216 = arith.mulf %215, %214 : vector<4x26x16xf32>
    %217 = arith.addf %213, %216 : vector<4x26x16xf32>
    %218 = vector.extract_strided_slice %217 {offsets = [0, 0, 0], sizes = [4, 16, 16], strides = [1, 1, 1]} : vector<4x26x16xf32> to vector<4x16x16xf32>
    %cst_59 = arith.constant 0.00102838012 : f32
    %219 = vector.broadcast %cst_59 : f32 to vector<4x16x16xf32>
    %220 = arith.mulf %219, %218 : vector<4x16x16xf32>
    %221 = vector.extract_strided_slice %217 {offsets = [0, 1, 0], sizes = [4, 16, 16], strides = [1, 1, 1]} : vector<4x26x16xf32> to vector<4x16x16xf32>
    %cst_60 = arith.constant 0.00759875821 : f32
    %222 = vector.broadcast %cst_60 : f32 to vector<4x16x16xf32>
    %223 = arith.mulf %222, %221 : vector<4x16x16xf32>
    %224 = arith.addf %220, %223 : vector<4x16x16xf32>
    %225 = vector.extract_strided_slice %217 {offsets = [0, 2, 0], sizes = [4, 16, 16], strides = [1, 1, 1]} : vector<4x26x16xf32> to vector<4x16x16xf32>
    %cst_61 = arith.constant 0.0360007733 : f32
    %226 = vector.broadcast %cst_61 : f32 to vector<4x16x16xf32>
    %227 = arith.mulf %226, %225 : vector<4x16x16xf32>
    %228 = arith.addf %224, %227 : vector<4x16x16xf32>
    %229 = vector.extract_strided_slice %217 {offsets = [0, 3, 0], sizes = [4, 16, 16], strides = [1, 1, 1]} : vector<4x26x16xf32> to vector<4x16x16xf32>
    %cst_62 = arith.constant 0.109360687 : f32
    %230 = vector.broadcast %cst_62 : f32 to vector<4x16x16xf32>
    %231 = arith.mulf %230, %229 : vector<4x16x16xf32>
    %232 = arith.addf %228, %231 : vector<4x16x16xf32>
    %233 = vector.extract_strided_slice %217 {offsets = [0, 4, 0], sizes = [4, 16, 16], strides = [1, 1, 1]} : vector<4x26x16xf32> to vector<4x16x16xf32>
    %cst_63 = arith.constant 0.213005543 : f32
    %234 = vector.broadcast %cst_63 : f32 to vector<4x16x16xf32>
    %235 = arith.mulf %234, %233 : vector<4x16x16xf32>
    %236 = arith.addf %232, %235 : vector<4x16x16xf32>
    %237 = vector.extract_strided_slice %217 {offsets = [0, 5, 0], sizes = [4, 16, 16], strides = [1, 1, 1]} : vector<4x26x16xf32> to vector<4x16x16xf32>
    %cst_64 = arith.constant 0.266011715 : f32
    %238 = vector.broadcast %cst_64 : f32 to vector<4x16x16xf32>
    %239 = arith.mulf %238, %237 : vector<4x16x16xf32>
    %240 = arith.addf %236, %239 : vector<4x16x16xf32>
    %241 = vector.extract_strided_slice %217 {offsets = [0, 6, 0], sizes = [4, 16, 16], strides = [1, 1, 1]} : vector<4x26x16xf32> to vector<4x16x16xf32>
    %cst_65 = arith.constant 0.213005543 : f32
    %242 = vector.broadcast %cst_65 : f32 to vector<4x16x16xf32>
    %243 = arith.mulf %242, %241 : vector<4x16x16xf32>
    %244 = arith.addf %240, %243 : vector<4x16x16xf32>
    %245 = vector.extract_strided_slice %217 {offsets = [0, 7, 0], sizes = [4, 16, 16], strides = [1, 1, 1]} : vector<4x26x16xf32> to vector<4x16x16xf32>
    %cst_66 = arith.constant 0.109360687 : f32
    %246 = vector.broadcast %cst_66 : f32 to vector<4x16x16xf32>
    %247 = arith.mulf %246, %245 : vector<4x16x16xf32>
    %248 = arith.addf %244, %247 : vector<4x16x16xf32>
    %249 = vector.extract_strided_slice %217 {offsets = [0, 8, 0], sizes = [4, 16, 16], strides = [1, 1, 1]} : vector<4x26x16xf32> to vector<4x16x16xf32>
    %cst_67 = arith.constant 0.0360007733 : f32
    %250 = vector.broadcast %cst_67 : f32 to vector<4x16x16xf32>
    %251 = arith.mulf %250, %249 : vector<4x16x16xf32>
    %252 = arith.addf %248, %251 : vector<4x16x16xf32>
    %253 = vector.extract_strided_slice %217 {offsets = [0, 9, 0], sizes = [4, 16, 16], strides = [1, 1, 1]} : vector<4x26x16xf32> to vector<4x16x16xf32>
    %cst_68 = arith.constant 0.00759875821 : f32
    %254 = vector.broadcast %cst_68 : f32 to vector<4x16x16xf32>
    %255 = arith.mulf %254, %253 : vector<4x16x16xf32>
    %256 = arith.addf %252, %255 : vector<4x16x16xf32>
    %257 = vector.extract_strided_slice %217 {offsets = [0, 10, 0], sizes = [4, 16, 16], strides = [1, 1, 1]} : vector<4x26x16xf32> to vector<4x16x16xf32>
    %cst_69 = arith.constant 0.00102838012 : f32
    %258 = vector.broadcast %cst_69 : f32 to vector<4x16x16xf32>
    %259 = arith.mulf %258, %257 : vector<4x16x16xf32>
    %260 = arith.addf %256, %259 : vector<4x16x16xf32>
    %261 = arith.mulf %1, %1 : vector<4x26x26xf32>
    %262 = vector.extract_strided_slice %261 {offsets = [0, 0, 0], sizes = [4, 26, 16], strides = [1, 1, 1]} : vector<4x26x26xf32> to vector<4x26x16xf32>
    %cst_70 = arith.constant 0.00102838012 : f32
    %263 = vector.broadcast %cst_70 : f32 to vector<4x26x16xf32>
    %264 = arith.mulf %263, %262 : vector<4x26x16xf32>
    %265 = vector.extract_strided_slice %261 {offsets = [0, 0, 1], sizes = [4, 26, 16], strides = [1, 1, 1]} : vector<4x26x26xf32> to vector<4x26x16xf32>
    %cst_71 = arith.constant 0.00759875821 : f32
    %266 = vector.broadcast %cst_71 : f32 to vector<4x26x16xf32>
    %267 = arith.mulf %266, %265 : vector<4x26x16xf32>
    %268 = arith.addf %264, %267 : vector<4x26x16xf32>
    %269 = vector.extract_strided_slice %261 {offsets = [0, 0, 2], sizes = [4, 26, 16], strides = [1, 1, 1]} : vector<4x26x26xf32> to vector<4x26x16xf32>
    %cst_72 = arith.constant 0.0360007733 : f32
    %270 = vector.broadcast %cst_72 : f32 to vector<4x26x16xf32>
    %271 = arith.mulf %270, %269 : vector<4x26x16xf32>
    %272 = arith.addf %268, %271 : vector<4x26x16xf32>
    %273 = vector.extract_strided_slice %261 {offsets = [0, 0, 3], sizes = [4, 26, 16], strides = [1, 1, 1]} : vector<4x26x26xf32> to vector<4x26x16xf32>
    %cst_73 = arith.constant 0.109360687 : f32
    %274 = vector.broadcast %cst_73 : f32 to vector<4x26x16xf32>
    %275 = arith.mulf %274, %273 : vector<4x26x16xf32>
    %276 = arith.addf %272, %275 : vector<4x26x16xf32>
    %277 = vector.extract_strided_slice %261 {offsets = [0, 0, 4], sizes = [4, 26, 16], strides = [1, 1, 1]} : vector<4x26x26xf32> to vector<4x26x16xf32>
    %cst_74 = arith.constant 0.213005543 : f32
    %278 = vector.broadcast %cst_74 : f32 to vector<4x26x16xf32>
    %279 = arith.mulf %278, %277 : vector<4x26x16xf32>
    %280 = arith.addf %276, %279 : vector<4x26x16xf32>
    %281 = vector.extract_strided_slice %261 {offsets = [0, 0, 5], sizes = [4, 26, 16], strides = [1, 1, 1]} : vector<4x26x26xf32> to vector<4x26x16xf32>
    %cst_75 = arith.constant 0.266011715 : f32
    %282 = vector.broadcast %cst_75 : f32 to vector<4x26x16xf32>
    %283 = arith.mulf %282, %281 : vector<4x26x16xf32>
    %284 = arith.addf %280, %283 : vector<4x26x16xf32>
    %285 = vector.extract_strided_slice %261 {offsets = [0, 0, 6], sizes = [4, 26, 16], strides = [1, 1, 1]} : vector<4x26x26xf32> to vector<4x26x16xf32>
    %cst_76 = arith.constant 0.213005543 : f32
    %286 = vector.broadcast %cst_76 : f32 to vector<4x26x16xf32>
    %287 = arith.mulf %286, %285 : vector<4x26x16xf32>
    %288 = arith.addf %284, %287 : vector<4x26x16xf32>
    %289 = vector.extract_strided_slice %261 {offsets = [0, 0, 7], sizes = [4, 26, 16], strides = [1, 1, 1]} : vector<4x26x26xf32> to vector<4x26x16xf32>
    %cst_77 = arith.constant 0.109360687 : f32
    %290 = vector.broadcast %cst_77 : f32 to vector<4x26x16xf32>
    %291 = arith.mulf %290, %289 : vector<4x26x16xf32>
    %292 = arith.addf %288, %291 : vector<4x26x16xf32>
    %293 = vector.extract_strided_slice %261 {offsets = [0, 0, 8], sizes = [4, 26, 16], strides = [1, 1, 1]} : vector<4x26x26xf32> to vector<4x26x16xf32>
    %cst_78 = arith.constant 0.0360007733 : f32
    %294 = vector.broadcast %cst_78 : f32 to vector<4x26x16xf32>
    %295 = arith.mulf %294, %293 : vector<4x26x16xf32>
    %296 = arith.addf %292, %295 : vector<4x26x16xf32>
    %297 = vector.extract_strided_slice %261 {offsets = [0, 0, 9], sizes = [4, 26, 16], strides = [1, 1, 1]} : vector<4x26x26xf32> to vector<4x26x16xf32>
    %cst_79 = arith.constant 0.00759875821 : f32
    %298 = vector.broadcast %cst_79 : f32 to vector<4x26x16xf32>
    %299 = arith.mulf %298, %297 : vector<4x26x16xf32>
    %300 = arith.addf %296, %299 : vector<4x26x16xf32>
    %301 = vector.extract_strided_slice %261 {offsets = [0, 0, 10], sizes = [4, 26, 16], strides = [1, 1, 1]} : vector<4x26x26xf32> to vector<4x26x16xf32>
    %cst_80 = arith.constant 0.00102838012 : f32
    %302 = vector.broadcast %cst_80 : f32 to vector<4x26x16xf32>
    %303 = arith.mulf %302, %301 : vector<4x26x16xf32>
    %304 = arith.addf %300, %303 : vector<4x26x16xf32>
    %305 = vector.extract_strided_slice %304 {offsets = [0, 0, 0], sizes = [4, 16, 16], strides = [1, 1, 1]} : vector<4x26x16xf32> to vector<4x16x16xf32>
    %cst_81 = arith.constant 0.00102838012 : f32
    %306 = vector.broadcast %cst_81 : f32 to vector<4x16x16xf32>
    %307 = arith.mulf %306, %305 : vector<4x16x16xf32>
    %308 = vector.extract_strided_slice %304 {offsets = [0, 1, 0], sizes = [4, 16, 16], strides = [1, 1, 1]} : vector<4x26x16xf32> to vector<4x16x16xf32>
    %cst_82 = arith.constant 0.00759875821 : f32
    %309 = vector.broadcast %cst_82 : f32 to vector<4x16x16xf32>
    %310 = arith.mulf %309, %308 : vector<4x16x16xf32>
    %311 = arith.addf %307, %310 : vector<4x16x16xf32>
    %312 = vector.extract_strided_slice %304 {offsets = [0, 2, 0], sizes = [4, 16, 16], strides = [1, 1, 1]} : vector<4x26x16xf32> to vector<4x16x16xf32>
    %cst_83 = arith.constant 0.0360007733 : f32
    %313 = vector.broadcast %cst_83 : f32 to vector<4x16x16xf32>
    %314 = arith.mulf %313, %312 : vector<4x16x16xf32>
    %315 = arith.addf %311, %314 : vector<4x16x16xf32>
    %316 = vector.extract_strided_slice %304 {offsets = [0, 3, 0], sizes = [4, 16, 16], strides = [1, 1, 1]} : vector<4x26x16xf32> to vector<4x16x16xf32>
    %cst_84 = arith.constant 0.109360687 : f32
    %317 = vector.broadcast %cst_84 : f32 to vector<4x16x16xf32>
    %318 = arith.mulf %317, %316 : vector<4x16x16xf32>
    %319 = arith.addf %315, %318 : vector<4x16x16xf32>
    %320 = vector.extract_strided_slice %304 {offsets = [0, 4, 0], sizes = [4, 16, 16], strides = [1, 1, 1]} : vector<4x26x16xf32> to vector<4x16x16xf32>
    %cst_85 = arith.constant 0.213005543 : f32
    %321 = vector.broadcast %cst_85 : f32 to vector<4x16x16xf32>
    %322 = arith.mulf %321, %320 : vector<4x16x16xf32>
    %323 = arith.addf %319, %322 : vector<4x16x16xf32>
    %324 = vector.extract_strided_slice %304 {offsets = [0, 5, 0], sizes = [4, 16, 16], strides = [1, 1, 1]} : vector<4x26x16xf32> to vector<4x16x16xf32>
    %cst_86 = arith.constant 0.266011715 : f32
    %325 = vector.broadcast %cst_86 : f32 to vector<4x16x16xf32>
    %326 = arith.mulf %325, %324 : vector<4x16x16xf32>
    %327 = arith.addf %323, %326 : vector<4x16x16xf32>
    %328 = vector.extract_strided_slice %304 {offsets = [0, 6, 0], sizes = [4, 16, 16], strides = [1, 1, 1]} : vector<4x26x16xf32> to vector<4x16x16xf32>
    %cst_87 = arith.constant 0.213005543 : f32
    %329 = vector.broadcast %cst_87 : f32 to vector<4x16x16xf32>
    %330 = arith.mulf %329, %328 : vector<4x16x16xf32>
    %331 = arith.addf %327, %330 : vector<4x16x16xf32>
    %332 = vector.extract_strided_slice %304 {offsets = [0, 7, 0], sizes = [4, 16, 16], strides = [1, 1, 1]} : vector<4x26x16xf32> to vector<4x16x16xf32>
    %cst_88 = arith.constant 0.109360687 : f32
    %333 = vector.broadcast %cst_88 : f32 to vector<4x16x16xf32>
    %334 = arith.mulf %333, %332 : vector<4x16x16xf32>
    %335 = arith.addf %331, %334 : vector<4x16x16xf32>
    %336 = vector.extract_strided_slice %304 {offsets = [0, 8, 0], sizes = [4, 16, 16], strides = [1, 1, 1]} : vector<4x26x16xf32> to vector<4x16x16xf32>
    %cst_89 = arith.constant 0.0360007733 : f32
    %337 = vector.broadcast %cst_89 : f32 to vector<4x16x16xf32>
    %338 = arith.mulf %337, %336 : vector<4x16x16xf32>
    %339 = arith.addf %335, %338 : vector<4x16x16xf32>
    %340 = vector.extract_strided_slice %304 {offsets = [0, 9, 0], sizes = [4, 16, 16], strides = [1, 1, 1]} : vector<4x26x16xf32> to vector<4x16x16xf32>
    %cst_90 = arith.constant 0.00759875821 : f32
    %341 = vector.broadcast %cst_90 : f32 to vector<4x16x16xf32>
    %342 = arith.mulf %341, %340 : vector<4x16x16xf32>
    %343 = arith.addf %339, %342 : vector<4x16x16xf32>
    %344 = vector.extract_strided_slice %304 {offsets = [0, 10, 0], sizes = [4, 16, 16], strides = [1, 1, 1]} : vector<4x26x16xf32> to vector<4x16x16xf32>
    %cst_91 = arith.constant 0.00102838012 : f32
    %345 = vector.broadcast %cst_91 : f32 to vector<4x16x16xf32>
    %346 = arith.mulf %345, %344 : vector<4x16x16xf32>
    %347 = arith.addf %343, %346 : vector<4x16x16xf32>
    %348 = arith.mulf %0, %1 : vector<4x26x26xf32>
    %349 = vector.extract_strided_slice %348 {offsets = [0, 0, 0], sizes = [4, 26, 16], strides = [1, 1, 1]} : vector<4x26x26xf32> to vector<4x26x16xf32>
    %cst_92 = arith.constant 0.00102838012 : f32
    %350 = vector.broadcast %cst_92 : f32 to vector<4x26x16xf32>
    %351 = arith.mulf %350, %349 : vector<4x26x16xf32>
    %352 = vector.extract_strided_slice %348 {offsets = [0, 0, 1], sizes = [4, 26, 16], strides = [1, 1, 1]} : vector<4x26x26xf32> to vector<4x26x16xf32>
    %cst_93 = arith.constant 0.00759875821 : f32
    %353 = vector.broadcast %cst_93 : f32 to vector<4x26x16xf32>
    %354 = arith.mulf %353, %352 : vector<4x26x16xf32>
    %355 = arith.addf %351, %354 : vector<4x26x16xf32>
    %356 = vector.extract_strided_slice %348 {offsets = [0, 0, 2], sizes = [4, 26, 16], strides = [1, 1, 1]} : vector<4x26x26xf32> to vector<4x26x16xf32>
    %cst_94 = arith.constant 0.0360007733 : f32
    %357 = vector.broadcast %cst_94 : f32 to vector<4x26x16xf32>
    %358 = arith.mulf %357, %356 : vector<4x26x16xf32>
    %359 = arith.addf %355, %358 : vector<4x26x16xf32>
    %360 = vector.extract_strided_slice %348 {offsets = [0, 0, 3], sizes = [4, 26, 16], strides = [1, 1, 1]} : vector<4x26x26xf32> to vector<4x26x16xf32>
    %cst_95 = arith.constant 0.109360687 : f32
    %361 = vector.broadcast %cst_95 : f32 to vector<4x26x16xf32>
    %362 = arith.mulf %361, %360 : vector<4x26x16xf32>
    %363 = arith.addf %359, %362 : vector<4x26x16xf32>
    %364 = vector.extract_strided_slice %348 {offsets = [0, 0, 4], sizes = [4, 26, 16], strides = [1, 1, 1]} : vector<4x26x26xf32> to vector<4x26x16xf32>
    %cst_96 = arith.constant 0.213005543 : f32
    %365 = vector.broadcast %cst_96 : f32 to vector<4x26x16xf32>
    %366 = arith.mulf %365, %364 : vector<4x26x16xf32>
    %367 = arith.addf %363, %366 : vector<4x26x16xf32>
    %368 = vector.extract_strided_slice %348 {offsets = [0, 0, 5], sizes = [4, 26, 16], strides = [1, 1, 1]} : vector<4x26x26xf32> to vector<4x26x16xf32>
    %cst_97 = arith.constant 0.266011715 : f32
    %369 = vector.broadcast %cst_97 : f32 to vector<4x26x16xf32>
    %370 = arith.mulf %369, %368 : vector<4x26x16xf32>
    %371 = arith.addf %367, %370 : vector<4x26x16xf32>
    %372 = vector.extract_strided_slice %348 {offsets = [0, 0, 6], sizes = [4, 26, 16], strides = [1, 1, 1]} : vector<4x26x26xf32> to vector<4x26x16xf32>
    %cst_98 = arith.constant 0.213005543 : f32
    %373 = vector.broadcast %cst_98 : f32 to vector<4x26x16xf32>
    %374 = arith.mulf %373, %372 : vector<4x26x16xf32>
    %375 = arith.addf %371, %374 : vector<4x26x16xf32>
    %376 = vector.extract_strided_slice %348 {offsets = [0, 0, 7], sizes = [4, 26, 16], strides = [1, 1, 1]} : vector<4x26x26xf32> to vector<4x26x16xf32>
    %cst_99 = arith.constant 0.109360687 : f32
    %377 = vector.broadcast %cst_99 : f32 to vector<4x26x16xf32>
    %378 = arith.mulf %377, %376 : vector<4x26x16xf32>
    %379 = arith.addf %375, %378 : vector<4x26x16xf32>
    %380 = vector.extract_strided_slice %348 {offsets = [0, 0, 8], sizes = [4, 26, 16], strides = [1, 1, 1]} : vector<4x26x26xf32> to vector<4x26x16xf32>
    %cst_100 = arith.constant 0.0360007733 : f32
    %381 = vector.broadcast %cst_100 : f32 to vector<4x26x16xf32>
    %382 = arith.mulf %381, %380 : vector<4x26x16xf32>
    %383 = arith.addf %379, %382 : vector<4x26x16xf32>
    %384 = vector.extract_strided_slice %348 {offsets = [0, 0, 9], sizes = [4, 26, 16], strides = [1, 1, 1]} : vector<4x26x26xf32> to vector<4x26x16xf32>
    %cst_101 = arith.constant 0.00759875821 : f32
    %385 = vector.broadcast %cst_101 : f32 to vector<4x26x16xf32>
    %386 = arith.mulf %385, %384 : vector<4x26x16xf32>
    %387 = arith.addf %383, %386 : vector<4x26x16xf32>
    %388 = vector.extract_strided_slice %348 {offsets = [0, 0, 10], sizes = [4, 26, 16], strides = [1, 1, 1]} : vector<4x26x26xf32> to vector<4x26x16xf32>
    %cst_102 = arith.constant 0.00102838012 : f32
    %389 = vector.broadcast %cst_102 : f32 to vector<4x26x16xf32>
    %390 = arith.mulf %389, %388 : vector<4x26x16xf32>
    %391 = arith.addf %387, %390 : vector<4x26x16xf32>
    %392 = vector.extract_strided_slice %391 {offsets = [0, 0, 0], sizes = [4, 16, 16], strides = [1, 1, 1]} : vector<4x26x16xf32> to vector<4x16x16xf32>
    %cst_103 = arith.constant 0.00102838012 : f32
    %393 = vector.broadcast %cst_103 : f32 to vector<4x16x16xf32>
    %394 = arith.mulf %393, %392 : vector<4x16x16xf32>
    %395 = vector.extract_strided_slice %391 {offsets = [0, 1, 0], sizes = [4, 16, 16], strides = [1, 1, 1]} : vector<4x26x16xf32> to vector<4x16x16xf32>
    %cst_104 = arith.constant 0.00759875821 : f32
    %396 = vector.broadcast %cst_104 : f32 to vector<4x16x16xf32>
    %397 = arith.mulf %396, %395 : vector<4x16x16xf32>
    %398 = arith.addf %394, %397 : vector<4x16x16xf32>
    %399 = vector.extract_strided_slice %391 {offsets = [0, 2, 0], sizes = [4, 16, 16], strides = [1, 1, 1]} : vector<4x26x16xf32> to vector<4x16x16xf32>
    %cst_105 = arith.constant 0.0360007733 : f32
    %400 = vector.broadcast %cst_105 : f32 to vector<4x16x16xf32>
    %401 = arith.mulf %400, %399 : vector<4x16x16xf32>
    %402 = arith.addf %398, %401 : vector<4x16x16xf32>
    %403 = vector.extract_strided_slice %391 {offsets = [0, 3, 0], sizes = [4, 16, 16], strides = [1, 1, 1]} : vector<4x26x16xf32> to vector<4x16x16xf32>
    %cst_106 = arith.constant 0.109360687 : f32
    %404 = vector.broadcast %cst_106 : f32 to vector<4x16x16xf32>
    %405 = arith.mulf %404, %403 : vector<4x16x16xf32>
    %406 = arith.addf %402, %405 : vector<4x16x16xf32>
    %407 = vector.extract_strided_slice %391 {offsets = [0, 4, 0], sizes = [4, 16, 16], strides = [1, 1, 1]} : vector<4x26x16xf32> to vector<4x16x16xf32>
    %cst_107 = arith.constant 0.213005543 : f32
    %408 = vector.broadcast %cst_107 : f32 to vector<4x16x16xf32>
    %409 = arith.mulf %408, %407 : vector<4x16x16xf32>
    %410 = arith.addf %406, %409 : vector<4x16x16xf32>
    %411 = vector.extract_strided_slice %391 {offsets = [0, 5, 0], sizes = [4, 16, 16], strides = [1, 1, 1]} : vector<4x26x16xf32> to vector<4x16x16xf32>
    %cst_108 = arith.constant 0.266011715 : f32
    %412 = vector.broadcast %cst_108 : f32 to vector<4x16x16xf32>
    %413 = arith.mulf %412, %411 : vector<4x16x16xf32>
    %414 = arith.addf %410, %413 : vector<4x16x16xf32>
    %415 = vector.extract_strided_slice %391 {offsets = [0, 6, 0], sizes = [4, 16, 16], strides = [1, 1, 1]} : vector<4x26x16xf32> to vector<4x16x16xf32>
    %cst_109 = arith.constant 0.213005543 : f32
    %416 = vector.broadcast %cst_109 : f32 to vector<4x16x16xf32>
    %417 = arith.mulf %416, %415 : vector<4x16x16xf32>
    %418 = arith.addf %414, %417 : vector<4x16x16xf32>
    %419 = vector.extract_strided_slice %391 {offsets = [0, 7, 0], sizes = [4, 16, 16], strides = [1, 1, 1]} : vector<4x26x16xf32> to vector<4x16x16xf32>
    %cst_110 = arith.constant 0.109360687 : f32
    %420 = vector.broadcast %cst_110 : f32 to vector<4x16x16xf32>
    %421 = arith.mulf %420, %419 : vector<4x16x16xf32>
    %422 = arith.addf %418, %421 : vector<4x16x16xf32>
    %423 = vector.extract_strided_slice %391 {offsets = [0, 8, 0], sizes = [4, 16, 16], strides = [1, 1, 1]} : vector<4x26x16xf32> to vector<4x16x16xf32>
    %cst_111 = arith.constant 0.0360007733 : f32
    %424 = vector.broadcast %cst_111 : f32 to vector<4x16x16xf32>
    %425 = arith.mulf %424, %423 : vector<4x16x16xf32>
    %426 = arith.addf %422, %425 : vector<4x16x16xf32>
    %427 = vector.extract_strided_slice %391 {offsets = [0, 9, 0], sizes = [4, 16, 16], strides = [1, 1, 1]} : vector<4x26x16xf32> to vector<4x16x16xf32>
    %cst_112 = arith.constant 0.00759875821 : f32
    %428 = vector.broadcast %cst_112 : f32 to vector<4x16x16xf32>
    %429 = arith.mulf %428, %427 : vector<4x16x16xf32>
    %430 = arith.addf %426, %429 : vector<4x16x16xf32>
    %431 = vector.extract_strided_slice %391 {offsets = [0, 10, 0], sizes = [4, 16, 16], strides = [1, 1, 1]} : vector<4x26x16xf32> to vector<4x16x16xf32>
    %cst_113 = arith.constant 0.00102838012 : f32
    %432 = vector.broadcast %cst_113 : f32 to vector<4x16x16xf32>
    %433 = arith.mulf %432, %431 : vector<4x16x16xf32>
    %434 = arith.addf %430, %433 : vector<4x16x16xf32>
    %435 = arith.mulf %87, %87 : vector<4x16x16xf32>
    %436 = arith.mulf %173, %173 : vector<4x16x16xf32>
    %437 = arith.mulf %87, %173 : vector<4x16x16xf32>
    %438 = arith.subf %260, %435 : vector<4x16x16xf32>
    %439 = arith.subf %347, %436 : vector<4x16x16xf32>
    %440 = arith.subf %434, %437 : vector<4x16x16xf32>
    %cst_114 = arith.constant 2.000000e+00 : f32
    %441 = vector.broadcast %cst_114 : f32 to vector<4x16x16xf32>
    %442 = arith.mulf %441, %437 : vector<4x16x16xf32>
    %cst_115 = arith.constant 9.99999974E-5 : f32
    %443 = vector.broadcast %cst_115 : f32 to vector<4x16x16xf32>
    %444 = arith.addf %442, %443 : vector<4x16x16xf32>
    %cst_116 = arith.constant 2.000000e+00 : f32
    %445 = vector.broadcast %cst_116 : f32 to vector<4x16x16xf32>
    %446 = arith.mulf %445, %440 : vector<4x16x16xf32>
    %cst_117 = arith.constant 8.99999984E-4 : f32
    %447 = vector.broadcast %cst_117 : f32 to vector<4x16x16xf32>
    %448 = arith.addf %446, %447 : vector<4x16x16xf32>
    %449 = arith.mulf %444, %448 : vector<4x16x16xf32>
    %450 = arith.addf %435, %436 : vector<4x16x16xf32>
    %cst_118 = arith.constant 9.99999974E-5 : f32
    %451 = vector.broadcast %cst_118 : f32 to vector<4x16x16xf32>
    %452 = arith.addf %450, %451 : vector<4x16x16xf32>
    %453 = arith.addf %438, %439 : vector<4x16x16xf32>
    %cst_119 = arith.constant 8.99999984E-4 : f32
    %454 = vector.broadcast %cst_119 : f32 to vector<4x16x16xf32>
    %455 = arith.addf %453, %454 : vector<4x16x16xf32>
    %456 = arith.mulf %452, %455 : vector<4x16x16xf32>
    %457 = arith.divf %449, %456 : vector<4x16x16xf32>
    %458 = vector.shape_cast %457 : vector<4x16x16xf32> to vector<1x4x16x16xf32>
    %cst_120 = arith.constant dense<0.000000e+00> : vector<1xf32>
    %459 = vector.multi_reduction <add>, %458, %cst_120 [1, 2, 3] : vector<1x4x16x16xf32> to vector<1xf32>
    %460 = vector.shape_cast %459 : vector<1xf32> to vector<1x1x1x1xf32>
    %461 = vector.extract %460[0, 0, 0, 0] : f32 from vector<1x1x1x1xf32>
    %462 = vector.broadcast %461 : f32 to vector<1x1x128xf32>
    %c0_121 = arith.constant 0 : index
    %c0_122 = arith.constant 0 : index
    %c0_123 = arith.constant 0 : index
    %463 = vector.load %arg3[%c0_121, %c0_122, %c0_123] : memref<1x1x128xf32, #tpu.memory_space<vmem>>, vector<1x1x128xf32>
    tpu.vector_store %arg3[%c0_121, %c0_122, %c0_123], %462 {strides = array<i32>} : memref<1x1x128xf32, #tpu.memory_space<vmem>>, vector<1x1x128xf32>,
    return
  }
  func.func @transform_0(%arg0: i32) -> (i32, i32, i32) {
    %c0_i32 = arith.constant 0 : i32
    %c0_i32_0 = arith.constant 0 : i32
    %c0_i32_1 = arith.constant 0 : i32
    return %arg0, %c0_i32, %c0_i32_0 : i32, i32, i32
  }
  func.func @transform_1(%arg0: i32) -> (i32, i32, i32) {
    %c0_i32 = arith.constant 0 : i32
    %c0_i32_0 = arith.constant 0 : i32
    %c0_i32_1 = arith.constant 0 : i32
    return %arg0, %c0_i32, %c0_i32_0 : i32, i32, i32
  }
  func.func @transform_2(%arg0: i32) -> (i32, i32, i32) {
    %c0_i32 = arith.constant 0 : i32
    %c0_i32_0 = arith.constant 0 : i32
    %c0_i32_1 = arith.constant 0 : i32
    return %arg0, %c0_i32, %c0_i32_0 : i32, i32, i32
  }
}

</mosaic_0001>

<llo_original>
// kernel: tpu_custom_call.1
$region0: #{tpu_custom_call.1}
  #allocation0 [shape = 'u32[]', space=smem, size = 0x4, offset = 0x4, fixed_abs, tag = 'smem constant byte address 0x4 - core index']
  #allocation1 [shape = 'u32[144,128]{1,0:T(1,128)}', space=vmem, size = 0x12000, scoped, tag = 'internal scratch']
  %s0 = inlined_call_operand.vmem [shape: f32[8,26,26], index: 0, kind: input, shape index: {}]
  %s1 = inlined_call_operand.vmem [shape: f32[8,26,26], index: 1, kind: input, shape index: {}]
  %s2 = inlined_call_operand.hbm [shape: f32[2,1,128], index: 2, kind: output, shape index: {}]
  %s3 = sld [smem:[#allocation0]]
  $region41: #{tpu_custom_call.1} parent=0
    _
  %s5 = ssub.s32 1, %s3
  %s6 = scalar_select 0, %s5, %s3
  $region1: #{tpu_custom_call.1} parent=0
    #allocation2 [shape = 'u8[1024]{0}', space=vmem, size = 0x400, scoped, tag = 'output window, operand 0']
    #allocation3 [shape = 's32[2]{0}', space=sflag, size = 0x8, scoped, tag = 'scoped memory for tpu_custom_call.1']
    %7 = vsyncpa [#allocation3], 0
    %s8 = scalar_lea.sflag [#allocation3], 1
    %9 = vsyncpa %s8, 0
    loop: start=0, step=1, limit=4
    $region2: #{tpu_custom_call.1} parent=1 // loop_pre_header
      _
    $region3: #{tpu_custom_call.1} parent=1 // loop_header
      %s11 = sphi 0, %s15
      %p12 = scmp.ge.s32.totalorder %s11, 4
      %s21 = sphi 0, %s23
      %s24 = sphi 0, %s21
      %s25 = sphi 0, %s24
      %s41 = sphi 0, %s25
      %s47 = sphi 0, %s49
      %s50 = sphi 0, %s47
      %s51 = sphi 0, %s50
      %s67 = sphi 0, %s51
      %s73 = sphi 0, %s75
      %s76 = sphi 0, %s73
      %s77 = sphi 0, %s76
      %s93 = sphi 0, %s77
    $region4: #{tpu_custom_call.1} parent=1 // loop_header_branch
      %14 = sbr.rel (%p12) target = $region8
    $region5: #{tpu_custom_call.1} parent=1 // loop_body
      %s16 = ssub.s32 %s11, 1
      %s17 = ssub.s32 %s11, 2
      %s18 = sadd.s32 %s11, 1
      %s19 = ssub.s32 %s11, %s18
      %p20 = scmp.eq.s32.totalorder %s19, 0
      %s22 = sadd.s32 %s21, 1
      %s23 = scalar_select %p20, %s21, %s22
      %p26 = pneg %p20
      %p27 = scmp.eq.s32.totalorder %s11, 1
      %p28 = por %p26, %p27
      %p29 = scmp.ne.s32.totalorder %s21, %s24
      %p30 = scmp.eq.s32.totalorder %s11, 0
      %p31 = por %p29, %p30
      %p32 = scmp.ne.s32.totalorder %s21, %s24
      %p33 = scmp.eq.s32.totalorder %s16, 1
      %p34 = por %p32, %p33
      %p35 = scmp.ne.s32.totalorder %s24, %s25
      %p36 = scmp.eq.s32.totalorder %s16, 0
      %p37 = por %p35, %p36
      %p38 = scmp.ne.s32.totalorder %s24, %s25
      %p39 = scmp.eq.s32.totalorder %s17, 1
      %p40 = por %p38, %p39
      %p42 = scmp.ne.s32.totalorder %s25, %s41
      %p43 = scmp.eq.s32.totalorder %s17, 0
      %p44 = por %p42, %p43
      %s45 = ssub.s32 %s11, %s18
      %p46 = scmp.eq.s32.totalorder %s45, 0
      %s48 = sadd.s32 %s47, 1
      %s49 = scalar_select %p46, %s47, %s48
      %p52 = pneg %p46
      %p53 = scmp.eq.s32.totalorder %s11, 1
      %p54 = por %p52, %p53
      %p55 = scmp.ne.s32.totalorder %s47, %s50
      %p56 = scmp.eq.s32.totalorder %s11, 0
      %p57 = por %p55, %p56
      %p58 = scmp.ne.s32.totalorder %s47, %s50
      %p59 = scmp.eq.s32.totalorder %s16, 1
      %p60 = por %p58, %p59
      %p61 = scmp.ne.s32.totalorder %s50, %s51
      %p62 = scmp.eq.s32.totalorder %s16, 0
      %p63 = por %p61, %p62
      %p64 = scmp.ne.s32.totalorder %s50, %s51
      %p65 = scmp.eq.s32.totalorder %s17, 1
      %p66 = por %p64, %p65
      %p68 = scmp.ne.s32.totalorder %s51, %s67
      %p69 = scmp.eq.s32.totalorder %s17, 0
      %p70 = por %p68, %p69
      %s71 = ssub.s32 %s11, %s18
      %p72 = scmp.eq.s32.totalorder %s71, 0
      %s74 = sadd.s32 %s73, 1
      %s75 = scalar_select %p72, %s73, %s74
      %p78 = pneg %p72
      %p79 = scmp.eq.s32.totalorder %s11, 1
      %p80 = por %p78, %p79
      %p81 = scmp.ne.s32.totalorder %s73, %s76
      %p82 = scmp.eq.s32.totalorder %s11, 0
      %p83 = por %p81, %p82
      %p84 = scmp.ne.s32.totalorder %s73, %s76
      %p85 = scmp.eq.s32.totalorder %s16, 1
      %p86 = por %p84, %p85
      %p87 = scmp.ne.s32.totalorder %s76, %s77
      %p88 = scmp.eq.s32.totalorder %s16, 0
      %p89 = por %p87, %p88
      %p90 = scmp.ne.s32.totalorder %s76, %s77
      %p91 = scmp.eq.s32.totalorder %s17, 1
      %p92 = por %p90, %p91
      %p94 = scmp.ne.s32.totalorder %s77, %s93
      %p95 = scmp.eq.s32.totalorder %s17, 0
      %p96 = por %p94, %p95
      %p97 = scmp.le.s32.totalorder 1, %s11
      %p98 = scmp.lt.s32.totalorder %s11, 3
      %p99 = pnand %p97, %p98
      %p100 = pneg %p99
      // Predicated region
      $region9: #{tpu_custom_call.1} parent=5 // pred_check
        _
      $region10: #{tpu_custom_call.1} parent=5 // pred_check_branch
        %102 = sbr.rel (%p99) target = $region12
      $region11: #{tpu_custom_call.1} parent=5 // pred_region
        %s103 = ssub.s32 %s11, 1
      $region12: #{tpu_custom_call.1} parent=5 // pred_fallthru
        _
      %p104 = scmp.lt.s32.totalorder %s11, 2
      // Predicated region
      $region13: #{tpu_custom_call.1} parent=5 // pred_check
        %p105 = pneg %p104
      $region14: #{tpu_custom_call.1} parent=5 // pred_check_branch
        %107 = sbr.rel (%p105) target = $region16
      $region15: #{tpu_custom_call.1} parent=5 // pred_region
        // Predicated region
        $region17: #{tpu_custom_call.1} parent=15 // pred_check
          %p108 = pneg %p31
        $region18: #{tpu_custom_call.1} parent=15 // pred_check_branch
          %110 = sbr.rel (%p108) target = $region20
        $region19: #{tpu_custom_call.1} parent=15 // pred_region
          %s111 = smul.u32 4, %s11
          %p112 = scmp.lt.s32.totalorder %s111, 7
          %s113 = scalar_select %p112, %s111, 7
          %s114 = smul.addr %s113, 4
          %s115 = smul.addr %s114, 8
          %s116 = scalar_lea.vmem %s0, %s115
          %s117 = smul.u32 4, %s11
        $region20: #{tpu_custom_call.1} parent=15 // pred_fallthru
          _
        // Predicated region
        $region21: #{tpu_custom_call.1} parent=15 // pred_check
          %p118 = pneg %p57
        $region22: #{tpu_custom_call.1} parent=15 // pred_check_branch
          %120 = sbr.rel (%p118) target = $region24
        $region23: #{tpu_custom_call.1} parent=15 // pred_region
          %s121 = smul.u32 4, %s11
          %p122 = scmp.lt.s32.totalorder %s121, 7
          %s123 = scalar_select %p122, %s121, 7
          %s124 = smul.addr %s123, 4
          %s125 = smul.addr %s124, 8
          %s126 = scalar_lea.vmem %s1, %s125
          %s127 = smul.u32 4, %s11
        $region24: #{tpu_custom_call.1} parent=15 // pred_fallthru
          _
      $region16: #{tpu_custom_call.1} parent=5 // pred_fallthru
        _
      %p128 = scmp.le.s32.totalorder 1, %s11
      %p129 = scmp.lt.s32.totalorder %s11, 3
      %p130 = pnand %p128, %p129
      %p131 = pneg %p130
      // Predicated region
      $region25: #{tpu_custom_call.1} parent=5 // pred_check
        _
      $region26: #{tpu_custom_call.1} parent=5 // pred_check_branch
        %133 = sbr.rel (%p130) target = $region28
      $region27: #{tpu_custom_call.1} parent=5 // pred_region
        %s134 = ssub.s32 %s11, 1
        %s135 = smul.u32 4, %s16
        %p136 = scmp.lt.s32.totalorder %s135, 7
        %s137 = scalar_select %p136, %s135, 7
        %s138 = smul.addr %s137, 4
        %s139 = smul.addr %s138, 8
        %s140 = scalar_lea.vmem %s0, %s139
        %p141 = pneg %p37
        %p142 = pneg %p34
        %s143 = smul.u32 4, %s16
        %p144 = scmp.lt.s32.totalorder %s143, 7
        %s145 = scalar_select %p144, %s143, 7
        %s146 = smul.addr %s145, 4
        %s147 = smul.addr %s146, 8
        %s148 = scalar_lea.vmem %s1, %s147
        %p149 = pneg %p63
        %p150 = pneg %p60
        %p151 = pneg %p89
        %p152 = pneg %p86
        %s153 = sand.u32 %s76, 1
        %s154 = scalar_lea.sflag [#allocation3], %s153
        %s155 = sand.u32 %s76, 1
        %s156 = scalar_lea.vmem [#allocation2], %s155
        %s157 = smul.u32 4, %s16
        %p158 = scmp.lt.s32.totalorder %s157, 7
        %s159 = scalar_select %p158, %s157, 7
        %s160 = smul.addr %s159, 4
        %s161 = smul.addr %s160, 8
        %s162 = scalar_lea.vmem %s0, %s161
        %s163 = smul.u32 4, %s16
        %s164 = smul.u32 4, %s16
        %p165 = scmp.lt.s32.totalorder %s164, 7
        %s166 = scalar_select %p165, %s164, 7
        %s167 = smul.addr %s166, 4
        %s168 = smul.addr %s167, 8
        %s169 = scalar_lea.vmem %s1, %s168
        %s170 = smul.u32 4, %s16
        %v171 = vld [vmem:[%s162] sm:$0xff]
        %v172 = vld [vmem:[%s162 + $0x8] sm:$0xff]
        %v173 = vld [vmem:[%s162 + $0x10] sm:$0xff]
        %v174 = vld [vmem:[%s162 + $0x18] sm:$0x3]
        %v175 = vld [vmem:[%s162 + $0x20] sm:$0xff]
        %v176 = vld [vmem:[%s162 + $0x28] sm:$0xff]
        %v177 = vld [vmem:[%s162 + $0x30] sm:$0xff]
        %v178 = vld [vmem:[%s162 + $0x38] sm:$0x3]
        %v179 = vld [vmem:[%s162 + $0x40] sm:$0xff]
        %v180 = vld [vmem:[%s162 + $0x48] sm:$0xff]
        %v181 = vld [vmem:[%s162 + $0x50] sm:$0xff]
        %v182 = vld [vmem:[%s162 + $0x58] sm:$0x3]
        %v183 = vld [vmem:[%s162 + $0x60] sm:$0xff]
        %v184 = vld [vmem:[%s162 + $0x68] sm:$0xff]
        %v185 = vld [vmem:[%s162 + $0x70] sm:$0xff]
        %v186 = vld [vmem:[%s162 + $0x78] sm:$0x3]
        %v187 = vld [vmem:[%s169] sm:$0xff]
        %v188 = vld [vmem:[%s169 + $0x8] sm:$0xff]
        %v189 = vld [vmem:[%s169 + $0x10] sm:$0xff]
        %v190 = vld [vmem:[%s169 + $0x18] sm:$0x3]
        %v191 = vld [vmem:[%s169 + $0x20] sm:$0xff]
        %v192 = vld [vmem:[%s169 + $0x28] sm:$0xff]
        %v193 = vld [vmem:[%s169 + $0x30] sm:$0xff]
        %v194 = vld [vmem:[%s169 + $0x38] sm:$0x3]
        %v195 = vld [vmem:[%s169 + $0x40] sm:$0xff]
        %v196 = vld [vmem:[%s169 + $0x48] sm:$0xff]
        %v197 = vld [vmem:[%s169 + $0x50] sm:$0xff]
        %v198 = vld [vmem:[%s169 + $0x58] sm:$0x3]
        %v199 = vld [vmem:[%s169 + $0x60] sm:$0xff]
        %v200 = vld [vmem:[%s169 + $0x68] sm:$0xff]
        %v201 = vld [vmem:[%s169 + $0x70] sm:$0xff]
        %v202 = vld [vmem:[%s169 + $0x78] sm:$0x3]
        %v203 = vmul.f32 %v171, 0.0010283801
        %v204 = vmul.f32 %v172, 0.0010283801
        %v205 = vmul.f32 %v173, 0.0010283801
        %v206 = vmul.f32 %v174, 0.0010283801
        %v207 = vmul.f32 %v175, 0.0010283801
        %v208 = vmul.f32 %v176, 0.0010283801
        %v209 = vmul.f32 %v177, 0.0010283801
        %v210 = vmul.f32 %v178, 0.0010283801
        %v211 = vmul.f32 %v179, 0.0010283801
        %v212 = vmul.f32 %v180, 0.0010283801
        %v213 = vmul.f32 %v181, 0.0010283801
        %v214 = vmul.f32 %v182, 0.0010283801
        %v215 = vmul.f32 %v183, 0.0010283801
        %v216 = vmul.f32 %v184, 0.0010283801
        %v217 = vmul.f32 %v185, 0.0010283801
        %v218 = vmul.f32 %v186, 0.0010283801
        %v219 = vmul.f32 %v171, 0.007598758
        %v220 = vmul.f32 %v172, 0.007598758
        %v221 = vmul.f32 %v173, 0.007598758
        %v222 = vmul.f32 %v174, 0.007598758
        %v223 = vmul.f32 %v175, 0.007598758
        %v224 = vmul.f32 %v176, 0.007598758
        %v225 = vmul.f32 %v177, 0.007598758
        %v226 = vmul.f32 %v178, 0.007598758
        %v227 = vmul.f32 %v179, 0.007598758
        %v228 = vmul.f32 %v180, 0.007598758
        %v229 = vmul.f32 %v181, 0.007598758
        %v230 = vmul.f32 %v182, 0.007598758
        %v231 = vmul.f32 %v183, 0.007598758
        %v232 = vmul.f32 %v184, 0.007598758
        %v233 = vmul.f32 %v185, 0.007598758
        %v234 = vmul.f32 %v186, 0.007598758
        %251 = vrot.lane.b32.xlu0 %v219, 127
        %v252 = vpop.permute.xlu0 %251
        %253 = vrot.lane.b32.xlu0 %v220, 127
        %v254 = vpop.permute.xlu0 %253
        %255 = vrot.lane.b32.xlu0 %v221, 127
        %v256 = vpop.permute.xlu0 %255
        %257 = vrot.lane.b32.xlu0 %v222, 127
        %v258 = vpop.permute.xlu0 %257
        %259 = vrot.lane.b32.xlu0 %v223, 127
        %v260 = vpop.permute.xlu0 %259
        %261 = vrot.lane.b32.xlu0 %v224, 127
        %v262 = vpop.permute.xlu0 %261
        %263 = vrot.lane.b32.xlu0 %v225, 127
        %v264 = vpop.permute.xlu0 %263
        %265 = vrot.lane.b32.xlu0 %v226, 127
        %v266 = vpop.permute.xlu0 %265
        %267 = vrot.lane.b32.xlu0 %v227, 127
        %v268 = vpop.permute.xlu0 %267
        %269 = vrot.lane.b32.xlu0 %v228, 127
        %v270 = vpop.permute.xlu0 %269
        %271 = vrot.lane.b32.xlu0 %v229, 127
        %v272 = vpop.permute.xlu0 %271
        %273 = vrot.lane.b32.xlu0 %v230, 127
        %v274 = vpop.permute.xlu0 %273
        %275 = vrot.lane.b32.xlu0 %v231, 127
        %v276 = vpop.permute.xlu0 %275
        %277 = vrot.lane.b32.xlu0 %v232, 127
        %v278 = vpop.permute.xlu0 %277
        %279 = vrot.lane.b32.xlu0 %v233, 127
        %v280 = vpop.permute.xlu0 %279
        %281 = vrot.lane.b32.xlu0 %v234, 127
        %v282 = vpop.permute.xlu0 %281
        %v299 = vadd.f32 %v203, %v252
        %v300 = vadd.f32 %v204, %v254
        %v301 = vadd.f32 %v205, %v256
        %v302 = vadd.f32 %v206, %v258
        %v303 = vadd.f32 %v207, %v260
        %v304 = vadd.f32 %v208, %v262
        %v305 = vadd.f32 %v209, %v264
        %v306 = vadd.f32 %v210, %v266
        %v307 = vadd.f32 %v211, %v268
        %v308 = vadd.f32 %v212, %v270
        %v309 = vadd.f32 %v213, %v272
        %v310 = vadd.f32 %v214, %v274
        %v311 = vadd.f32 %v215, %v276
        %v312 = vadd.f32 %v216, %v278
        %v313 = vadd.f32 %v217, %v280
        %v314 = vadd.f32 %v218, %v282
        %v315 = vmul.f32 %v171, 0.036000773
        %v316 = vmul.f32 %v172, 0.036000773
        %v317 = vmul.f32 %v173, 0.036000773
        %v318 = vmul.f32 %v174, 0.036000773
        %v319 = vmul.f32 %v175, 0.036000773
        %v320 = vmul.f32 %v176, 0.036000773
        %v321 = vmul.f32 %v177, 0.036000773
        %v322 = vmul.f32 %v178, 0.036000773
        %v323 = vmul.f32 %v179, 0.036000773
        %v324 = vmul.f32 %v180, 0.036000773
        %v325 = vmul.f32 %v181, 0.036000773
        %v326 = vmul.f32 %v182, 0.036000773
        %v327 = vmul.f32 %v183, 0.036000773
        %v328 = vmul.f32 %v184, 0.036000773
        %v329 = vmul.f32 %v185, 0.036000773
        %v330 = vmul.f32 %v186, 0.036000773
        %347 = vrot.lane.b32.xlu0 %v315, 126
        %v348 = vpop.permute.xlu0 %347
        %349 = vrot.lane.b32.xlu0 %v316, 126
        %v350 = vpop.permute.xlu0 %349
        %351 = vrot.lane.b32.xlu0 %v317, 126
        %v352 = vpop.permute.xlu0 %351
        %353 = vrot.lane.b32.xlu0 %v318, 126
        %v354 = vpop.permute.xlu0 %353
        %355 = vrot.lane.b32.xlu0 %v319, 126
        %v356 = vpop.permute.xlu0 %355
        %357 = vrot.lane.b32.xlu0 %v320, 126
        %v358 = vpop.permute.xlu0 %357
        %359 = vrot.lane.b32.xlu0 %v321, 126
        %v360 = vpop.permute.xlu0 %359
        %361 = vrot.lane.b32.xlu0 %v322, 126
        %v362 = vpop.permute.xlu0 %361
        %363 = vrot.lane.b32.xlu0 %v323, 126
        %v364 = vpop.permute.xlu0 %363
        %365 = vrot.lane.b32.xlu0 %v324, 126
        %v366 = vpop.permute.xlu0 %365
        %367 = vrot.lane.b32.xlu0 %v325, 126
        %v368 = vpop.permute.xlu0 %367
        %369 = vrot.lane.b32.xlu0 %v326, 126
        %v370 = vpop.permute.xlu0 %369
        %371 = vrot.lane.b32.xlu0 %v327, 126
        %v372 = vpop.permute.xlu0 %371
        %373 = vrot.lane.b32.xlu0 %v328, 126
        %v374 = vpop.permute.xlu0 %373
        %375 = vrot.lane.b32.xlu0 %v329, 126
        %v376 = vpop.permute.xlu0 %375
        %377 = vrot.lane.b32.xlu0 %v330, 126
        %v378 = vpop.permute.xlu0 %377
        %v395 = vadd.f32 %v299, %v348
        %v396 = vadd.f32 %v300, %v350
        %v397 = vadd.f32 %v301, %v352
        %v398 = vadd.f32 %v302, %v354
        %v399 = vadd.f32 %v303, %v356
        %v400 = vadd.f32 %v304, %v358
        %v401 = vadd.f32 %v305, %v360
        %v402 = vadd.f32 %v306, %v362
        %v403 = vadd.f32 %v307, %v364
        %v404 = vadd.f32 %v308, %v366
        %v405 = vadd.f32 %v309, %v368
        %v406 = vadd.f32 %v310, %v370
        %v407 = vadd.f32 %v311, %v372
        %v408 = vadd.f32 %v312, %v374
        %v409 = vadd.f32 %v313, %v376
        %v410 = vadd.f32 %v314, %v378
        %v411 = vmul.f32 %v171, 0.10936069
        %v412 = vmul.f32 %v172, 0.10936069
        %v413 = vmul.f32 %v173, 0.10936069
        %v414 = vmul.f32 %v174, 0.10936069
        %v415 = vmul.f32 %v175, 0.10936069
        %v416 = vmul.f32 %v176, 0.10936069
        %v417 = vmul.f32 %v177, 0.10936069
        %v418 = vmul.f32 %v178, 0.10936069
        %v419 = vmul.f32 %v179, 0.10936069
        %v420 = vmul.f32 %v180, 0.10936069
        %v421 = vmul.f32 %v181, 0.10936069
        %v422 = vmul.f32 %v182, 0.10936069
        %v423 = vmul.f32 %v183, 0.10936069
        %v424 = vmul.f32 %v184, 0.10936069
        %v425 = vmul.f32 %v185, 0.10936069
        %v426 = vmul.f32 %v186, 0.10936069
        %443 = vrot.lane.b32.xlu0 %v411, 125
        %v444 = vpop.permute.xlu0 %443
        %445 = vrot.lane.b32.xlu0 %v412, 125
        %v446 = vpop.permute.xlu0 %445
        %447 = vrot.lane.b32.xlu0 %v413, 125
        %v448 = vpop.permute.xlu0 %447
        %449 = vrot.lane.b32.xlu0 %v414, 125
        %v450 = vpop.permute.xlu0 %449
        %451 = vrot.lane.b32.xlu0 %v415, 125
        %v452 = vpop.permute.xlu0 %451
        %453 = vrot.lane.b32.xlu0 %v416, 125
        %v454 = vpop.permute.xlu0 %453
        %455 = vrot.lane.b32.xlu0 %v417, 125
        %v456 = vpop.permute.xlu0 %455
        %457 = vrot.lane.b32.xlu0 %v418, 125
        %v458 = vpop.permute.xlu0 %457
        %459 = vrot.lane.b32.xlu0 %v419, 125
        %v460 = vpop.permute.xlu0 %459
        %461 = vrot.lane.b32.xlu0 %v420, 125
        %v462 = vpop.permute.xlu0 %461
        %463 = vrot.lane.b32.xlu0 %v421, 125
        %v464 = vpop.permute.xlu0 %463
        %465 = vrot.lane.b32.xlu0 %v422, 125
        %v466 = vpop.permute.xlu0 %465
        %467 = vrot.lane.b32.xlu0 %v423, 125
        %v468 = vpop.permute.xlu0 %467
        %469 = vrot.lane.b32.xlu0 %v424, 125
        %v470 = vpop.permute.xlu0 %469
        %471 = vrot.lane.b32.xlu0 %v425, 125
        %v472 = vpop.permute.xlu0 %471
        %473 = vrot.lane.b32.xlu0 %v426, 125
        %v474 = vpop.permute.xlu0 %473
        %v491 = vadd.f32 %v395, %v444
        %v492 = vadd.f32 %v396, %v446
        %v493 = vadd.f32 %v397, %v448
        %v494 = vadd.f32 %v398, %v450
        %v495 = vadd.f32 %v399, %v452
        %v496 = vadd.f32 %v400, %v454
        %v497 = vadd.f32 %v401, %v456
        %v498 = vadd.f32 %v402, %v458
        %v499 = vadd.f32 %v403, %v460
        %v500 = vadd.f32 %v404, %v462
        %v501 = vadd.f32 %v405, %v464
        %v502 = vadd.f32 %v406, %v466
        %v503 = vadd.f32 %v407, %v468
        %v504 = vadd.f32 %v408, %v470
        %v505 = vadd.f32 %v409, %v472
        %v506 = vadd.f32 %v410, %v474
        %v507 = vmul.f32 %v171, 0.21300554
        %v508 = vmul.f32 %v172, 0.21300554
        %v509 = vmul.f32 %v173, 0.21300554
        %v510 = vmul.f32 %v174, 0.21300554
        %v511 = vmul.f32 %v175, 0.21300554
        %v512 = vmul.f32 %v176, 0.21300554
        %v513 = vmul.f32 %v177, 0.21300554
        %v514 = vmul.f32 %v178, 0.21300554
        %v515 = vmul.f32 %v179, 0.21300554
        %v516 = vmul.f32 %v180, 0.21300554
        %v517 = vmul.f32 %v181, 0.21300554
        %v518 = vmul.f32 %v182, 0.21300554
        %v519 = vmul.f32 %v183, 0.21300554
        %v520 = vmul.f32 %v184, 0.21300554
        %v521 = vmul.f32 %v185, 0.21300554
        %v522 = vmul.f32 %v186, 0.21300554
        %539 = vrot.lane.b32.xlu0 %v507, 124
        %v540 = vpop.permute.xlu0 %539
        %541 = vrot.lane.b32.xlu0 %v508, 124
        %v542 = vpop.permute.xlu0 %541
        %543 = vrot.lane.b32.xlu0 %v509, 124
        %v544 = vpop.permute.xlu0 %543
        %545 = vrot.lane.b32.xlu0 %v510, 124
        %v546 = vpop.permute.xlu0 %545
        %547 = vrot.lane.b32.xlu0 %v511, 124
        %v548 = vpop.permute.xlu0 %547
        %549 = vrot.lane.b32.xlu0 %v512, 124
        %v550 = vpop.permute.xlu0 %549
        %551 = vrot.lane.b32.xlu0 %v513, 124
        %v552 = vpop.permute.xlu0 %551
        %553 = vrot.lane.b32.xlu0 %v514, 124
        %v554 = vpop.permute.xlu0 %553
        %555 = vrot.lane.b32.xlu0 %v515, 124
        %v556 = vpop.permute.xlu0 %555
        %557 = vrot.lane.b32.xlu0 %v516, 124
        %v558 = vpop.permute.xlu0 %557
        %559 = vrot.lane.b32.xlu0 %v517, 124
        %v560 = vpop.permute.xlu0 %559
        %561 = vrot.lane.b32.xlu0 %v518, 124
        %v562 = vpop.permute.xlu0 %561
        %563 = vrot.lane.b32.xlu0 %v519, 124
        %v564 = vpop.permute.xlu0 %563
        %565 = vrot.lane.b32.xlu0 %v520, 124
        %v566 = vpop.permute.xlu0 %565
        %567 = vrot.lane.b32.xlu0 %v521, 124
        %v568 = vpop.permute.xlu0 %567
        %569 = vrot.lane.b32.xlu0 %v522, 124
        %v570 = vpop.permute.xlu0 %569
        %v587 = vadd.f32 %v491, %v540
        %v588 = vadd.f32 %v492, %v542
        %v589 = vadd.f32 %v493, %v544
        %v590 = vadd.f32 %v494, %v546
        %v591 = vadd.f32 %v495, %v548
        %v592 = vadd.f32 %v496, %v550
        %v593 = vadd.f32 %v497, %v552
        %v594 = vadd.f32 %v498, %v554
        %v595 = vadd.f32 %v499, %v556
        %v596 = vadd.f32 %v500, %v558
        %v597 = vadd.f32 %v501, %v560
        %v598 = vadd.f32 %v502, %v562
        %v599 = vadd.f32 %v503, %v564
        %v600 = vadd.f32 %v504, %v566
        %v601 = vadd.f32 %v505, %v568
        %v602 = vadd.f32 %v506, %v570
        %v603 = vmul.f32 %v171, 0.26601171
        %v604 = vmul.f32 %v172, 0.26601171
        %v605 = vmul.f32 %v173, 0.26601171
        %v606 = vmul.f32 %v174, 0.26601171
        %v607 = vmul.f32 %v175, 0.26601171
        %v608 = vmul.f32 %v176, 0.26601171
        %v609 = vmul.f32 %v177, 0.26601171
        %v610 = vmul.f32 %v178, 0.26601171
        %v611 = vmul.f32 %v179, 0.26601171
        %v612 = vmul.f32 %v180, 0.26601171
        %v613 = vmul.f32 %v181, 0.26601171
        %v614 = vmul.f32 %v182, 0.26601171
        %v615 = vmul.f32 %v183, 0.26601171
        %v616 = vmul.f32 %v184, 0.26601171
        %v617 = vmul.f32 %v185, 0.26601171
        %v618 = vmul.f32 %v186, 0.26601171
        %635 = vrot.lane.b32.xlu0 %v603, 123
        %v636 = vpop.permute.xlu0 %635
        %637 = vrot.lane.b32.xlu0 %v604, 123
        %v638 = vpop.permute.xlu0 %637
        %639 = vrot.lane.b32.xlu0 %v605, 123
        %v640 = vpop.permute.xlu0 %639
        %641 = vrot.lane.b32.xlu0 %v606, 123
        %v642 = vpop.permute.xlu0 %641
        %643 = vrot.lane.b32.xlu0 %v607, 123
        %v644 = vpop.permute.xlu0 %643
        %645 = vrot.lane.b32.xlu0 %v608, 123
        %v646 = vpop.permute.xlu0 %645
        %647 = vrot.lane.b32.xlu0 %v609, 123
        %v648 = vpop.permute.xlu0 %647
        %649 = vrot.lane.b32.xlu0 %v610, 123
        %v650 = vpop.permute.xlu0 %649
        %651 = vrot.lane.b32.xlu0 %v611, 123
        %v652 = vpop.permute.xlu0 %651
        %653 = vrot.lane.b32.xlu0 %v612, 123
        %v654 = vpop.permute.xlu0 %653
        %655 = vrot.lane.b32.xlu0 %v613, 123
        %v656 = vpop.permute.xlu0 %655
        %657 = vrot.lane.b32.xlu0 %v614, 123
        %v658 = vpop.permute.xlu0 %657
        %659 = vrot.lane.b32.xlu0 %v615, 123
        %v660 = vpop.permute.xlu0 %659
        %661 = vrot.lane.b32.xlu0 %v616, 123
        %v662 = vpop.permute.xlu0 %661
        %663 = vrot.lane.b32.xlu0 %v617, 123
        %v664 = vpop.permute.xlu0 %663
        %665 = vrot.lane.b32.xlu0 %v618, 123
        %v666 = vpop.permute.xlu0 %665
        %v683 = vadd.f32 %v587, %v636
        %v684 = vadd.f32 %v588, %v638
        %v685 = vadd.f32 %v589, %v640
        %v686 = vadd.f32 %v590, %v642
        %v687 = vadd.f32 %v591, %v644
        %v688 = vadd.f32 %v592, %v646
        %v689 = vadd.f32 %v593, %v648
        %v690 = vadd.f32 %v594, %v650
        %v691 = vadd.f32 %v595, %v652
        %v692 = vadd.f32 %v596, %v654
        %v693 = vadd.f32 %v597, %v656
        %v694 = vadd.f32 %v598, %v658
        %v695 = vadd.f32 %v599, %v660
        %v696 = vadd.f32 %v600, %v662
        %v697 = vadd.f32 %v601, %v664
        %v698 = vadd.f32 %v602, %v666
        %699 = vrot.lane.b32.xlu0 %v507, 122
        %v700 = vpop.permute.xlu0 %699
        %701 = vrot.lane.b32.xlu0 %v508, 122
        %v702 = vpop.permute.xlu0 %701
        %703 = vrot.lane.b32.xlu0 %v509, 122
        %v704 = vpop.permute.xlu0 %703
        %705 = vrot.lane.b32.xlu0 %v510, 122
        %v706 = vpop.permute.xlu0 %705
        %707 = vrot.lane.b32.xlu0 %v511, 122
        %v708 = vpop.permute.xlu0 %707
        %709 = vrot.lane.b32.xlu0 %v512, 122
        %v710 = vpop.permute.xlu0 %709
        %711 = vrot.lane.b32.xlu0 %v513, 122
        %v712 = vpop.permute.xlu0 %711
        %713 = vrot.lane.b32.xlu0 %v514, 122
        %v714 = vpop.permute.xlu0 %713
        %715 = vrot.lane.b32.xlu0 %v515, 122
        %v716 = vpop.permute.xlu0 %715
        %717 = vrot.lane.b32.xlu0 %v516, 122
        %v718 = vpop.permute.xlu0 %717
        %719 = vrot.lane.b32.xlu0 %v517, 122
        %v720 = vpop.permute.xlu0 %719
        %721 = vrot.lane.b32.xlu0 %v518, 122
        %v722 = vpop.permute.xlu0 %721
        %723 = vrot.lane.b32.xlu0 %v519, 122
        %v724 = vpop.permute.xlu0 %723
        %725 = vrot.lane.b32.xlu0 %v520, 122
        %v726 = vpop.permute.xlu0 %725
        %727 = vrot.lane.b32.xlu0 %v521, 122
        %v728 = vpop.permute.xlu0 %727
        %729 = vrot.lane.b32.xlu0 %v522, 122
        %v730 = vpop.permute.xlu0 %729
        %v747 = vadd.f32 %v683, %v700
        %v748 = vadd.f32 %v684, %v702
        %v749 = vadd.f32 %v685, %v704
        %v750 = vadd.f32 %v686, %v706
        %v751 = vadd.f32 %v687, %v708
        %v752 = vadd.f32 %v688, %v710
        %v753 = vadd.f32 %v689, %v712
        %v754 = vadd.f32 %v690, %v714
        %v755 = vadd.f32 %v691, %v716
        %v756 = vadd.f32 %v692, %v718
        %v757 = vadd.f32 %v693, %v720
        %v758 = vadd.f32 %v694, %v722
        %v759 = vadd.f32 %v695, %v724
        %v760 = vadd.f32 %v696, %v726
        %v761 = vadd.f32 %v697, %v728
        %v762 = vadd.f32 %v698, %v730
        %763 = vrot.lane.b32.xlu0 %v411, 121
        %v764 = vpop.permute.xlu0 %763
        %765 = vrot.lane.b32.xlu0 %v412, 121
        %v766 = vpop.permute.xlu0 %765
        %767 = vrot.lane.b32.xlu0 %v413, 121
        %v768 = vpop.permute.xlu0 %767
        %769 = vrot.lane.b32.xlu0 %v414, 121
        %v770 = vpop.permute.xlu0 %769
        %771 = vrot.lane.b32.xlu0 %v415, 121
        %v772 = vpop.permute.xlu0 %771
        %773 = vrot.lane.b32.xlu0 %v416, 121
        %v774 = vpop.permute.xlu0 %773
        %775 = vrot.lane.b32.xlu0 %v417, 121
        %v776 = vpop.permute.xlu0 %775
        %777 = vrot.lane.b32.xlu0 %v418, 121
        %v778 = vpop.permute.xlu0 %777
        %779 = vrot.lane.b32.xlu0 %v419, 121
        %v780 = vpop.permute.xlu0 %779
        %781 = vrot.lane.b32.xlu0 %v420, 121
        %v782 = vpop.permute.xlu0 %781
        %783 = vrot.lane.b32.xlu0 %v421, 121
        %v784 = vpop.permute.xlu0 %783
        %785 = vrot.lane.b32.xlu0 %v422, 121
        %v786 = vpop.permute.xlu0 %785
        %787 = vrot.lane.b32.xlu0 %v423, 121
        %v788 = vpop.permute.xlu0 %787
        %789 = vrot.lane.b32.xlu0 %v424, 121
        %v790 = vpop.permute.xlu0 %789
        %791 = vrot.lane.b32.xlu0 %v425, 121
        %v792 = vpop.permute.xlu0 %791
        %793 = vrot.lane.b32.xlu0 %v426, 121
        %v794 = vpop.permute.xlu0 %793
        %v811 = vadd.f32 %v747, %v764
        %v812 = vadd.f32 %v748, %v766
        %v813 = vadd.f32 %v749, %v768
        %v814 = vadd.f32 %v750, %v770
        %v815 = vadd.f32 %v751, %v772
        %v816 = vadd.f32 %v752, %v774
        %v817 = vadd.f32 %v753, %v776
        %v818 = vadd.f32 %v754, %v778
        %v819 = vadd.f32 %v755, %v780
        %v820 = vadd.f32 %v756, %v782
        %v821 = vadd.f32 %v757, %v784
        %v822 = vadd.f32 %v758, %v786
        %v823 = vadd.f32 %v759, %v788
        %v824 = vadd.f32 %v760, %v790
        %v825 = vadd.f32 %v761, %v792
        %v826 = vadd.f32 %v762, %v794
        %827 = vrot.lane.b32.xlu0 %v315, 120
        %v828 = vpop.permute.xlu0 %827
        %829 = vrot.lane.b32.xlu0 %v316, 120
        %v830 = vpop.permute.xlu0 %829
        %831 = vrot.lane.b32.xlu0 %v317, 120
        %v832 = vpop.permute.xlu0 %831
        %833 = vrot.lane.b32.xlu0 %v318, 120
        %v834 = vpop.permute.xlu0 %833
        %835 = vrot.lane.b32.xlu0 %v319, 120
        %v836 = vpop.permute.xlu0 %835
        %837 = vrot.lane.b32.xlu0 %v320, 120
        %v838 = vpop.permute.xlu0 %837
        %839 = vrot.lane.b32.xlu0 %v321, 120
        %v840 = vpop.permute.xlu0 %839
        %841 = vrot.lane.b32.xlu0 %v322, 120
        %v842 = vpop.permute.xlu0 %841
        %843 = vrot.lane.b32.xlu0 %v323, 120
        %v844 = vpop.permute.xlu0 %843
        %845 = vrot.lane.b32.xlu0 %v324, 120
        %v846 = vpop.permute.xlu0 %845
        %847 = vrot.lane.b32.xlu0 %v325, 120
        %v848 = vpop.permute.xlu0 %847
        %849 = vrot.lane.b32.xlu0 %v326, 120
        %v850 = vpop.permute.xlu0 %849
        %851 = vrot.lane.b32.xlu0 %v327, 120
        %v852 = vpop.permute.xlu0 %851
        %853 = vrot.lane.b32.xlu0 %v328, 120
        %v854 = vpop.permute.xlu0 %853
        %855 = vrot.lane.b32.xlu0 %v329, 120
        %v856 = vpop.permute.xlu0 %855
        %857 = vrot.lane.b32.xlu0 %v330, 120
        %v858 = vpop.permute.xlu0 %857
        %v875 = vadd.f32 %v811, %v828
        %v876 = vadd.f32 %v812, %v830
        %v877 = vadd.f32 %v813, %v832
        %v878 = vadd.f32 %v814, %v834
        %v879 = vadd.f32 %v815, %v836
        %v880 = vadd.f32 %v816, %v838
        %v881 = vadd.f32 %v817, %v840
        %v882 = vadd.f32 %v818, %v842
        %v883 = vadd.f32 %v819, %v844
        %v884 = vadd.f32 %v820, %v846
        %v885 = vadd.f32 %v821, %v848
        %v886 = vadd.f32 %v822, %v850
        %v887 = vadd.f32 %v823, %v852
        %v888 = vadd.f32 %v824, %v854
        %v889 = vadd.f32 %v825, %v856
        %v890 = vadd.f32 %v826, %v858
        %891 = vrot.lane.b32.xlu0 %v219, 119
        %v892 = vpop.permute.xlu0 %891
        %893 = vrot.lane.b32.xlu0 %v220, 119
        %v894 = vpop.permute.xlu0 %893
        %895 = vrot.lane.b32.xlu0 %v221, 119
        %v896 = vpop.permute.xlu0 %895
        %897 = vrot.lane.b32.xlu0 %v222, 119
        %v898 = vpop.permute.xlu0 %897
        %899 = vrot.lane.b32.xlu0 %v223, 119
        %v900 = vpop.permute.xlu0 %899
        %901 = vrot.lane.b32.xlu0 %v224, 119
        %v902 = vpop.permute.xlu0 %901
        %903 = vrot.lane.b32.xlu0 %v225, 119
        %v904 = vpop.permute.xlu0 %903
        %905 = vrot.lane.b32.xlu0 %v226, 119
        %v906 = vpop.permute.xlu0 %905
        %907 = vrot.lane.b32.xlu0 %v227, 119
        %v908 = vpop.permute.xlu0 %907
        %909 = vrot.lane.b32.xlu0 %v228, 119
        %v910 = vpop.permute.xlu0 %909
        %911 = vrot.lane.b32.xlu0 %v229, 119
        %v912 = vpop.permute.xlu0 %911
        %913 = vrot.lane.b32.xlu0 %v230, 119
        %v914 = vpop.permute.xlu0 %913
        %915 = vrot.lane.b32.xlu0 %v231, 119
        %v916 = vpop.permute.xlu0 %915
        %917 = vrot.lane.b32.xlu0 %v232, 119
        %v918 = vpop.permute.xlu0 %917
        %919 = vrot.lane.b32.xlu0 %v233, 119
        %v920 = vpop.permute.xlu0 %919
        %921 = vrot.lane.b32.xlu0 %v234, 119
        %v922 = vpop.permute.xlu0 %921
        %v939 = vadd.f32 %v875, %v892
        %v940 = vadd.f32 %v876, %v894
        %v941 = vadd.f32 %v877, %v896
        %v942 = vadd.f32 %v878, %v898
        %v943 = vadd.f32 %v879, %v900
        %v944 = vadd.f32 %v880, %v902
        %v945 = vadd.f32 %v881, %v904
        %v946 = vadd.f32 %v882, %v906
        %v947 = vadd.f32 %v883, %v908
        %v948 = vadd.f32 %v884, %v910
        %v949 = vadd.f32 %v885, %v912
        %v950 = vadd.f32 %v886, %v914
        %v951 = vadd.f32 %v887, %v916
        %v952 = vadd.f32 %v888, %v918
        %v953 = vadd.f32 %v889, %v920
        %v954 = vadd.f32 %v890, %v922
        %971 = vrot.lane.b32.xlu0 %v203, 118
        %v972 = vpop.permute.xlu0 %971
        %973 = vrot.lane.b32.xlu0 %v204, 118
        %v974 = vpop.permute.xlu0 %973
        %975 = vrot.lane.b32.xlu0 %v205, 118
        %v976 = vpop.permute.xlu0 %975
        %977 = vrot.lane.b32.xlu0 %v206, 118
        %v978 = vpop.permute.xlu0 %977
        %979 = vrot.lane.b32.xlu0 %v207, 118
        %v980 = vpop.permute.xlu0 %979
        %981 = vrot.lane.b32.xlu0 %v208, 118
        %v982 = vpop.permute.xlu0 %981
        %983 = vrot.lane.b32.xlu0 %v209, 118
        %v984 = vpop.permute.xlu0 %983
        %985 = vrot.lane.b32.xlu0 %v210, 118
        %v986 = vpop.permute.xlu0 %985
        %987 = vrot.lane.b32.xlu0 %v211, 118
        %v988 = vpop.permute.xlu0 %987
        %989 = vrot.lane.b32.xlu0 %v212, 118
        %v990 = vpop.permute.xlu0 %989
        %991 = vrot.lane.b32.xlu0 %v213, 118
        %v992 = vpop.permute.xlu0 %991
        %993 = vrot.lane.b32.xlu0 %v214, 118
        %v994 = vpop.permute.xlu0 %993
        %995 = vrot.lane.b32.xlu0 %v215, 118
        %v996 = vpop.permute.xlu0 %995
        %997 = vrot.lane.b32.xlu0 %v216, 118
        %v998 = vpop.permute.xlu0 %997
        %999 = vrot.lane.b32.xlu0 %v217, 118
        %v1000 = vpop.permute.xlu0 %999
        %1001 = vrot.lane.b32.xlu0 %v218, 118
        %v1002 = vpop.permute.xlu0 %1001
        %v1019 = vadd.f32 %v939, %v972
        %v1020 = vadd.f32 %v940, %v974
        %v1021 = vadd.f32 %v941, %v976
        %v1022 = vadd.f32 %v942, %v978
        %v1023 = vadd.f32 %v943, %v980
        %v1024 = vadd.f32 %v944, %v982
        %v1025 = vadd.f32 %v945, %v984
        %v1026 = vadd.f32 %v946, %v986
        %v1027 = vadd.f32 %v947, %v988
        %v1028 = vadd.f32 %v948, %v990
        %v1029 = vadd.f32 %v949, %v992
        %v1030 = vadd.f32 %v950, %v994
        %v1031 = vadd.f32 %v951, %v996
        %v1032 = vadd.f32 %v952, %v998
        %v1033 = vadd.f32 %v953, %v1000
        %v1034 = vadd.f32 %v954, %v1002
        %v1035 = vmul.f32 %v1019, 0.0010283801
        %v1036 = vmul.f32 %v1020, 0.0010283801
        %v1037 = vmul.f32 %v1023, 0.0010283801
        %v1038 = vmul.f32 %v1024, 0.0010283801
        %v1039 = vmul.f32 %v1027, 0.0010283801
        %v1040 = vmul.f32 %v1028, 0.0010283801
        %v1041 = vmul.f32 %v1031, 0.0010283801
        %v1042 = vmul.f32 %v1032, 0.0010283801
        %v1043 = vmul.f32 %v1019, 0.007598758
        %v1044 = vmul.f32 %v1020, 0.007598758
        %v1045 = vmul.f32 %v1021, 0.007598758
        %v1046 = vmul.f32 %v1023, 0.007598758
        %v1047 = vmul.f32 %v1024, 0.007598758
        %v1048 = vmul.f32 %v1025, 0.007598758
        %v1049 = vmul.f32 %v1027, 0.007598758
        %v1050 = vmul.f32 %v1028, 0.007598758
        %v1051 = vmul.f32 %v1029, 0.007598758
        %v1052 = vmul.f32 %v1031, 0.007598758
        %v1053 = vmul.f32 %v1032, 0.007598758
        %v1054 = vmul.f32 %v1033, 0.007598758
        %vm1067 = vcmask 1046528
        %v1068 = vrot.slane %v1043, 1
        %v1069 = vrot.slane %v1044, 1
        %v1070 = vsel %vm1067, %v1068, %v1069
        %v1071 = vrot.slane %v1045, 1
        %v1072 = vsel %vm1067, %v1069, %v1071
        %v1073 = vrot.slane %v1046, 1
        %v1074 = vrot.slane %v1047, 1
        %v1075 = vsel %vm1067, %v1073, %v1074
        %v1076 = vrot.slane %v1048, 1
        %v1077 = vsel %vm1067, %v1074, %v1076
        %v1078 = vrot.slane %v1049, 1
        %v1079 = vrot.slane %v1050, 1
        %v1080 = vsel %vm1067, %v1078, %v1079
        %v1081 = vrot.slane %v1051, 1
        %v1082 = vsel %vm1067, %v1079, %v1081
        %v1083 = vrot.slane %v1052, 1
        %v1084 = vrot.slane %v1053, 1
        %v1085 = vsel %vm1067, %v1083, %v1084
        %v1086 = vrot.slane %v1054, 1
        %v1087 = vsel %vm1067, %v1084, %v1086
        %v1096 = vadd.f32 %v1035, %v1070
        %v1097 = vadd.f32 %v1036, %v1072
        %v1098 = vadd.f32 %v1037, %v1075
        %v1099 = vadd.f32 %v1038, %v1077
        %v1100 = vadd.f32 %v1039, %v1080
        %v1101 = vadd.f32 %v1040, %v1082
        %v1102 = vadd.f32 %v1041, %v1085
        %v1103 = vadd.f32 %v1042, %v1087
        %v1104 = vmul.f32 %v1019, 0.036000773
        %v1105 = vmul.f32 %v1020, 0.036000773
        %v1106 = vmul.f32 %v1021, 0.036000773
        %v1107 = vmul.f32 %v1023, 0.036000773
        %v1108 = vmul.f32 %v1024, 0.036000773
        %v1109 = vmul.f32 %v1025, 0.036000773
        %v1110 = vmul.f32 %v1027, 0.036000773
        %v1111 = vmul.f32 %v1028, 0.036000773
        %v1112 = vmul.f32 %v1029, 0.036000773
        %v1113 = vmul.f32 %v1031, 0.036000773
        %v1114 = vmul.f32 %v1032, 0.036000773
        %v1115 = vmul.f32 %v1033, 0.036000773
        %vm1128 = vcmask 1045504
        %v1129 = vrot.slane %v1104, 2
        %v1130 = vrot.slane %v1105, 2
        %v1131 = vsel %vm1128, %v1129, %v1130
        %v1132 = vrot.slane %v1106, 2
        %v1133 = vsel %vm1128, %v1130, %v1132
        %v1134 = vrot.slane %v1107, 2
        %v1135 = vrot.slane %v1108, 2
        %v1136 = vsel %vm1128, %v1134, %v1135
        %v1137 = vrot.slane %v1109, 2
        %v1138 = vsel %vm1128, %v1135, %v1137
        %v1139 = vrot.slane %v1110, 2
        %v1140 = vrot.slane %v1111, 2
        %v1141 = vsel %vm1128, %v1139, %v1140
        %v1142 = vrot.slane %v1112, 2
        %v1143 = vsel %vm1128, %v1140, %v1142
        %v1144 = vrot.slane %v1113, 2
        %v1145 = vrot.slane %v1114, 2
        %v1146 = vsel %vm1128, %v1144, %v1145
        %v1147 = vrot.slane %v1115, 2
        %v1148 = vsel %vm1128, %v1145, %v1147
        %v1157 = vadd.f32 %v1096, %v1131
        %v1158 = vadd.f32 %v1097, %v1133
        %v1159 = vadd.f32 %v1098, %v1136
        %v1160 = vadd.f32 %v1099, %v1138
        %v1161 = vadd.f32 %v1100, %v1141
        %v1162 = vadd.f32 %v1101, %v1143
        %v1163 = vadd.f32 %v1102, %v1146
        %v1164 = vadd.f32 %v1103, %v1148
        %v1165 = vmul.f32 %v1019, 0.10936069
        %v1166 = vmul.f32 %v1020, 0.10936069
        %v1167 = vmul.f32 %v1021, 0.10936069
        %v1168 = vmul.f32 %v1023, 0.10936069
        %v1169 = vmul.f32 %v1024, 0.10936069
        %v1170 = vmul.f32 %v1025, 0.10936069
        %v1171 = vmul.f32 %v1027, 0.10936069
        %v1172 = vmul.f32 %v1028, 0.10936069
        %v1173 = vmul.f32 %v1029, 0.10936069
        %v1174 = vmul.f32 %v1031, 0.10936069
        %v1175 = vmul.f32 %v1032, 0.10936069
        %v1176 = vmul.f32 %v1033, 0.10936069
        %vm1189 = vcmask 1044480
        %v1190 = vrot.slane %v1165, 3
        %v1191 = vrot.slane %v1166, 3
        %v1192 = vsel %vm1189, %v1190, %v1191
        %v1193 = vrot.slane %v1167, 3
        %v1194 = vsel %vm1189, %v1191, %v1193
        %v1195 = vrot.slane %v1168, 3
        %v1196 = vrot.slane %v1169, 3
        %v1197 = vsel %vm1189, %v1195, %v1196
        %v1198 = vrot.slane %v1170, 3
        %v1199 = vsel %vm1189, %v1196, %v1198
        %v1200 = vrot.slane %v1171, 3
        %v1201 = vrot.slane %v1172, 3
        %v1202 = vsel %vm1189, %v1200, %v1201
        %v1203 = vrot.slane %v1173, 3
        %v1204 = vsel %vm1189, %v1201, %v1203
        %v1205 = vrot.slane %v1174, 3
        %v1206 = vrot.slane %v1175, 3
        %v1207 = vsel %vm1189, %v1205, %v1206
        %v1208 = vrot.slane %v1176, 3
        %v1209 = vsel %vm1189, %v1206, %v1208
        %v1218 = vadd.f32 %v1157, %v1192
        %v1219 = vadd.f32 %v1158, %v1194
        %v1220 = vadd.f32 %v1159, %v1197
        %v1221 = vadd.f32 %v1160, %v1199
        %v1222 = vadd.f32 %v1161, %v1202
        %v1223 = vadd.f32 %v1162, %v1204
        %v1224 = vadd.f32 %v1163, %v1207
        %v1225 = vadd.f32 %v1164, %v1209
        %v1226 = vmul.f32 %v1019, 0.21300554
        %v1227 = vmul.f32 %v1020, 0.21300554
        %v1228 = vmul.f32 %v1021, 0.21300554
        %v1229 = vmul.f32 %v1023, 0.21300554
        %v1230 = vmul.f32 %v1024, 0.21300554
        %v1231 = vmul.f32 %v1025, 0.21300554
        %v1232 = vmul.f32 %v1027, 0.21300554
        %v1233 = vmul.f32 %v1028, 0.21300554
        %v1234 = vmul.f32 %v1029, 0.21300554
        %v1235 = vmul.f32 %v1031, 0.21300554
        %v1236 = vmul.f32 %v1032, 0.21300554
        %v1237 = vmul.f32 %v1033, 0.21300554
        %vm1250 = vcmask 1043456
        %v1251 = vrot.slane %v1226, 4
        %v1252 = vrot.slane %v1227, 4
        %v1253 = vsel %vm1250, %v1251, %v1252
        %v1254 = vrot.slane %v1228, 4
        %v1255 = vsel %vm1250, %v1252, %v1254
        %v1256 = vrot.slane %v1229, 4
        %v1257 = vrot.slane %v1230, 4
        %v1258 = vsel %vm1250, %v1256, %v1257
        %v1259 = vrot.slane %v1231, 4
        %v1260 = vsel %vm1250, %v1257, %v1259
        %v1261 = vrot.slane %v1232, 4
        %v1262 = vrot.slane %v1233, 4
        %v1263 = vsel %vm1250, %v1261, %v1262
        %v1264 = vrot.slane %v1234, 4
        %v1265 = vsel %vm1250, %v1262, %v1264
        %v1266 = vrot.slane %v1235, 4
        %v1267 = vrot.slane %v1236, 4
        %v1268 = vsel %vm1250, %v1266, %v1267
        %v1269 = vrot.slane %v1237, 4
        %v1270 = vsel %vm1250, %v1267, %v1269
        %v1279 = vadd.f32 %v1218, %v1253
        %v1280 = vadd.f32 %v1219, %v1255
        %v1281 = vadd.f32 %v1220, %v1258
        %v1282 = vadd.f32 %v1221, %v1260
        %v1283 = vadd.f32 %v1222, %v1263
        %v1284 = vadd.f32 %v1223, %v1265
        %v1285 = vadd.f32 %v1224, %v1268
        %v1286 = vadd.f32 %v1225, %v1270
        %v1287 = vmul.f32 %v1019, 0.26601171
        %v1288 = vmul.f32 %v1020, 0.26601171
        %v1289 = vmul.f32 %v1021, 0.26601171
        %v1290 = vmul.f32 %v1023, 0.26601171
        %v1291 = vmul.f32 %v1024, 0.26601171
        %v1292 = vmul.f32 %v1025, 0.26601171
        %v1293 = vmul.f32 %v1027, 0.26601171
        %v1294 = vmul.f32 %v1028, 0.26601171
        %v1295 = vmul.f32 %v1029, 0.26601171
        %v1296 = vmul.f32 %v1031, 0.26601171
        %v1297 = vmul.f32 %v1032, 0.26601171
        %v1298 = vmul.f32 %v1033, 0.26601171
        %vm1311 = vcmask 1042432
        %v1312 = vrot.slane %v1287, 5
        %v1313 = vrot.slane %v1288, 5
        %v1314 = vsel %vm1311, %v1312, %v1313
        %v1315 = vrot.slane %v1289, 5
        %v1316 = vsel %vm1311, %v1313, %v1315
        %v1317 = vrot.slane %v1290, 5
        %v1318 = vrot.slane %v1291, 5
        %v1319 = vsel %vm1311, %v1317, %v1318
        %v1320 = vrot.slane %v1292, 5
        %v1321 = vsel %vm1311, %v1318, %v1320
        %v1322 = vrot.slane %v1293, 5
        %v1323 = vrot.slane %v1294, 5
        %v1324 = vsel %vm1311, %v1322, %v1323
        %v1325 = vrot.slane %v1295, 5
        %v1326 = vsel %vm1311, %v1323, %v1325
        %v1327 = vrot.slane %v1296, 5
        %v1328 = vrot.slane %v1297, 5
        %v1329 = vsel %vm1311, %v1327, %v1328
        %v1330 = vrot.slane %v1298, 5
        %v1331 = vsel %vm1311, %v1328, %v1330
        %v1340 = vadd.f32 %v1279, %v1314
        %v1341 = vadd.f32 %v1280, %v1316
        %v1342 = vadd.f32 %v1281, %v1319
        %v1343 = vadd.f32 %v1282, %v1321
        %v1344 = vadd.f32 %v1283, %v1324
        %v1345 = vadd.f32 %v1284, %v1326
        %v1346 = vadd.f32 %v1285, %v1329
        %v1347 = vadd.f32 %v1286, %v1331
        %vm1348 = vcmask 1041408
        %v1349 = vrot.slane %v1226, 6
        %v1350 = vrot.slane %v1227, 6
        %v1351 = vsel %vm1348, %v1349, %v1350
        %v1352 = vrot.slane %v1228, 6
        %v1353 = vsel %vm1348, %v1350, %v1352
        %v1354 = vrot.slane %v1229, 6
        %v1355 = vrot.slane %v1230, 6
        %v1356 = vsel %vm1348, %v1354, %v1355
        %v1357 = vrot.slane %v1231, 6
        %v1358 = vsel %vm1348, %v1355, %v1357
        %v1359 = vrot.slane %v1232, 6
        %v1360 = vrot.slane %v1233, 6
        %v1361 = vsel %vm1348, %v1359, %v1360
        %v1362 = vrot.slane %v1234, 6
        %v1363 = vsel %vm1348, %v1360, %v1362
        %v1364 = vrot.slane %v1235, 6
        %v1365 = vrot.slane %v1236, 6
        %v1366 = vsel %vm1348, %v1364, %v1365
        %v1367 = vrot.slane %v1237, 6
        %v1368 = vsel %vm1348, %v1365, %v1367
        %v1377 = vadd.f32 %v1340, %v1351
        %v1378 = vadd.f32 %v1341, %v1353
        %v1379 = vadd.f32 %v1342, %v1356
        %v1380 = vadd.f32 %v1343, %v1358
        %v1381 = vadd.f32 %v1344, %v1361
        %v1382 = vadd.f32 %v1345, %v1363
        %v1383 = vadd.f32 %v1346, %v1366
        %v1384 = vadd.f32 %v1347, %v1368
        %vm1385 = vcmask 1040384
        %v1386 = vrot.slane %v1165, 7
        %v1387 = vrot.slane %v1166, 7
        %v1388 = vsel %vm1385, %v1386, %v1387
        %v1389 = vrot.slane %v1167, 7
        %v1390 = vsel %vm1385, %v1387, %v1389
        %v1391 = vrot.slane %v1168, 7
        %v1392 = vrot.slane %v1169, 7
        %v1393 = vsel %vm1385, %v1391, %v1392
        %v1394 = vrot.slane %v1170, 7
        %v1395 = vsel %vm1385, %v1392, %v1394
        %v1396 = vrot.slane %v1171, 7
        %v1397 = vrot.slane %v1172, 7
        %v1398 = vsel %vm1385, %v1396, %v1397
        %v1399 = vrot.slane %v1173, 7
        %v1400 = vsel %vm1385, %v1397, %v1399
        %v1401 = vrot.slane %v1174, 7
        %v1402 = vrot.slane %v1175, 7
        %v1403 = vsel %vm1385, %v1401, %v1402
        %v1404 = vrot.slane %v1176, 7
        %v1405 = vsel %vm1385, %v1402, %v1404
        %v1414 = vadd.f32 %v1377, %v1388
        %v1415 = vadd.f32 %v1378, %v1390
        %v1416 = vadd.f32 %v1379, %v1393
        %v1417 = vadd.f32 %v1380, %v1395
        %v1418 = vadd.f32 %v1381, %v1398
        %v1419 = vadd.f32 %v1382, %v1400
        %v1420 = vadd.f32 %v1383, %v1403
        %v1421 = vadd.f32 %v1384, %v1405
        %v1422 = vadd.f32 %v1414, %v1105
        %v1423 = vadd.f32 %v1415, %v1106
        %v1424 = vadd.f32 %v1416, %v1108
        %v1425 = vadd.f32 %v1417, %v1109
        %v1426 = vadd.f32 %v1418, %v1111
        %v1427 = vadd.f32 %v1419, %v1112
        %v1428 = vadd.f32 %v1420, %v1114
        %v1429 = vadd.f32 %v1421, %v1115
        %v1430 = vmul.f32 %v1022, 0.007598758
        %v1431 = vmul.f32 %v1026, 0.007598758
        %v1432 = vmul.f32 %v1030, 0.007598758
        %v1433 = vmul.f32 %v1034, 0.007598758
        %v1438 = vrot.slane %v1430, 1
        %v1439 = vsel %vm1067, %v1071, %v1438
        %v1440 = vrot.slane %v1431, 1
        %v1441 = vsel %vm1067, %v1076, %v1440
        %v1442 = vrot.slane %v1432, 1
        %v1443 = vsel %vm1067, %v1081, %v1442
        %v1444 = vrot.slane %v1433, 1
        %v1445 = vsel %vm1067, %v1086, %v1444
        %v1450 = vadd.f32 %v1422, %v1072
        %v1451 = vadd.f32 %v1423, %v1439
        %v1452 = vadd.f32 %v1424, %v1077
        %v1453 = vadd.f32 %v1425, %v1441
        %v1454 = vadd.f32 %v1426, %v1082
        %v1455 = vadd.f32 %v1427, %v1443
        %v1456 = vadd.f32 %v1428, %v1087
        %v1457 = vadd.f32 %v1429, %v1445
        %v1458 = vmul.f32 %v1021, 0.0010283801
        %v1459 = vmul.f32 %v1022, 0.0010283801
        %v1460 = vmul.f32 %v1025, 0.0010283801
        %v1461 = vmul.f32 %v1026, 0.0010283801
        %v1462 = vmul.f32 %v1029, 0.0010283801
        %v1463 = vmul.f32 %v1030, 0.0010283801
        %v1464 = vmul.f32 %v1033, 0.0010283801
        %v1465 = vmul.f32 %v1034, 0.0010283801
        %v1478 = vrot.slane %v1036, 2
        %v1479 = vrot.slane %v1458, 2
        %v1480 = vsel %vm1128, %v1478, %v1479
        %v1481 = vrot.slane %v1459, 2
        %v1482 = vsel %vm1128, %v1479, %v1481
        %v1483 = vrot.slane %v1038, 2
        %v1484 = vrot.slane %v1460, 2
        %v1485 = vsel %vm1128, %v1483, %v1484
        %v1486 = vrot.slane %v1461, 2
        %v1487 = vsel %vm1128, %v1484, %v1486
        %v1488 = vrot.slane %v1040, 2
        %v1489 = vrot.slane %v1462, 2
        %v1490 = vsel %vm1128, %v1488, %v1489
        %v1491 = vrot.slane %v1463, 2
        %v1492 = vsel %vm1128, %v1489, %v1491
        %v1493 = vrot.slane %v1042, 2
        %v1494 = vrot.slane %v1464, 2
        %v1495 = vsel %vm1128, %v1493, %v1494
        %v1496 = vrot.slane %v1465, 2
        %v1497 = vsel %vm1128, %v1494, %v1496
        %v1506 = vadd.f32 %v1450, %v1480
        %v1507 = vadd.f32 %v1451, %v1482
        %v1508 = vadd.f32 %v1452, %v1485
        %v1509 = vadd.f32 %v1453, %v1487
        %v1510 = vadd.f32 %v1454, %v1490
        %v1511 = vadd.f32 %v1455, %v1492
        %v1512 = vadd.f32 %v1456, %v1495
        %v1513 = vadd.f32 %v1457, %v1497
        %v1514 = vmul.f32 %v187, 0.0010283801
        %v1515 = vmul.f32 %v188, 0.0010283801
        %v1516 = vmul.f32 %v189, 0.0010283801
        %v1517 = vmul.f32 %v190, 0.0010283801
        %v1518 = vmul.f32 %v191, 0.0010283801
        %v1519 = vmul.f32 %v192, 0.0010283801
        %v1520 = vmul.f32 %v193, 0.0010283801
        %v1521 = vmul.f32 %v194, 0.0010283801
        %v1522 = vmul.f32 %v195, 0.0010283801
        %v1523 = vmul.f32 %v196, 0.0010283801
        %v1524 = vmul.f32 %v197, 0.0010283801
        %v1525 = vmul.f32 %v198, 0.0010283801
        %v1526 = vmul.f32 %v199, 0.0010283801
        %v1527 = vmul.f32 %v200, 0.0010283801
        %v1528 = vmul.f32 %v201, 0.0010283801
        %v1529 = vmul.f32 %v202, 0.0010283801
        %v1530 = vmul.f32 %v187, 0.007598758
        %v1531 = vmul.f32 %v188, 0.007598758
        %v1532 = vmul.f32 %v189, 0.007598758
        %v1533 = vmul.f32 %v190, 0.007598758
        %v1534 = vmul.f32 %v191, 0.007598758
        %v1535 = vmul.f32 %v192, 0.007598758
        %v1536 = vmul.f32 %v193, 0.007598758
        %v1537 = vmul.f32 %v194, 0.007598758
        %v1538 = vmul.f32 %v195, 0.007598758
        %v1539 = vmul.f32 %v196, 0.007598758
        %v1540 = vmul.f32 %v197, 0.007598758
        %v1541 = vmul.f32 %v198, 0.007598758
        %v1542 = vmul.f32 %v199, 0.007598758
        %v1543 = vmul.f32 %v200, 0.007598758
        %v1544 = vmul.f32 %v201, 0.007598758
        %v1545 = vmul.f32 %v202, 0.007598758
        %1562 = vrot.lane.b32.xlu0 %v1530, 127
        %v1563 = vpop.permute.xlu0 %1562
        %1564 = vrot.lane.b32.xlu0 %v1531, 127
        %v1565 = vpop.permute.xlu0 %1564
        %1566 = vrot.lane.b32.xlu0 %v1532, 127
        %v1567 = vpop.permute.xlu0 %1566
        %1568 = vrot.lane.b32.xlu0 %v1533, 127
        %v1569 = vpop.permute.xlu0 %1568
        %1570 = vrot.lane.b32.xlu0 %v1534, 127
        %v1571 = vpop.permute.xlu0 %1570
        %1572 = vrot.lane.b32.xlu0 %v1535, 127
        %v1573 = vpop.permute.xlu0 %1572
        %1574 = vrot.lane.b32.xlu0 %v1536, 127
        %v1575 = vpop.permute.xlu0 %1574
        %1576 = vrot.lane.b32.xlu0 %v1537, 127
        %v1577 = vpop.permute.xlu0 %1576
        %1578 = vrot.lane.b32.xlu0 %v1538, 127
        %v1579 = vpop.permute.xlu0 %1578
        %1580 = vrot.lane.b32.xlu0 %v1539, 127
        %v1581 = vpop.permute.xlu0 %1580
        %1582 = vrot.lane.b32.xlu0 %v1540, 127
        %v1583 = vpop.permute.xlu0 %1582
        %1584 = vrot.lane.b32.xlu0 %v1541, 127
        %v1585 = vpop.permute.xlu0 %1584
        %1586 = vrot.lane.b32.xlu0 %v1542, 127
        %v1587 = vpop.permute.xlu0 %1586
        %1588 = vrot.lane.b32.xlu0 %v1543, 127
        %v1589 = vpop.permute.xlu0 %1588
        %1590 = vrot.lane.b32.xlu0 %v1544, 127
        %v1591 = vpop.permute.xlu0 %1590
        %1592 = vrot.lane.b32.xlu0 %v1545, 127
        %v1593 = vpop.permute.xlu0 %1592
        %v1610 = vadd.f32 %v1514, %v1563
        %v1611 = vadd.f32 %v1515, %v1565
        %v1612 = vadd.f32 %v1516, %v1567
        %v1613 = vadd.f32 %v1517, %v1569
        %v1614 = vadd.f32 %v1518, %v1571
        %v1615 = vadd.f32 %v1519, %v1573
        %v1616 = vadd.f32 %v1520, %v1575
        %v1617 = vadd.f32 %v1521, %v1577
        %v1618 = vadd.f32 %v1522, %v1579
        %v1619 = vadd.f32 %v1523, %v1581
        %v1620 = vadd.f32 %v1524, %v1583
        %v1621 = vadd.f32 %v1525, %v1585
        %v1622 = vadd.f32 %v1526, %v1587
        %v1623 = vadd.f32 %v1527, %v1589
        %v1624 = vadd.f32 %v1528, %v1591
        %v1625 = vadd.f32 %v1529, %v1593
        %v1626 = vmul.f32 %v187, 0.036000773
        %v1627 = vmul.f32 %v188, 0.036000773
        %v1628 = vmul.f32 %v189, 0.036000773
        %v1629 = vmul.f32 %v190, 0.036000773
        %v1630 = vmul.f32 %v191, 0.036000773
        %v1631 = vmul.f32 %v192, 0.036000773
        %v1632 = vmul.f32 %v193, 0.036000773
        %v1633 = vmul.f32 %v194, 0.036000773
        %v1634 = vmul.f32 %v195, 0.036000773
        %v1635 = vmul.f32 %v196, 0.036000773
        %v1636 = vmul.f32 %v197, 0.036000773
        %v1637 = vmul.f32 %v198, 0.036000773
        %v1638 = vmul.f32 %v199, 0.036000773
        %v1639 = vmul.f32 %v200, 0.036000773
        %v1640 = vmul.f32 %v201, 0.036000773
        %v1641 = vmul.f32 %v202, 0.036000773
        %1658 = vrot.lane.b32.xlu0 %v1626, 126
        %v1659 = vpop.permute.xlu0 %1658
        %1660 = vrot.lane.b32.xlu0 %v1627, 126
        %v1661 = vpop.permute.xlu0 %1660
        %1662 = vrot.lane.b32.xlu0 %v1628, 126
        %v1663 = vpop.permute.xlu0 %1662
        %1664 = vrot.lane.b32.xlu0 %v1629, 126
        %v1665 = vpop.permute.xlu0 %1664
        %1666 = vrot.lane.b32.xlu0 %v1630, 126
        %v1667 = vpop.permute.xlu0 %1666
        %1668 = vrot.lane.b32.xlu0 %v1631, 126
        %v1669 = vpop.permute.xlu0 %1668
        %1670 = vrot.lane.b32.xlu0 %v1632, 126
        %v1671 = vpop.permute.xlu0 %1670
        %1672 = vrot.lane.b32.xlu0 %v1633, 126
        %v1673 = vpop.permute.xlu0 %1672
        %1674 = vrot.lane.b32.xlu0 %v1634, 126
        %v1675 = vpop.permute.xlu0 %1674
        %1676 = vrot.lane.b32.xlu0 %v1635, 126
        %v1677 = vpop.permute.xlu0 %1676
        %1678 = vrot.lane.b32.xlu0 %v1636, 126
        %v1679 = vpop.permute.xlu0 %1678
        %1680 = vrot.lane.b32.xlu0 %v1637, 126
        %v1681 = vpop.permute.xlu0 %1680
        %1682 = vrot.lane.b32.xlu0 %v1638, 126
        %v1683 = vpop.permute.xlu0 %1682
        %1684 = vrot.lane.b32.xlu0 %v1639, 126
        %v1685 = vpop.permute.xlu0 %1684
        %1686 = vrot.lane.b32.xlu0 %v1640, 126
        %v1687 = vpop.permute.xlu0 %1686
        %1688 = vrot.lane.b32.xlu0 %v1641, 126
        %v1689 = vpop.permute.xlu0 %1688
        %v1706 = vadd.f32 %v1610, %v1659
        %v1707 = vadd.f32 %v1611, %v1661
        %v1708 = vadd.f32 %v1612, %v1663
        %v1709 = vadd.f32 %v1613, %v1665
        %v1710 = vadd.f32 %v1614, %v1667
        %v1711 = vadd.f32 %v1615, %v1669
        %v1712 = vadd.f32 %v1616, %v1671
        %v1713 = vadd.f32 %v1617, %v1673
        %v1714 = vadd.f32 %v1618, %v1675
        %v1715 = vadd.f32 %v1619, %v1677
        %v1716 = vadd.f32 %v1620, %v1679
        %v1717 = vadd.f32 %v1621, %v1681
        %v1718 = vadd.f32 %v1622, %v1683
        %v1719 = vadd.f32 %v1623, %v1685
        %v1720 = vadd.f32 %v1624, %v1687
        %v1721 = vadd.f32 %v1625, %v1689
        %v1722 = vmul.f32 %v187, 0.10936069
        %v1723 = vmul.f32 %v188, 0.10936069
        %v1724 = vmul.f32 %v189, 0.10936069
        %v1725 = vmul.f32 %v190, 0.10936069
        %v1726 = vmul.f32 %v191, 0.10936069
        %v1727 = vmul.f32 %v192, 0.10936069
        %v1728 = vmul.f32 %v193, 0.10936069
        %v1729 = vmul.f32 %v194, 0.10936069
        %v1730 = vmul.f32 %v195, 0.10936069
        %v1731 = vmul.f32 %v196, 0.10936069
        %v1732 = vmul.f32 %v197, 0.10936069
        %v1733 = vmul.f32 %v198, 0.10936069
        %v1734 = vmul.f32 %v199, 0.10936069
        %v1735 = vmul.f32 %v200, 0.10936069
        %v1736 = vmul.f32 %v201, 0.10936069
        %v1737 = vmul.f32 %v202, 0.10936069
        %1754 = vrot.lane.b32.xlu0 %v1722, 125
        %v1755 = vpop.permute.xlu0 %1754
        %1756 = vrot.lane.b32.xlu0 %v1723, 125
        %v1757 = vpop.permute.xlu0 %1756
        %1758 = vrot.lane.b32.xlu0 %v1724, 125
        %v1759 = vpop.permute.xlu0 %1758
        %1760 = vrot.lane.b32.xlu0 %v1725, 125
        %v1761 = vpop.permute.xlu0 %1760
        %1762 = vrot.lane.b32.xlu0 %v1726, 125
        %v1763 = vpop.permute.xlu0 %1762
        %1764 = vrot.lane.b32.xlu0 %v1727, 125
        %v1765 = vpop.permute.xlu0 %1764
        %1766 = vrot.lane.b32.xlu0 %v1728, 125
        %v1767 = vpop.permute.xlu0 %1766
        %1768 = vrot.lane.b32.xlu0 %v1729, 125
        %v1769 = vpop.permute.xlu0 %1768
        %1770 = vrot.lane.b32.xlu0 %v1730, 125
        %v1771 = vpop.permute.xlu0 %1770
        %1772 = vrot.lane.b32.xlu0 %v1731, 125
        %v1773 = vpop.permute.xlu0 %1772
        %1774 = vrot.lane.b32.xlu0 %v1732, 125
        %v1775 = vpop.permute.xlu0 %1774
        %1776 = vrot.lane.b32.xlu0 %v1733, 125
        %v1777 = vpop.permute.xlu0 %1776
        %1778 = vrot.lane.b32.xlu0 %v1734, 125
        %v1779 = vpop.permute.xlu0 %1778
        %1780 = vrot.lane.b32.xlu0 %v1735, 125
        %v1781 = vpop.permute.xlu0 %1780
        %1782 = vrot.lane.b32.xlu0 %v1736, 125
        %v1783 = vpop.permute.xlu0 %1782
        %1784 = vrot.lane.b32.xlu0 %v1737, 125
        %v1785 = vpop.permute.xlu0 %1784
        %v1802 = vadd.f32 %v1706, %v1755
        %v1803 = vadd.f32 %v1707, %v1757
        %v1804 = vadd.f32 %v1708, %v1759
        %v1805 = vadd.f32 %v1709, %v1761
        %v1806 = vadd.f32 %v1710, %v1763
        %v1807 = vadd.f32 %v1711, %v1765
        %v1808 = vadd.f32 %v1712, %v1767
        %v1809 = vadd.f32 %v1713, %v1769
        %v1810 = vadd.f32 %v1714, %v1771
        %v1811 = vadd.f32 %v1715, %v1773
        %v1812 = vadd.f32 %v1716, %v1775
        %v1813 = vadd.f32 %v1717, %v1777
        %v1814 = vadd.f32 %v1718, %v1779
        %v1815 = vadd.f32 %v1719, %v1781
        %v1816 = vadd.f32 %v1720, %v1783
        %v1817 = vadd.f32 %v1721, %v1785
        %v1818 = vmul.f32 %v187, 0.21300554
        %v1819 = vmul.f32 %v188, 0.21300554
        %v1820 = vmul.f32 %v189, 0.21300554
        %v1821 = vmul.f32 %v190, 0.21300554
        %v1822 = vmul.f32 %v191, 0.21300554
        %v1823 = vmul.f32 %v192, 0.21300554
        %v1824 = vmul.f32 %v193, 0.21300554
        %v1825 = vmul.f32 %v194, 0.21300554
        %v1826 = vmul.f32 %v195, 0.21300554
        %v1827 = vmul.f32 %v196, 0.21300554
        %v1828 = vmul.f32 %v197, 0.21300554
        %v1829 = vmul.f32 %v198, 0.21300554
        %v1830 = vmul.f32 %v199, 0.21300554
        %v1831 = vmul.f32 %v200, 0.21300554
        %v1832 = vmul.f32 %v201, 0.21300554
        %v1833 = vmul.f32 %v202, 0.21300554
        %1850 = vrot.lane.b32.xlu0 %v1818, 124
        %v1851 = vpop.permute.xlu0 %1850
        %1852 = vrot.lane.b32.xlu0 %v1819, 124
        %v1853 = vpop.permute.xlu0 %1852
        %1854 = vrot.lane.b32.xlu0 %v1820, 124
        %v1855 = vpop.permute.xlu0 %1854
        %1856 = vrot.lane.b32.xlu0 %v1821, 124
        %v1857 = vpop.permute.xlu0 %1856
        %1858 = vrot.lane.b32.xlu0 %v1822, 124
        %v1859 = vpop.permute.xlu0 %1858
        %1860 = vrot.lane.b32.xlu0 %v1823, 124
        %v1861 = vpop.permute.xlu0 %1860
        %1862 = vrot.lane.b32.xlu0 %v1824, 124
        %v1863 = vpop.permute.xlu0 %1862
        %1864 = vrot.lane.b32.xlu0 %v1825, 124
        %v1865 = vpop.permute.xlu0 %1864
        %1866 = vrot.lane.b32.xlu0 %v1826, 124
        %v1867 = vpop.permute.xlu0 %1866
        %1868 = vrot.lane.b32.xlu0 %v1827, 124
        %v1869 = vpop.permute.xlu0 %1868
        %1870 = vrot.lane.b32.xlu0 %v1828, 124
        %v1871 = vpop.permute.xlu0 %1870
        %1872 = vrot.lane.b32.xlu0 %v1829, 124
        %v1873 = vpop.permute.xlu0 %1872
        %1874 = vrot.lane.b32.xlu0 %v1830, 124
        %v1875 = vpop.permute.xlu0 %1874
        %1876 = vrot.lane.b32.xlu0 %v1831, 124
        %v1877 = vpop.permute.xlu0 %1876
        %1878 = vrot.lane.b32.xlu0 %v1832, 124
        %v1879 = vpop.permute.xlu0 %1878
        %1880 = vrot.lane.b32.xlu0 %v1833, 124
        %v1881 = vpop.permute.xlu0 %1880
        %v1898 = vadd.f32 %v1802, %v1851
        %v1899 = vadd.f32 %v1803, %v1853
        %v1900 = vadd.f32 %v1804, %v1855
        %v1901 = vadd.f32 %v1805, %v1857
        %v1902 = vadd.f32 %v1806, %v1859
        %v1903 = vadd.f32 %v1807, %v1861
        %v1904 = vadd.f32 %v1808, %v1863
        %v1905 = vadd.f32 %v1809, %v1865
        %v1906 = vadd.f32 %v1810, %v1867
        %v1907 = vadd.f32 %v1811, %v1869
        %v1908 = vadd.f32 %v1812, %v1871
        %v1909 = vadd.f32 %v1813, %v1873
        %v1910 = vadd.f32 %v1814, %v1875
        %v1911 = vadd.f32 %v1815, %v1877
        %v1912 = vadd.f32 %v1816, %v1879
        %v1913 = vadd.f32 %v1817, %v1881
        %v1914 = vmul.f32 %v187, 0.26601171
        %v1915 = vmul.f32 %v188, 0.26601171
        %v1916 = vmul.f32 %v189, 0.26601171
        %v1917 = vmul.f32 %v190, 0.26601171
        %v1918 = vmul.f32 %v191, 0.26601171
        %v1919 = vmul.f32 %v192, 0.26601171
        %v1920 = vmul.f32 %v193, 0.26601171
        %v1921 = vmul.f32 %v194, 0.26601171
        %v1922 = vmul.f32 %v195, 0.26601171
        %v1923 = vmul.f32 %v196, 0.26601171
        %v1924 = vmul.f32 %v197, 0.26601171
        %v1925 = vmul.f32 %v198, 0.26601171
        %v1926 = vmul.f32 %v199, 0.26601171
        %v1927 = vmul.f32 %v200, 0.26601171
        %v1928 = vmul.f32 %v201, 0.26601171
        %v1929 = vmul.f32 %v202, 0.26601171
        %1946 = vrot.lane.b32.xlu0 %v1914, 123
        %v1947 = vpop.permute.xlu0 %1946
        %1948 = vrot.lane.b32.xlu0 %v1915, 123
        %v1949 = vpop.permute.xlu0 %1948
        %1950 = vrot.lane.b32.xlu0 %v1916, 123
        %v1951 = vpop.permute.xlu0 %1950
        %1952 = vrot.lane.b32.xlu0 %v1917, 123
        %v1953 = vpop.permute.xlu0 %1952
        %1954 = vrot.lane.b32.xlu0 %v1918, 123
        %v1955 = vpop.permute.xlu0 %1954
        %1956 = vrot.lane.b32.xlu0 %v1919, 123
        %v1957 = vpop.permute.xlu0 %1956
        %1958 = vrot.lane.b32.xlu0 %v1920, 123
        %v1959 = vpop.permute.xlu0 %1958
        %1960 = vrot.lane.b32.xlu0 %v1921, 123
        %v1961 = vpop.permute.xlu0 %1960
        %1962 = vrot.lane.b32.xlu0 %v1922, 123
        %v1963 = vpop.permute.xlu0 %1962
        %1964 = vrot.lane.b32.xlu0 %v1923, 123
        %v1965 = vpop.permute.xlu0 %1964
        %1966 = vrot.lane.b32.xlu0 %v1924, 123
        %v1967 = vpop.permute.xlu0 %1966
        %1968 = vrot.lane.b32.xlu0 %v1925, 123
        %v1969 = vpop.permute.xlu0 %1968
        %1970 = vrot.lane.b32.xlu0 %v1926, 123
        %v1971 = vpop.permute.xlu0 %1970
        %1972 = vrot.lane.b32.xlu0 %v1927, 123
        %v1973 = vpop.permute.xlu0 %1972
        %1974 = vrot.lane.b32.xlu0 %v1928, 123
        %v1975 = vpop.permute.xlu0 %1974
        %1976 = vrot.lane.b32.xlu0 %v1929, 123
        %v1977 = vpop.permute.xlu0 %1976
        %v1994 = vadd.f32 %v1898, %v1947
        %v1995 = vadd.f32 %v1899, %v1949
        %v1996 = vadd.f32 %v1900, %v1951
        %v1997 = vadd.f32 %v1901, %v1953
        %v1998 = vadd.f32 %v1902, %v1955
        %v1999 = vadd.f32 %v1903, %v1957
        %v2000 = vadd.f32 %v1904, %v1959
        %v2001 = vadd.f32 %v1905, %v1961
        %v2002 = vadd.f32 %v1906, %v1963
        %v2003 = vadd.f32 %v1907, %v1965
        %v2004 = vadd.f32 %v1908, %v1967
        %v2005 = vadd.f32 %v1909, %v1969
        %v2006 = vadd.f32 %v1910, %v1971
        %v2007 = vadd.f32 %v1911, %v1973
        %v2008 = vadd.f32 %v1912, %v1975
        %v2009 = vadd.f32 %v1913, %v1977
        %2010 = vrot.lane.b32.xlu0 %v1818, 122
        %v2011 = vpop.permute.xlu0 %2010
        %2012 = vrot.lane.b32.xlu0 %v1819, 122
        %v2013 = vpop.permute.xlu0 %2012
        %2014 = vrot.lane.b32.xlu0 %v1820, 122
        %v2015 = vpop.permute.xlu0 %2014
        %2016 = vrot.lane.b32.xlu0 %v1821, 122
        %v2017 = vpop.permute.xlu0 %2016
        %2018 = vrot.lane.b32.xlu0 %v1822, 122
        %v2019 = vpop.permute.xlu0 %2018
        %2020 = vrot.lane.b32.xlu0 %v1823, 122
        %v2021 = vpop.permute.xlu0 %2020
        %2022 = vrot.lane.b32.xlu0 %v1824, 122
        %v2023 = vpop.permute.xlu0 %2022
        %2024 = vrot.lane.b32.xlu0 %v1825, 122
        %v2025 = vpop.permute.xlu0 %2024
        %2026 = vrot.lane.b32.xlu0 %v1826, 122
        %v2027 = vpop.permute.xlu0 %2026
        %2028 = vrot.lane.b32.xlu0 %v1827, 122
        %v2029 = vpop.permute.xlu0 %2028
        %2030 = vrot.lane.b32.xlu0 %v1828, 122
        %v2031 = vpop.permute.xlu0 %2030
        %2032 = vrot.lane.b32.xlu0 %v1829, 122
        %v2033 = vpop.permute.xlu0 %2032
        %2034 = vrot.lane.b32.xlu0 %v1830, 122
        %v2035 = vpop.permute.xlu0 %2034
        %2036 = vrot.lane.b32.xlu0 %v1831, 122
        %v2037 = vpop.permute.xlu0 %2036
        %2038 = vrot.lane.b32.xlu0 %v1832, 122
        %v2039 = vpop.permute.xlu0 %2038
        %2040 = vrot.lane.b32.xlu0 %v1833, 122
        %v2041 = vpop.permute.xlu0 %2040
        %v2058 = vadd.f32 %v1994, %v2011
        %v2059 = vadd.f32 %v1995, %v2013
        %v2060 = vadd.f32 %v1996, %v2015
        %v2061 = vadd.f32 %v1997, %v2017
        %v2062 = vadd.f32 %v1998, %v2019
        %v2063 = vadd.f32 %v1999, %v2021
        %v2064 = vadd.f32 %v2000, %v2023
        %v2065 = vadd.f32 %v2001, %v2025
        %v2066 = vadd.f32 %v2002, %v2027
        %v2067 = vadd.f32 %v2003, %v2029
        %v2068 = vadd.f32 %v2004, %v2031
        %v2069 = vadd.f32 %v2005, %v2033
        %v2070 = vadd.f32 %v2006, %v2035
        %v2071 = vadd.f32 %v2007, %v2037
        %v2072 = vadd.f32 %v2008, %v2039
        %v2073 = vadd.f32 %v2009, %v2041
        %2074 = vrot.lane.b32.xlu0 %v1722, 121
        %v2075 = vpop.permute.xlu0 %2074
        %2076 = vrot.lane.b32.xlu0 %v1723, 121
        %v2077 = vpop.permute.xlu0 %2076
        %2078 = vrot.lane.b32.xlu0 %v1724, 121
        %v2079 = vpop.permute.xlu0 %2078
        %2080 = vrot.lane.b32.xlu0 %v1725, 121
        %v2081 = vpop.permute.xlu0 %2080
        %2082 = vrot.lane.b32.xlu0 %v1726, 121
        %v2083 = vpop.permute.xlu0 %2082
        %2084 = vrot.lane.b32.xlu0 %v1727, 121
        %v2085 = vpop.permute.xlu0 %2084
        %2086 = vrot.lane.b32.xlu0 %v1728, 121
        %v2087 = vpop.permute.xlu0 %2086
        %2088 = vrot.lane.b32.xlu0 %v1729, 121
        %v2089 = vpop.permute.xlu0 %2088
        %2090 = vrot.lane.b32.xlu0 %v1730, 121
        %v2091 = vpop.permute.xlu0 %2090
        %2092 = vrot.lane.b32.xlu0 %v1731, 121
        %v2093 = vpop.permute.xlu0 %2092
        %2094 = vrot.lane.b32.xlu0 %v1732, 121
        %v2095 = vpop.permute.xlu0 %2094
        %2096 = vrot.lane.b32.xlu0 %v1733, 121
        %v2097 = vpop.permute.xlu0 %2096
        %2098 = vrot.lane.b32.xlu0 %v1734, 121
        %v2099 = vpop.permute.xlu0 %2098
        %2100 = vrot.lane.b32.xlu0 %v1735, 121
        %v2101 = vpop.permute.xlu0 %2100
        %2102 = vrot.lane.b32.xlu0 %v1736, 121
        %v2103 = vpop.permute.xlu0 %2102
        %2104 = vrot.lane.b32.xlu0 %v1737, 121
        %v2105 = vpop.permute.xlu0 %2104
        %v2122 = vadd.f32 %v2058, %v2075
        %v2123 = vadd.f32 %v2059, %v2077
        %v2124 = vadd.f32 %v2060, %v2079
        %v2125 = vadd.f32 %v2061, %v2081
        %v2126 = vadd.f32 %v2062, %v2083
        %v2127 = vadd.f32 %v2063, %v2085
        %v2128 = vadd.f32 %v2064, %v2087
        %v2129 = vadd.f32 %v2065, %v2089
        %v2130 = vadd.f32 %v2066, %v2091
        %v2131 = vadd.f32 %v2067, %v2093
        %v2132 = vadd.f32 %v2068, %v2095
        %v2133 = vadd.f32 %v2069, %v2097
        %v2134 = vadd.f32 %v2070, %v2099
        %v2135 = vadd.f32 %v2071, %v2101
        %v2136 = vadd.f32 %v2072, %v2103
        %v2137 = vadd.f32 %v2073, %v2105
        %2138 = vrot.lane.b32.xlu0 %v1626, 120
        %v2139 = vpop.permute.xlu0 %2138
        %2140 = vrot.lane.b32.xlu0 %v1627, 120
        %v2141 = vpop.permute.xlu0 %2140
        %2142 = vrot.lane.b32.xlu0 %v1628, 120
        %v2143 = vpop.permute.xlu0 %2142
        %2144 = vrot.lane.b32.xlu0 %v1629, 120
        %v2145 = vpop.permute.xlu0 %2144
        %2146 = vrot.lane.b32.xlu0 %v1630, 120
        %v2147 = vpop.permute.xlu0 %2146
        %2148 = vrot.lane.b32.xlu0 %v1631, 120
        %v2149 = vpop.permute.xlu0 %2148
        %2150 = vrot.lane.b32.xlu0 %v1632, 120
        %v2151 = vpop.permute.xlu0 %2150
        %2152 = vrot.lane.b32.xlu0 %v1633, 120
        %v2153 = vpop.permute.xlu0 %2152
        %2154 = vrot.lane.b32.xlu0 %v1634, 120
        %v2155 = vpop.permute.xlu0 %2154
        %2156 = vrot.lane.b32.xlu0 %v1635, 120
        %v2157 = vpop.permute.xlu0 %2156
        %2158 = vrot.lane.b32.xlu0 %v1636, 120
        %v2159 = vpop.permute.xlu0 %2158
        %2160 = vrot.lane.b32.xlu0 %v1637, 120
        %v2161 = vpop.permute.xlu0 %2160
        %2162 = vrot.lane.b32.xlu0 %v1638, 120
        %v2163 = vpop.permute.xlu0 %2162
        %2164 = vrot.lane.b32.xlu0 %v1639, 120
        %v2165 = vpop.permute.xlu0 %2164
        %2166 = vrot.lane.b32.xlu0 %v1640, 120
        %v2167 = vpop.permute.xlu0 %2166
        %2168 = vrot.lane.b32.xlu0 %v1641, 120
        %v2169 = vpop.permute.xlu0 %2168
        %v2186 = vadd.f32 %v2122, %v2139
        %v2187 = vadd.f32 %v2123, %v2141
        %v2188 = vadd.f32 %v2124, %v2143
        %v2189 = vadd.f32 %v2125, %v2145
        %v2190 = vadd.f32 %v2126, %v2147
        %v2191 = vadd.f32 %v2127, %v2149
        %v2192 = vadd.f32 %v2128, %v2151
        %v2193 = vadd.f32 %v2129, %v2153
        %v2194 = vadd.f32 %v2130, %v2155
        %v2195 = vadd.f32 %v2131, %v2157
        %v2196 = vadd.f32 %v2132, %v2159
        %v2197 = vadd.f32 %v2133, %v2161
        %v2198 = vadd.f32 %v2134, %v2163
        %v2199 = vadd.f32 %v2135, %v2165
        %v2200 = vadd.f32 %v2136, %v2167
        %v2201 = vadd.f32 %v2137, %v2169
        %2202 = vrot.lane.b32.xlu0 %v1530, 119
        %v2203 = vpop.permute.xlu0 %2202
        %2204 = vrot.lane.b32.xlu0 %v1531, 119
        %v2205 = vpop.permute.xlu0 %2204
        %2206 = vrot.lane.b32.xlu0 %v1532, 119
        %v2207 = vpop.permute.xlu0 %2206
        %2208 = vrot.lane.b32.xlu0 %v1533, 119
        %v2209 = vpop.permute.xlu0 %2208
        %2210 = vrot.lane.b32.xlu0 %v1534, 119
        %v2211 = vpop.permute.xlu0 %2210
        %2212 = vrot.lane.b32.xlu0 %v1535, 119
        %v2213 = vpop.permute.xlu0 %2212
        %2214 = vrot.lane.b32.xlu0 %v1536, 119
        %v2215 = vpop.permute.xlu0 %2214
        %2216 = vrot.lane.b32.xlu0 %v1537, 119
        %v2217 = vpop.permute.xlu0 %2216
        %2218 = vrot.lane.b32.xlu0 %v1538, 119
        %v2219 = vpop.permute.xlu0 %2218
        %2220 = vrot.lane.b32.xlu0 %v1539, 119
        %v2221 = vpop.permute.xlu0 %2220
        %2222 = vrot.lane.b32.xlu0 %v1540, 119
        %v2223 = vpop.permute.xlu0 %2222
        %2224 = vrot.lane.b32.xlu0 %v1541, 119
        %v2225 = vpop.permute.xlu0 %2224
        %2226 = vrot.lane.b32.xlu0 %v1542, 119
        %v2227 = vpop.permute.xlu0 %2226
        %2228 = vrot.lane.b32.xlu0 %v1543, 119
        %v2229 = vpop.permute.xlu0 %2228
        %2230 = vrot.lane.b32.xlu0 %v1544, 119
        %v2231 = vpop.permute.xlu0 %2230
        %2232 = vrot.lane.b32.xlu0 %v1545, 119
        %v2233 = vpop.permute.xlu0 %2232
        %v2250 = vadd.f32 %v2186, %v2203
        %v2251 = vadd.f32 %v2187, %v2205
        %v2252 = vadd.f32 %v2188, %v2207
        %v2253 = vadd.f32 %v2189, %v2209
        %v2254 = vadd.f32 %v2190, %v2211
        %v2255 = vadd.f32 %v2191, %v2213
        %v2256 = vadd.f32 %v2192, %v2215
        %v2257 = vadd.f32 %v2193, %v2217
        %v2258 = vadd.f32 %v2194, %v2219
        %v2259 = vadd.f32 %v2195, %v2221
        %v2260 = vadd.f32 %v2196, %v2223
        %v2261 = vadd.f32 %v2197, %v2225
        %v2262 = vadd.f32 %v2198, %v2227
        %v2263 = vadd.f32 %v2199, %v2229
        %v2264 = vadd.f32 %v2200, %v2231
        %v2265 = vadd.f32 %v2201, %v2233
        %2282 = vrot.lane.b32.xlu0 %v1514, 118
        %v2283 = vpop.permute.xlu0 %2282
        %2284 = vrot.lane.b32.xlu0 %v1515, 118
        %v2285 = vpop.permute.xlu0 %2284
        %2286 = vrot.lane.b32.xlu0 %v1516, 118
        %v2287 = vpop.permute.xlu0 %2286
        %2288 = vrot.lane.b32.xlu0 %v1517, 118
        %v2289 = vpop.permute.xlu0 %2288
        %2290 = vrot.lane.b32.xlu0 %v1518, 118
        %v2291 = vpop.permute.xlu0 %2290
        %2292 = vrot.lane.b32.xlu0 %v1519, 118
        %v2293 = vpop.permute.xlu0 %2292
        %2294 = vrot.lane.b32.xlu0 %v1520, 118
        %v2295 = vpop.permute.xlu0 %2294
        %2296 = vrot.lane.b32.xlu0 %v1521, 118
        %v2297 = vpop.permute.xlu0 %2296
        %2298 = vrot.lane.b32.xlu0 %v1522, 118
        %v2299 = vpop.permute.xlu0 %2298
        %2300 = vrot.lane.b32.xlu0 %v1523, 118
        %v2301 = vpop.permute.xlu0 %2300
        %2302 = vrot.lane.b32.xlu0 %v1524, 118
        %v2303 = vpop.permute.xlu0 %2302
        %2304 = vrot.lane.b32.xlu0 %v1525, 118
        %v2305 = vpop.permute.xlu0 %2304
        %2306 = vrot.lane.b32.xlu0 %v1526, 118
        %v2307 = vpop.permute.xlu0 %2306
        %2308 = vrot.lane.b32.xlu0 %v1527, 118
        %v2309 = vpop.permute.xlu0 %2308
        %2310 = vrot.lane.b32.xlu0 %v1528, 118
        %v2311 = vpop.permute.xlu0 %2310
        %2312 = vrot.lane.b32.xlu0 %v1529, 118
        %v2313 = vpop.permute.xlu0 %2312
        %v2330 = vadd.f32 %v2250, %v2283
        %v2331 = vadd.f32 %v2251, %v2285
        %v2332 = vadd.f32 %v2252, %v2287
        %v2333 = vadd.f32 %v2253, %v2289
        %v2334 = vadd.f32 %v2254, %v2291
        %v2335 = vadd.f32 %v2255, %v2293
        %v2336 = vadd.f32 %v2256, %v2295
        %v2337 = vadd.f32 %v2257, %v2297
        %v2338 = vadd.f32 %v2258, %v2299
        %v2339 = vadd.f32 %v2259, %v2301
        %v2340 = vadd.f32 %v2260, %v2303
        %v2341 = vadd.f32 %v2261, %v2305
        %v2342 = vadd.f32 %v2262, %v2307
        %v2343 = vadd.f32 %v2263, %v2309
        %v2344 = vadd.f32 %v2264, %v2311
        %v2345 = vadd.f32 %v2265, %v2313
        %v2346 = vmul.f32 %v2330, 0.0010283801
        %v2347 = vmul.f32 %v2331, 0.0010283801
        %v2348 = vmul.f32 %v2334, 0.0010283801
        %v2349 = vmul.f32 %v2335, 0.0010283801
        %v2350 = vmul.f32 %v2338, 0.0010283801
        %v2351 = vmul.f32 %v2339, 0.0010283801
        %v2352 = vmul.f32 %v2342, 0.0010283801
        %v2353 = vmul.f32 %v2343, 0.0010283801
        %v2354 = vmul.f32 %v2330, 0.007598758
        %v2355 = vmul.f32 %v2331, 0.007598758
        %v2356 = vmul.f32 %v2332, 0.007598758
        %v2357 = vmul.f32 %v2334, 0.007598758
        %v2358 = vmul.f32 %v2335, 0.007598758
        %v2359 = vmul.f32 %v2336, 0.007598758
        %v2360 = vmul.f32 %v2338, 0.007598758
        %v2361 = vmul.f32 %v2339, 0.007598758
        %v2362 = vmul.f32 %v2340, 0.007598758
        %v2363 = vmul.f32 %v2342, 0.007598758
        %v2364 = vmul.f32 %v2343, 0.007598758
        %v2365 = vmul.f32 %v2344, 0.007598758
        %v2378 = vrot.slane %v2354, 1
        %v2379 = vrot.slane %v2355, 1
        %v2380 = vsel %vm1067, %v2378, %v2379
        %v2381 = vrot.slane %v2356, 1
        %v2382 = vsel %vm1067, %v2379, %v2381
        %v2383 = vrot.slane %v2357, 1
        %v2384 = vrot.slane %v2358, 1
        %v2385 = vsel %vm1067, %v2383, %v2384
        %v2386 = vrot.slane %v2359, 1
        %v2387 = vsel %vm1067, %v2384, %v2386
        %v2388 = vrot.slane %v2360, 1
        %v2389 = vrot.slane %v2361, 1
        %v2390 = vsel %vm1067, %v2388, %v2389
        %v2391 = vrot.slane %v2362, 1
        %v2392 = vsel %vm1067, %v2389, %v2391
        %v2393 = vrot.slane %v2363, 1
        %v2394 = vrot.slane %v2364, 1
        %v2395 = vsel %vm1067, %v2393, %v2394
        %v2396 = vrot.slane %v2365, 1
        %v2397 = vsel %vm1067, %v2394, %v2396
        %v2406 = vadd.f32 %v2346, %v2380
        %v2407 = vadd.f32 %v2347, %v2382
        %v2408 = vadd.f32 %v2348, %v2385
        %v2409 = vadd.f32 %v2349, %v2387
        %v2410 = vadd.f32 %v2350, %v2390
        %v2411 = vadd.f32 %v2351, %v2392
        %v2412 = vadd.f32 %v2352, %v2395
        %v2413 = vadd.f32 %v2353, %v2397
        %v2414 = vmul.f32 %v2330, 0.036000773
        %v2415 = vmul.f32 %v2331, 0.036000773
        %v2416 = vmul.f32 %v2332, 0.036000773
        %v2417 = vmul.f32 %v2334, 0.036000773
        %v2418 = vmul.f32 %v2335, 0.036000773
        %v2419 = vmul.f32 %v2336, 0.036000773
        %v2420 = vmul.f32 %v2338, 0.036000773
        %v2421 = vmul.f32 %v2339, 0.036000773
        %v2422 = vmul.f32 %v2340, 0.036000773
        %v2423 = vmul.f32 %v2342, 0.036000773
        %v2424 = vmul.f32 %v2343, 0.036000773
        %v2425 = vmul.f32 %v2344, 0.036000773
        %v2438 = vrot.slane %v2414, 2
        %v2439 = vrot.slane %v2415, 2
        %v2440 = vsel %vm1128, %v2438, %v2439
        %v2441 = vrot.slane %v2416, 2
        %v2442 = vsel %vm1128, %v2439, %v2441
        %v2443 = vrot.slane %v2417, 2
        %v2444 = vrot.slane %v2418, 2
        %v2445 = vsel %vm1128, %v2443, %v2444
        %v2446 = vrot.slane %v2419, 2
        %v2447 = vsel %vm1128, %v2444, %v2446
        %v2448 = vrot.slane %v2420, 2
        %v2449 = vrot.slane %v2421, 2
        %v2450 = vsel %vm1128, %v2448, %v2449
        %v2451 = vrot.slane %v2422, 2
        %v2452 = vsel %vm1128, %v2449, %v2451
        %v2453 = vrot.slane %v2423, 2
        %v2454 = vrot.slane %v2424, 2
        %v2455 = vsel %vm1128, %v2453, %v2454
        %v2456 = vrot.slane %v2425, 2
        %v2457 = vsel %vm1128, %v2454, %v2456
        %v2466 = vadd.f32 %v2406, %v2440
        %v2467 = vadd.f32 %v2407, %v2442
        %v2468 = vadd.f32 %v2408, %v2445
        %v2469 = vadd.f32 %v2409, %v2447
        %v2470 = vadd.f32 %v2410, %v2450
        %v2471 = vadd.f32 %v2411, %v2452
        %v2472 = vadd.f32 %v2412, %v2455
        %v2473 = vadd.f32 %v2413, %v2457
        %v2474 = vmul.f32 %v2330, 0.10936069
        %v2475 = vmul.f32 %v2331, 0.10936069
        %v2476 = vmul.f32 %v2332, 0.10936069
        %v2477 = vmul.f32 %v2334, 0.10936069
        %v2478 = vmul.f32 %v2335, 0.10936069
        %v2479 = vmul.f32 %v2336, 0.10936069
        %v2480 = vmul.f32 %v2338, 0.10936069
        %v2481 = vmul.f32 %v2339, 0.10936069
        %v2482 = vmul.f32 %v2340, 0.10936069
        %v2483 = vmul.f32 %v2342, 0.10936069
        %v2484 = vmul.f32 %v2343, 0.10936069
        %v2485 = vmul.f32 %v2344, 0.10936069
        %v2498 = vrot.slane %v2474, 3
        %v2499 = vrot.slane %v2475, 3
        %v2500 = vsel %vm1189, %v2498, %v2499
        %v2501 = vrot.slane %v2476, 3
        %v2502 = vsel %vm1189, %v2499, %v2501
        %v2503 = vrot.slane %v2477, 3
        %v2504 = vrot.slane %v2478, 3
        %v2505 = vsel %vm1189, %v2503, %v2504
        %v2506 = vrot.slane %v2479, 3
        %v2507 = vsel %vm1189, %v2504, %v2506
        %v2508 = vrot.slane %v2480, 3
        %v2509 = vrot.slane %v2481, 3
        %v2510 = vsel %vm1189, %v2508, %v2509
        %v2511 = vrot.slane %v2482, 3
        %v2512 = vsel %vm1189, %v2509, %v2511
        %v2513 = vrot.slane %v2483, 3
        %v2514 = vrot.slane %v2484, 3
        %v2515 = vsel %vm1189, %v2513, %v2514
        %v2516 = vrot.slane %v2485, 3
        %v2517 = vsel %vm1189, %v2514, %v2516
        %v2526 = vadd.f32 %v2466, %v2500
        %v2527 = vadd.f32 %v2467, %v2502
        %v2528 = vadd.f32 %v2468, %v2505
        %v2529 = vadd.f32 %v2469, %v2507
        %v2530 = vadd.f32 %v2470, %v2510
        %v2531 = vadd.f32 %v2471, %v2512
        %v2532 = vadd.f32 %v2472, %v2515
        %v2533 = vadd.f32 %v2473, %v2517
        %v2534 = vmul.f32 %v2330, 0.21300554
        %v2535 = vmul.f32 %v2331, 0.21300554
        %v2536 = vmul.f32 %v2332, 0.21300554
        %v2537 = vmul.f32 %v2334, 0.21300554
        %v2538 = vmul.f32 %v2335, 0.21300554
        %v2539 = vmul.f32 %v2336, 0.21300554
        %v2540 = vmul.f32 %v2338, 0.21300554
        %v2541 = vmul.f32 %v2339, 0.21300554
        %v2542 = vmul.f32 %v2340, 0.21300554
        %v2543 = vmul.f32 %v2342, 0.21300554
        %v2544 = vmul.f32 %v2343, 0.21300554
        %v2545 = vmul.f32 %v2344, 0.21300554
        %v2558 = vrot.slane %v2534, 4
        %v2559 = vrot.slane %v2535, 4
        %v2560 = vsel %vm1250, %v2558, %v2559
        %v2561 = vrot.slane %v2536, 4
        %v2562 = vsel %vm1250, %v2559, %v2561
        %v2563 = vrot.slane %v2537, 4
        %v2564 = vrot.slane %v2538, 4
        %v2565 = vsel %vm1250, %v2563, %v2564
        %v2566 = vrot.slane %v2539, 4
        %v2567 = vsel %vm1250, %v2564, %v2566
        %v2568 = vrot.slane %v2540, 4
        %v2569 = vrot.slane %v2541, 4
        %v2570 = vsel %vm1250, %v2568, %v2569
        %v2571 = vrot.slane %v2542, 4
        %v2572 = vsel %vm1250, %v2569, %v2571
        %v2573 = vrot.slane %v2543, 4
        %v2574 = vrot.slane %v2544, 4
        %v2575 = vsel %vm1250, %v2573, %v2574
        %v2576 = vrot.slane %v2545, 4
        %v2577 = vsel %vm1250, %v2574, %v2576
        %v2586 = vadd.f32 %v2526, %v2560
        %v2587 = vadd.f32 %v2527, %v2562
        %v2588 = vadd.f32 %v2528, %v2565
        %v2589 = vadd.f32 %v2529, %v2567
        %v2590 = vadd.f32 %v2530, %v2570
        %v2591 = vadd.f32 %v2531, %v2572
        %v2592 = vadd.f32 %v2532, %v2575
        %v2593 = vadd.f32 %v2533, %v2577
        %v2594 = vmul.f32 %v2330, 0.26601171
        %v2595 = vmul.f32 %v2331, 0.26601171
        %v2596 = vmul.f32 %v2332, 0.26601171
        %v2597 = vmul.f32 %v2334, 0.26601171
        %v2598 = vmul.f32 %v2335, 0.26601171
        %v2599 = vmul.f32 %v2336, 0.26601171
        %v2600 = vmul.f32 %v2338, 0.26601171
        %v2601 = vmul.f32 %v2339, 0.26601171
        %v2602 = vmul.f32 %v2340, 0.26601171
        %v2603 = vmul.f32 %v2342, 0.26601171
        %v2604 = vmul.f32 %v2343, 0.26601171
        %v2605 = vmul.f32 %v2344, 0.26601171
        %v2618 = vrot.slane %v2594, 5
        %v2619 = vrot.slane %v2595, 5
        %v2620 = vsel %vm1311, %v2618, %v2619
        %v2621 = vrot.slane %v2596, 5
        %v2622 = vsel %vm1311, %v2619, %v2621
        %v2623 = vrot.slane %v2597, 5
        %v2624 = vrot.slane %v2598, 5
        %v2625 = vsel %vm1311, %v2623, %v2624
        %v2626 = vrot.slane %v2599, 5
        %v2627 = vsel %vm1311, %v2624, %v2626
        %v2628 = vrot.slane %v2600, 5
        %v2629 = vrot.slane %v2601, 5
        %v2630 = vsel %vm1311, %v2628, %v2629
        %v2631 = vrot.slane %v2602, 5
        %v2632 = vsel %vm1311, %v2629, %v2631
        %v2633 = vrot.slane %v2603, 5
        %v2634 = vrot.slane %v2604, 5
        %v2635 = vsel %vm1311, %v2633, %v2634
        %v2636 = vrot.slane %v2605, 5
        %v2637 = vsel %vm1311, %v2634, %v2636
        %v2646 = vadd.f32 %v2586, %v2620
        %v2647 = vadd.f32 %v2587, %v2622
        %v2648 = vadd.f32 %v2588, %v2625
        %v2649 = vadd.f32 %v2589, %v2627
        %v2650 = vadd.f32 %v2590, %v2630
        %v2651 = vadd.f32 %v2591, %v2632
        %v2652 = vadd.f32 %v2592, %v2635
        %v2653 = vadd.f32 %v2593, %v2637
        %v2654 = vrot.slane %v2534, 6
        %v2655 = vrot.slane %v2535, 6
        %v2656 = vsel %vm1348, %v2654, %v2655
        %v2657 = vrot.slane %v2536, 6
        %v2658 = vsel %vm1348, %v2655, %v2657
        %v2659 = vrot.slane %v2537, 6
        %v2660 = vrot.slane %v2538, 6
        %v2661 = vsel %vm1348, %v2659, %v2660
        %v2662 = vrot.slane %v2539, 6
        %v2663 = vsel %vm1348, %v2660, %v2662
        %v2664 = vrot.slane %v2540, 6
        %v2665 = vrot.slane %v2541, 6
        %v2666 = vsel %vm1348, %v2664, %v2665
        %v2667 = vrot.slane %v2542, 6
        %v2668 = vsel %vm1348, %v2665, %v2667
        %v2669 = vrot.slane %v2543, 6
        %v2670 = vrot.slane %v2544, 6
        %v2671 = vsel %vm1348, %v2669, %v2670
        %v2672 = vrot.slane %v2545, 6
        %v2673 = vsel %vm1348, %v2670, %v2672
        %v2682 = vadd.f32 %v2646, %v2656
        %v2683 = vadd.f32 %v2647, %v2658
        %v2684 = vadd.f32 %v2648, %v2661
        %v2685 = vadd.f32 %v2649, %v2663
        %v2686 = vadd.f32 %v2650, %v2666
        %v2687 = vadd.f32 %v2651, %v2668
        %v2688 = vadd.f32 %v2652, %v2671
        %v2689 = vadd.f32 %v2653, %v2673
        %v2690 = vrot.slane %v2474, 7
        %v2691 = vrot.slane %v2475, 7
        %v2692 = vsel %vm1385, %v2690, %v2691
        %v2693 = vrot.slane %v2476, 7
        %v2694 = vsel %vm1385, %v2691, %v2693
        %v2695 = vrot.slane %v2477, 7
        %v2696 = vrot.slane %v2478, 7
        %v2697 = vsel %vm1385, %v2695, %v2696
        %v2698 = vrot.slane %v2479, 7
        %v2699 = vsel %vm1385, %v2696, %v2698
        %v2700 = vrot.slane %v2480, 7
        %v2701 = vrot.slane %v2481, 7
        %v2702 = vsel %vm1385, %v2700, %v2701
        %v2703 = vrot.slane %v2482, 7
        %v2704 = vsel %vm1385, %v2701, %v2703
        %v2705 = vrot.slane %v2483, 7
        %v2706 = vrot.slane %v2484, 7
        %v2707 = vsel %vm1385, %v2705, %v2706
        %v2708 = vrot.slane %v2485, 7
        %v2709 = vsel %vm1385, %v2706, %v2708
        %v2718 = vadd.f32 %v2682, %v2692
        %v2719 = vadd.f32 %v2683, %v2694
        %v2720 = vadd.f32 %v2684, %v2697
        %v2721 = vadd.f32 %v2685, %v2699
        %v2722 = vadd.f32 %v2686, %v2702
        %v2723 = vadd.f32 %v2687, %v2704
        %v2724 = vadd.f32 %v2688, %v2707
        %v2725 = vadd.f32 %v2689, %v2709
        %v2726 = vadd.f32 %v2718, %v2415
        %v2727 = vadd.f32 %v2719, %v2416
        %v2728 = vadd.f32 %v2720, %v2418
        %v2729 = vadd.f32 %v2721, %v2419
        %v2730 = vadd.f32 %v2722, %v2421
        %v2731 = vadd.f32 %v2723, %v2422
        %v2732 = vadd.f32 %v2724, %v2424
        %v2733 = vadd.f32 %v2725, %v2425
        %v2734 = vmul.f32 %v2333, 0.007598758
        %v2735 = vmul.f32 %v2337, 0.007598758
        %v2736 = vmul.f32 %v2341, 0.007598758
        %v2737 = vmul.f32 %v2345, 0.007598758
        %v2742 = vrot.slane %v2734, 1
        %v2743 = vsel %vm1067, %v2381, %v2742
        %v2744 = vrot.slane %v2735, 1
        %v2745 = vsel %vm1067, %v2386, %v2744
        %v2746 = vrot.slane %v2736, 1
        %v2747 = vsel %vm1067, %v2391, %v2746
        %v2748 = vrot.slane %v2737, 1
        %v2749 = vsel %vm1067, %v2396, %v2748
        %v2754 = vadd.f32 %v2726, %v2382
        %v2755 = vadd.f32 %v2727, %v2743
        %v2756 = vadd.f32 %v2728, %v2387
        %v2757 = vadd.f32 %v2729, %v2745
        %v2758 = vadd.f32 %v2730, %v2392
        %v2759 = vadd.f32 %v2731, %v2747
        %v2760 = vadd.f32 %v2732, %v2397
        %v2761 = vadd.f32 %v2733, %v2749
        %v2762 = vmul.f32 %v2332, 0.0010283801
        %v2763 = vmul.f32 %v2333, 0.0010283801
        %v2764 = vmul.f32 %v2336, 0.0010283801
        %v2765 = vmul.f32 %v2337, 0.0010283801
        %v2766 = vmul.f32 %v2340, 0.0010283801
        %v2767 = vmul.f32 %v2341, 0.0010283801
        %v2768 = vmul.f32 %v2344, 0.0010283801
        %v2769 = vmul.f32 %v2345, 0.0010283801
        %v2782 = vrot.slane %v2347, 2
        %v2783 = vrot.slane %v2762, 2
        %v2784 = vsel %vm1128, %v2782, %v2783
        %v2785 = vrot.slane %v2763, 2
        %v2786 = vsel %vm1128, %v2783, %v2785
        %v2787 = vrot.slane %v2349, 2
        %v2788 = vrot.slane %v2764, 2
        %v2789 = vsel %vm1128, %v2787, %v2788
        %v2790 = vrot.slane %v2765, 2
        %v2791 = vsel %vm1128, %v2788, %v2790
        %v2792 = vrot.slane %v2351, 2
        %v2793 = vrot.slane %v2766, 2
        %v2794 = vsel %vm1128, %v2792, %v2793
        %v2795 = vrot.slane %v2767, 2
        %v2796 = vsel %vm1128, %v2793, %v2795
        %v2797 = vrot.slane %v2353, 2
        %v2798 = vrot.slane %v2768, 2
        %v2799 = vsel %vm1128, %v2797, %v2798
        %v2800 = vrot.slane %v2769, 2
        %v2801 = vsel %vm1128, %v2798, %v2800
        %v2810 = vadd.f32 %v2754, %v2784
        %v2811 = vadd.f32 %v2755, %v2786
        %v2812 = vadd.f32 %v2756, %v2789
        %v2813 = vadd.f32 %v2757, %v2791
        %v2814 = vadd.f32 %v2758, %v2794
        %v2815 = vadd.f32 %v2759, %v2796
        %v2816 = vadd.f32 %v2760, %v2799
        %v2817 = vadd.f32 %v2761, %v2801
        %v2818 = vmul.f32 %v171, %v171
        %v2819 = vmul.f32 %v172, %v172
        %v2820 = vmul.f32 %v173, %v173
        %v2821 = vmul.f32 %v174, %v174
        %v2822 = vmul.f32 %v175, %v175
        %v2823 = vmul.f32 %v176, %v176
        %v2824 = vmul.f32 %v177, %v177
        %v2825 = vmul.f32 %v178, %v178
        %v2826 = vmul.f32 %v179, %v179
        %v2827 = vmul.f32 %v180, %v180
        %v2828 = vmul.f32 %v181, %v181
        %v2829 = vmul.f32 %v182, %v182
        %v2830 = vmul.f32 %v183, %v183
        %v2831 = vmul.f32 %v184, %v184
        %v2832 = vmul.f32 %v185, %v185
        %v2833 = vmul.f32 %v186, %v186
        %v2834 = vmul.f32 %v2818, 0.0010283801
        %v2835 = vmul.f32 %v2819, 0.0010283801
        %v2836 = vmul.f32 %v2820, 0.0010283801
        %v2837 = vmul.f32 %v2821, 0.0010283801
        %v2838 = vmul.f32 %v2822, 0.0010283801
        %v2839 = vmul.f32 %v2823, 0.0010283801
        %v2840 = vmul.f32 %v2824, 0.0010283801
        %v2841 = vmul.f32 %v2825, 0.0010283801
        %v2842 = vmul.f32 %v2826, 0.0010283801
        %v2843 = vmul.f32 %v2827, 0.0010283801
        %v2844 = vmul.f32 %v2828, 0.0010283801
        %v2845 = vmul.f32 %v2829, 0.0010283801
        %v2846 = vmul.f32 %v2830, 0.0010283801
        %v2847 = vmul.f32 %v2831, 0.0010283801
        %v2848 = vmul.f32 %v2832, 0.0010283801
        %v2849 = vmul.f32 %v2833, 0.0010283801
        %v2850 = vmul.f32 %v2818, 0.007598758
        %v2851 = vmul.f32 %v2819, 0.007598758
        %v2852 = vmul.f32 %v2820, 0.007598758
        %v2853 = vmul.f32 %v2821, 0.007598758
        %v2854 = vmul.f32 %v2822, 0.007598758
        %v2855 = vmul.f32 %v2823, 0.007598758
        %v2856 = vmul.f32 %v2824, 0.007598758
        %v2857 = vmul.f32 %v2825, 0.007598758
        %v2858 = vmul.f32 %v2826, 0.007598758
        %v2859 = vmul.f32 %v2827, 0.007598758
        %v2860 = vmul.f32 %v2828, 0.007598758
        %v2861 = vmul.f32 %v2829, 0.007598758
        %v2862 = vmul.f32 %v2830, 0.007598758
        %v2863 = vmul.f32 %v2831, 0.007598758
        %v2864 = vmul.f32 %v2832, 0.007598758
        %v2865 = vmul.f32 %v2833, 0.007598758
        %2882 = vrot.lane.b32.xlu0 %v2850, 127
        %v2883 = vpop.permute.xlu0 %2882
        %2884 = vrot.lane.b32.xlu0 %v2851, 127
        %v2885 = vpop.permute.xlu0 %2884
        %2886 = vrot.lane.b32.xlu0 %v2852, 127
        %v2887 = vpop.permute.xlu0 %2886
        %2888 = vrot.lane.b32.xlu0 %v2853, 127
        %v2889 = vpop.permute.xlu0 %2888
        %2890 = vrot.lane.b32.xlu0 %v2854, 127
        %v2891 = vpop.permute.xlu0 %2890
        %2892 = vrot.lane.b32.xlu0 %v2855, 127
        %v2893 = vpop.permute.xlu0 %2892
        %2894 = vrot.lane.b32.xlu0 %v2856, 127
        %v2895 = vpop.permute.xlu0 %2894
        %2896 = vrot.lane.b32.xlu0 %v2857, 127
        %v2897 = vpop.permute.xlu0 %2896
        %2898 = vrot.lane.b32.xlu0 %v2858, 127
        %v2899 = vpop.permute.xlu0 %2898
        %2900 = vrot.lane.b32.xlu0 %v2859, 127
        %v2901 = vpop.permute.xlu0 %2900
        %2902 = vrot.lane.b32.xlu0 %v2860, 127
        %v2903 = vpop.permute.xlu0 %2902
        %2904 = vrot.lane.b32.xlu0 %v2861, 127
        %v2905 = vpop.permute.xlu0 %2904
        %2906 = vrot.lane.b32.xlu0 %v2862, 127
        %v2907 = vpop.permute.xlu0 %2906
        %2908 = vrot.lane.b32.xlu0 %v2863, 127
        %v2909 = vpop.permute.xlu0 %2908
        %2910 = vrot.lane.b32.xlu0 %v2864, 127
        %v2911 = vpop.permute.xlu0 %2910
        %2912 = vrot.lane.b32.xlu0 %v2865, 127
        %v2913 = vpop.permute.xlu0 %2912
        %v2930 = vadd.f32 %v2834, %v2883
        %v2931 = vadd.f32 %v2835, %v2885
        %v2932 = vadd.f32 %v2836, %v2887
        %v2933 = vadd.f32 %v2837, %v2889
        %v2934 = vadd.f32 %v2838, %v2891
        %v2935 = vadd.f32 %v2839, %v2893
        %v2936 = vadd.f32 %v2840, %v2895
        %v2937 = vadd.f32 %v2841, %v2897
        %v2938 = vadd.f32 %v2842, %v2899
        %v2939 = vadd.f32 %v2843, %v2901
        %v2940 = vadd.f32 %v2844, %v2903
        %v2941 = vadd.f32 %v2845, %v2905
        %v2942 = vadd.f32 %v2846, %v2907
        %v2943 = vadd.f32 %v2847, %v2909
        %v2944 = vadd.f32 %v2848, %v2911
        %v2945 = vadd.f32 %v2849, %v2913
        %v2946 = vmul.f32 %v2818, 0.036000773
        %v2947 = vmul.f32 %v2819, 0.036000773
        %v2948 = vmul.f32 %v2820, 0.036000773
        %v2949 = vmul.f32 %v2821, 0.036000773
        %v2950 = vmul.f32 %v2822, 0.036000773
        %v2951 = vmul.f32 %v2823, 0.036000773
        %v2952 = vmul.f32 %v2824, 0.036000773
        %v2953 = vmul.f32 %v2825, 0.036000773
        %v2954 = vmul.f32 %v2826, 0.036000773
        %v2955 = vmul.f32 %v2827, 0.036000773
        %v2956 = vmul.f32 %v2828, 0.036000773
        %v2957 = vmul.f32 %v2829, 0.036000773
        %v2958 = vmul.f32 %v2830, 0.036000773
        %v2959 = vmul.f32 %v2831, 0.036000773
        %v2960 = vmul.f32 %v2832, 0.036000773
        %v2961 = vmul.f32 %v2833, 0.036000773
        %2978 = vrot.lane.b32.xlu0 %v2946, 126
        %v2979 = vpop.permute.xlu0 %2978
        %2980 = vrot.lane.b32.xlu0 %v2947, 126
        %v2981 = vpop.permute.xlu0 %2980
        %2982 = vrot.lane.b32.xlu0 %v2948, 126
        %v2983 = vpop.permute.xlu0 %2982
        %2984 = vrot.lane.b32.xlu0 %v2949, 126
        %v2985 = vpop.permute.xlu0 %2984
        %2986 = vrot.lane.b32.xlu0 %v2950, 126
        %v2987 = vpop.permute.xlu0 %2986
        %2988 = vrot.lane.b32.xlu0 %v2951, 126
        %v2989 = vpop.permute.xlu0 %2988
        %2990 = vrot.lane.b32.xlu0 %v2952, 126
        %v2991 = vpop.permute.xlu0 %2990
        %2992 = vrot.lane.b32.xlu0 %v2953, 126
        %v2993 = vpop.permute.xlu0 %2992
        %2994 = vrot.lane.b32.xlu0 %v2954, 126
        %v2995 = vpop.permute.xlu0 %2994
        %2996 = vrot.lane.b32.xlu0 %v2955, 126
        %v2997 = vpop.permute.xlu0 %2996
        %2998 = vrot.lane.b32.xlu0 %v2956, 126
        %v2999 = vpop.permute.xlu0 %2998
        %3000 = vrot.lane.b32.xlu0 %v2957, 126
        %v3001 = vpop.permute.xlu0 %3000
        %3002 = vrot.lane.b32.xlu0 %v2958, 126
        %v3003 = vpop.permute.xlu0 %3002
        %3004 = vrot.lane.b32.xlu0 %v2959, 126
        %v3005 = vpop.permute.xlu0 %3004
        %3006 = vrot.lane.b32.xlu0 %v2960, 126
        %v3007 = vpop.permute.xlu0 %3006
        %3008 = vrot.lane.b32.xlu0 %v2961, 126
        %v3009 = vpop.permute.xlu0 %3008
        %v3026 = vadd.f32 %v2930, %v2979
        %v3027 = vadd.f32 %v2931, %v2981
        %v3028 = vadd.f32 %v2932, %v2983
        %v3029 = vadd.f32 %v2933, %v2985
        %v3030 = vadd.f32 %v2934, %v2987
        %v3031 = vadd.f32 %v2935, %v2989
        %v3032 = vadd.f32 %v2936, %v2991
        %v3033 = vadd.f32 %v2937, %v2993
        %v3034 = vadd.f32 %v2938, %v2995
        %v3035 = vadd.f32 %v2939, %v2997
        %v3036 = vadd.f32 %v2940, %v2999
        %v3037 = vadd.f32 %v2941, %v3001
        %v3038 = vadd.f32 %v2942, %v3003
        %v3039 = vadd.f32 %v2943, %v3005
        %v3040 = vadd.f32 %v2944, %v3007
        %v3041 = vadd.f32 %v2945, %v3009
        %v3042 = vmul.f32 %v2818, 0.10936069
        %v3043 = vmul.f32 %v2819, 0.10936069
        %v3044 = vmul.f32 %v2820, 0.10936069
        %v3045 = vmul.f32 %v2821, 0.10936069
        %v3046 = vmul.f32 %v2822, 0.10936069
        %v3047 = vmul.f32 %v2823, 0.10936069
        %v3048 = vmul.f32 %v2824, 0.10936069
        %v3049 = vmul.f32 %v2825, 0.10936069
        %v3050 = vmul.f32 %v2826, 0.10936069
        %v3051 = vmul.f32 %v2827, 0.10936069
        %v3052 = vmul.f32 %v2828, 0.10936069
        %v3053 = vmul.f32 %v2829, 0.10936069
        %v3054 = vmul.f32 %v2830, 0.10936069
        %v3055 = vmul.f32 %v2831, 0.10936069
        %v3056 = vmul.f32 %v2832, 0.10936069
        %v3057 = vmul.f32 %v2833, 0.10936069
        %3074 = vrot.lane.b32.xlu0 %v3042, 125
        %v3075 = vpop.permute.xlu0 %3074
        %3076 = vrot.lane.b32.xlu0 %v3043, 125
        %v3077 = vpop.permute.xlu0 %3076
        %3078 = vrot.lane.b32.xlu0 %v3044, 125
        %v3079 = vpop.permute.xlu0 %3078
        %3080 = vrot.lane.b32.xlu0 %v3045, 125
        %v3081 = vpop.permute.xlu0 %3080
        %3082 = vrot.lane.b32.xlu0 %v3046, 125
        %v3083 = vpop.permute.xlu0 %3082
        %3084 = vrot.lane.b32.xlu0 %v3047, 125
        %v3085 = vpop.permute.xlu0 %3084
        %3086 = vrot.lane.b32.xlu0 %v3048, 125
        %v3087 = vpop.permute.xlu0 %3086
        %3088 = vrot.lane.b32.xlu0 %v3049, 125
        %v3089 = vpop.permute.xlu0 %3088
        %3090 = vrot.lane.b32.xlu0 %v3050, 125
        %v3091 = vpop.permute.xlu0 %3090
        %3092 = vrot.lane.b32.xlu0 %v3051, 125
        %v3093 = vpop.permute.xlu0 %3092
        %3094 = vrot.lane.b32.xlu0 %v3052, 125
        %v3095 = vpop.permute.xlu0 %3094
        %3096 = vrot.lane.b32.xlu0 %v3053, 125
        %v3097 = vpop.permute.xlu0 %3096
        %3098 = vrot.lane.b32.xlu0 %v3054, 125
        %v3099 = vpop.permute.xlu0 %3098
        %3100 = vrot.lane.b32.xlu0 %v3055, 125
        %v3101 = vpop.permute.xlu0 %3100
        %3102 = vrot.lane.b32.xlu0 %v3056, 125
        %v3103 = vpop.permute.xlu0 %3102
        %3104 = vrot.lane.b32.xlu0 %v3057, 125
        %v3105 = vpop.permute.xlu0 %3104
        %v3122 = vadd.f32 %v3026, %v3075
        %v3123 = vadd.f32 %v3027, %v3077
        %v3124 = vadd.f32 %v3028, %v3079
        %v3125 = vadd.f32 %v3029, %v3081
        %v3126 = vadd.f32 %v3030, %v3083
        %v3127 = vadd.f32 %v3031, %v3085
        %v3128 = vadd.f32 %v3032, %v3087
        %v3129 = vadd.f32 %v3033, %v3089
        %v3130 = vadd.f32 %v3034, %v3091
        %v3131 = vadd.f32 %v3035, %v3093
        %v3132 = vadd.f32 %v3036, %v3095
        %v3133 = vadd.f32 %v3037, %v3097
        %v3134 = vadd.f32 %v3038, %v3099
        %v3135 = vadd.f32 %v3039, %v3101
        %v3136 = vadd.f32 %v3040, %v3103
        %v3137 = vadd.f32 %v3041, %v3105
        %v3138 = vmul.f32 %v2818, 0.21300554
        %v3139 = vmul.f32 %v2819, 0.21300554
        %v3140 = vmul.f32 %v2820, 0.21300554
        %v3141 = vmul.f32 %v2821, 0.21300554
        %v3142 = vmul.f32 %v2822, 0.21300554
        %v3143 = vmul.f32 %v2823, 0.21300554
        %v3144 = vmul.f32 %v2824, 0.21300554
        %v3145 = vmul.f32 %v2825, 0.21300554
        %v3146 = vmul.f32 %v2826, 0.21300554
        %v3147 = vmul.f32 %v2827, 0.21300554
        %v3148 = vmul.f32 %v2828, 0.21300554
        %v3149 = vmul.f32 %v2829, 0.21300554
        %v3150 = vmul.f32 %v2830, 0.21300554
        %v3151 = vmul.f32 %v2831, 0.21300554
        %v3152 = vmul.f32 %v2832, 0.21300554
        %v3153 = vmul.f32 %v2833, 0.21300554
        %3170 = vrot.lane.b32.xlu0 %v3138, 124
        %v3171 = vpop.permute.xlu0 %3170
        %3172 = vrot.lane.b32.xlu0 %v3139, 124
        %v3173 = vpop.permute.xlu0 %3172
        %3174 = vrot.lane.b32.xlu0 %v3140, 124
        %v3175 = vpop.permute.xlu0 %3174
        %3176 = vrot.lane.b32.xlu0 %v3141, 124
        %v3177 = vpop.permute.xlu0 %3176
        %3178 = vrot.lane.b32.xlu0 %v3142, 124
        %v3179 = vpop.permute.xlu0 %3178
        %3180 = vrot.lane.b32.xlu0 %v3143, 124
        %v3181 = vpop.permute.xlu0 %3180
        %3182 = vrot.lane.b32.xlu0 %v3144, 124
        %v3183 = vpop.permute.xlu0 %3182
        %3184 = vrot.lane.b32.xlu0 %v3145, 124
        %v3185 = vpop.permute.xlu0 %3184
        %3186 = vrot.lane.b32.xlu0 %v3146, 124
        %v3187 = vpop.permute.xlu0 %3186
        %3188 = vrot.lane.b32.xlu0 %v3147, 124
        %v3189 = vpop.permute.xlu0 %3188
        %3190 = vrot.lane.b32.xlu0 %v3148, 124
        %v3191 = vpop.permute.xlu0 %3190
        %3192 = vrot.lane.b32.xlu0 %v3149, 124
        %v3193 = vpop.permute.xlu0 %3192
        %3194 = vrot.lane.b32.xlu0 %v3150, 124
        %v3195 = vpop.permute.xlu0 %3194
        %3196 = vrot.lane.b32.xlu0 %v3151, 124
        %v3197 = vpop.permute.xlu0 %3196
        %3198 = vrot.lane.b32.xlu0 %v3152, 124
        %v3199 = vpop.permute.xlu0 %3198
        %3200 = vrot.lane.b32.xlu0 %v3153, 124
        %v3201 = vpop.permute.xlu0 %3200
        %v3218 = vadd.f32 %v3122, %v3171
        %v3219 = vadd.f32 %v3123, %v3173
        %v3220 = vadd.f32 %v3124, %v3175
        %v3221 = vadd.f32 %v3125, %v3177
        %v3222 = vadd.f32 %v3126, %v3179
        %v3223 = vadd.f32 %v3127, %v3181
        %v3224 = vadd.f32 %v3128, %v3183
        %v3225 = vadd.f32 %v3129, %v3185
        %v3226 = vadd.f32 %v3130, %v3187
        %v3227 = vadd.f32 %v3131, %v3189
        %v3228 = vadd.f32 %v3132, %v3191
        %v3229 = vadd.f32 %v3133, %v3193
        %v3230 = vadd.f32 %v3134, %v3195
        %v3231 = vadd.f32 %v3135, %v3197
        %v3232 = vadd.f32 %v3136, %v3199
        %v3233 = vadd.f32 %v3137, %v3201
        %v3234 = vmul.f32 %v2818, 0.26601171
        %v3235 = vmul.f32 %v2819, 0.26601171
        %v3236 = vmul.f32 %v2820, 0.26601171
        %v3237 = vmul.f32 %v2821, 0.26601171
        %v3238 = vmul.f32 %v2822, 0.26601171
        %v3239 = vmul.f32 %v2823, 0.26601171
        %v3240 = vmul.f32 %v2824, 0.26601171
        %v3241 = vmul.f32 %v2825, 0.26601171
        %v3242 = vmul.f32 %v2826, 0.26601171
        %v3243 = vmul.f32 %v2827, 0.26601171
        %v3244 = vmul.f32 %v2828, 0.26601171
        %v3245 = vmul.f32 %v2829, 0.26601171
        %v3246 = vmul.f32 %v2830, 0.26601171
        %v3247 = vmul.f32 %v2831, 0.26601171
        %v3248 = vmul.f32 %v2832, 0.26601171
        %v3249 = vmul.f32 %v2833, 0.26601171
        %3266 = vrot.lane.b32.xlu0 %v3234, 123
        %v3267 = vpop.permute.xlu0 %3266
        %3268 = vrot.lane.b32.xlu0 %v3235, 123
        %v3269 = vpop.permute.xlu0 %3268
        %3270 = vrot.lane.b32.xlu0 %v3236, 123
        %v3271 = vpop.permute.xlu0 %3270
        %3272 = vrot.lane.b32.xlu0 %v3237, 123
        %v3273 = vpop.permute.xlu0 %3272
        %3274 = vrot.lane.b32.xlu0 %v3238, 123
        %v3275 = vpop.permute.xlu0 %3274
        %3276 = vrot.lane.b32.xlu0 %v3239, 123
        %v3277 = vpop.permute.xlu0 %3276
        %3278 = vrot.lane.b32.xlu0 %v3240, 123
        %v3279 = vpop.permute.xlu0 %3278
        %3280 = vrot.lane.b32.xlu0 %v3241, 123
        %v3281 = vpop.permute.xlu0 %3280
        %3282 = vrot.lane.b32.xlu0 %v3242, 123
        %v3283 = vpop.permute.xlu0 %3282
        %3284 = vrot.lane.b32.xlu0 %v3243, 123
        %v3285 = vpop.permute.xlu0 %3284
        %3286 = vrot.lane.b32.xlu0 %v3244, 123
        %v3287 = vpop.permute.xlu0 %3286
        %3288 = vrot.lane.b32.xlu0 %v3245, 123
        %v3289 = vpop.permute.xlu0 %3288
        %3290 = vrot.lane.b32.xlu0 %v3246, 123
        %v3291 = vpop.permute.xlu0 %3290
        %3292 = vrot.lane.b32.xlu0 %v3247, 123
        %v3293 = vpop.permute.xlu0 %3292
        %3294 = vrot.lane.b32.xlu0 %v3248, 123
        %v3295 = vpop.permute.xlu0 %3294
        %3296 = vrot.lane.b32.xlu0 %v3249, 123
        %v3297 = vpop.permute.xlu0 %3296
        %v3314 = vadd.f32 %v3218, %v3267
        %v3315 = vadd.f32 %v3219, %v3269
        %v3316 = vadd.f32 %v3220, %v3271
        %v3317 = vadd.f32 %v3221, %v3273
        %v3318 = vadd.f32 %v3222, %v3275
        %v3319 = vadd.f32 %v3223, %v3277
        %v3320 = vadd.f32 %v3224, %v3279
        %v3321 = vadd.f32 %v3225, %v3281
        %v3322 = vadd.f32 %v3226, %v3283
        %v3323 = vadd.f32 %v3227, %v3285
        %v3324 = vadd.f32 %v3228, %v3287
        %v3325 = vadd.f32 %v3229, %v3289
        %v3326 = vadd.f32 %v3230, %v3291
        %v3327 = vadd.f32 %v3231, %v3293
        %v3328 = vadd.f32 %v3232, %v3295
        %v3329 = vadd.f32 %v3233, %v3297
        %3330 = vrot.lane.b32.xlu0 %v3138, 122
        %v3331 = vpop.permute.xlu0 %3330
        %3332 = vrot.lane.b32.xlu0 %v3139, 122
        %v3333 = vpop.permute.xlu0 %3332
        %3334 = vrot.lane.b32.xlu0 %v3140, 122
        %v3335 = vpop.permute.xlu0 %3334
        %3336 = vrot.lane.b32.xlu0 %v3141, 122
        %v3337 = vpop.permute.xlu0 %3336
        %3338 = vrot.lane.b32.xlu0 %v3142, 122
        %v3339 = vpop.permute.xlu0 %3338
        %3340 = vrot.lane.b32.xlu0 %v3143, 122
        %v3341 = vpop.permute.xlu0 %3340
        %3342 = vrot.lane.b32.xlu0 %v3144, 122
        %v3343 = vpop.permute.xlu0 %3342
        %3344 = vrot.lane.b32.xlu0 %v3145, 122
        %v3345 = vpop.permute.xlu0 %3344
        %3346 = vrot.lane.b32.xlu0 %v3146, 122
        %v3347 = vpop.permute.xlu0 %3346
        %3348 = vrot.lane.b32.xlu0 %v3147, 122
        %v3349 = vpop.permute.xlu0 %3348
        %3350 = vrot.lane.b32.xlu0 %v3148, 122
        %v3351 = vpop.permute.xlu0 %3350
        %3352 = vrot.lane.b32.xlu0 %v3149, 122
        %v3353 = vpop.permute.xlu0 %3352
        %3354 = vrot.lane.b32.xlu0 %v3150, 122
        %v3355 = vpop.permute.xlu0 %3354
        %3356 = vrot.lane.b32.xlu0 %v3151, 122
        %v3357 = vpop.permute.xlu0 %3356
        %3358 = vrot.lane.b32.xlu0 %v3152, 122
        %v3359 = vpop.permute.xlu0 %3358
        %3360 = vrot.lane.b32.xlu0 %v3153, 122
        %v3361 = vpop.permute.xlu0 %3360
        %v3378 = vadd.f32 %v3314, %v3331
        %v3379 = vadd.f32 %v3315, %v3333
        %v3380 = vadd.f32 %v3316, %v3335
        %v3381 = vadd.f32 %v3317, %v3337
        %v3382 = vadd.f32 %v3318, %v3339
        %v3383 = vadd.f32 %v3319, %v3341
        %v3384 = vadd.f32 %v3320, %v3343
        %v3385 = vadd.f32 %v3321, %v3345
        %v3386 = vadd.f32 %v3322, %v3347
        %v3387 = vadd.f32 %v3323, %v3349
        %v3388 = vadd.f32 %v3324, %v3351
        %v3389 = vadd.f32 %v3325, %v3353
        %v3390 = vadd.f32 %v3326, %v3355
        %v3391 = vadd.f32 %v3327, %v3357
        %v3392 = vadd.f32 %v3328, %v3359
        %v3393 = vadd.f32 %v3329, %v3361
        %3394 = vrot.lane.b32.xlu0 %v3042, 121
        %v3395 = vpop.permute.xlu0 %3394
        %3396 = vrot.lane.b32.xlu0 %v3043, 121
        %v3397 = vpop.permute.xlu0 %3396
        %3398 = vrot.lane.b32.xlu0 %v3044, 121
        %v3399 = vpop.permute.xlu0 %3398
        %3400 = vrot.lane.b32.xlu0 %v3045, 121
        %v3401 = vpop.permute.xlu0 %3400
        %3402 = vrot.lane.b32.xlu0 %v3046, 121
        %v3403 = vpop.permute.xlu0 %3402
        %3404 = vrot.lane.b32.xlu0 %v3047, 121
        %v3405 = vpop.permute.xlu0 %3404
        %3406 = vrot.lane.b32.xlu0 %v3048, 121
        %v3407 = vpop.permute.xlu0 %3406
        %3408 = vrot.lane.b32.xlu0 %v3049, 121
        %v3409 = vpop.permute.xlu0 %3408
        %3410 = vrot.lane.b32.xlu0 %v3050, 121
        %v3411 = vpop.permute.xlu0 %3410
        %3412 = vrot.lane.b32.xlu0 %v3051, 121
        %v3413 = vpop.permute.xlu0 %3412
        %3414 = vrot.lane.b32.xlu0 %v3052, 121
        %v3415 = vpop.permute.xlu0 %3414
        %3416 = vrot.lane.b32.xlu0 %v3053, 121
        %v3417 = vpop.permute.xlu0 %3416
        %3418 = vrot.lane.b32.xlu0 %v3054, 121
        %v3419 = vpop.permute.xlu0 %3418
        %3420 = vrot.lane.b32.xlu0 %v3055, 121
        %v3421 = vpop.permute.xlu0 %3420
        %3422 = vrot.lane.b32.xlu0 %v3056, 121
        %v3423 = vpop.permute.xlu0 %3422
        %3424 = vrot.lane.b32.xlu0 %v3057, 121
        %v3425 = vpop.permute.xlu0 %3424
        %v3442 = vadd.f32 %v3378, %v3395
        %v3443 = vadd.f32 %v3379, %v3397
        %v3444 = vadd.f32 %v3380, %v3399
        %v3445 = vadd.f32 %v3381, %v3401
        %v3446 = vadd.f32 %v3382, %v3403
        %v3447 = vadd.f32 %v3383, %v3405
        %v3448 = vadd.f32 %v3384, %v3407
        %v3449 = vadd.f32 %v3385, %v3409
        %v3450 = vadd.f32 %v3386, %v3411
        %v3451 = vadd.f32 %v3387, %v3413
        %v3452 = vadd.f32 %v3388, %v3415
        %v3453 = vadd.f32 %v3389, %v3417
        %v3454 = vadd.f32 %v3390, %v3419
        %v3455 = vadd.f32 %v3391, %v3421
        %v3456 = vadd.f32 %v3392, %v3423
        %v3457 = vadd.f32 %v3393, %v3425
        %3458 = vrot.lane.b32.xlu0 %v2946, 120
        %v3459 = vpop.permute.xlu0 %3458
        %3460 = vrot.lane.b32.xlu0 %v2947, 120
        %v3461 = vpop.permute.xlu0 %3460
        %3462 = vrot.lane.b32.xlu0 %v2948, 120
        %v3463 = vpop.permute.xlu0 %3462
        %3464 = vrot.lane.b32.xlu0 %v2949, 120
        %v3465 = vpop.permute.xlu0 %3464
        %3466 = vrot.lane.b32.xlu0 %v2950, 120
        %v3467 = vpop.permute.xlu0 %3466
        %3468 = vrot.lane.b32.xlu0 %v2951, 120
        %v3469 = vpop.permute.xlu0 %3468
        %3470 = vrot.lane.b32.xlu0 %v2952, 120
        %v3471 = vpop.permute.xlu0 %3470
        %3472 = vrot.lane.b32.xlu0 %v2953, 120
        %v3473 = vpop.permute.xlu0 %3472
        %3474 = vrot.lane.b32.xlu0 %v2954, 120
        %v3475 = vpop.permute.xlu0 %3474
        %3476 = vrot.lane.b32.xlu0 %v2955, 120
        %v3477 = vpop.permute.xlu0 %3476
        %3478 = vrot.lane.b32.xlu0 %v2956, 120
        %v3479 = vpop.permute.xlu0 %3478
        %3480 = vrot.lane.b32.xlu0 %v2957, 120
        %v3481 = vpop.permute.xlu0 %3480
        %3482 = vrot.lane.b32.xlu0 %v2958, 120
        %v3483 = vpop.permute.xlu0 %3482
        %3484 = vrot.lane.b32.xlu0 %v2959, 120
        %v3485 = vpop.permute.xlu0 %3484
        %3486 = vrot.lane.b32.xlu0 %v2960, 120
        %v3487 = vpop.permute.xlu0 %3486
        %3488 = vrot.lane.b32.xlu0 %v2961, 120
        %v3489 = vpop.permute.xlu0 %3488
        %v3506 = vadd.f32 %v3442, %v3459
        %v3507 = vadd.f32 %v3443, %v3461
        %v3508 = vadd.f32 %v3444, %v3463
        %v3509 = vadd.f32 %v3445, %v3465
        %v3510 = vadd.f32 %v3446, %v3467
        %v3511 = vadd.f32 %v3447, %v3469
        %v3512 = vadd.f32 %v3448, %v3471
        %v3513 = vadd.f32 %v3449, %v3473
        %v3514 = vadd.f32 %v3450, %v3475
        %v3515 = vadd.f32 %v3451, %v3477
        %v3516 = vadd.f32 %v3452, %v3479
        %v3517 = vadd.f32 %v3453, %v3481
        %v3518 = vadd.f32 %v3454, %v3483
        %v3519 = vadd.f32 %v3455, %v3485
        %v3520 = vadd.f32 %v3456, %v3487
        %v3521 = vadd.f32 %v3457, %v3489
        %3522 = vrot.lane.b32.xlu0 %v2850, 119
        %v3523 = vpop.permute.xlu0 %3522
        %3524 = vrot.lane.b32.xlu0 %v2851, 119
        %v3525 = vpop.permute.xlu0 %3524
        %3526 = vrot.lane.b32.xlu0 %v2852, 119
        %v3527 = vpop.permute.xlu0 %3526
        %3528 = vrot.lane.b32.xlu0 %v2853, 119
        %v3529 = vpop.permute.xlu0 %3528
        %3530 = vrot.lane.b32.xlu0 %v2854, 119
        %v3531 = vpop.permute.xlu0 %3530
        %3532 = vrot.lane.b32.xlu0 %v2855, 119
        %v3533 = vpop.permute.xlu0 %3532
        %3534 = vrot.lane.b32.xlu0 %v2856, 119
        %v3535 = vpop.permute.xlu0 %3534
        %3536 = vrot.lane.b32.xlu0 %v2857, 119
        %v3537 = vpop.permute.xlu0 %3536
        %3538 = vrot.lane.b32.xlu0 %v2858, 119
        %v3539 = vpop.permute.xlu0 %3538
        %3540 = vrot.lane.b32.xlu0 %v2859, 119
        %v3541 = vpop.permute.xlu0 %3540
        %3542 = vrot.lane.b32.xlu0 %v2860, 119
        %v3543 = vpop.permute.xlu0 %3542
        %3544 = vrot.lane.b32.xlu0 %v2861, 119
        %v3545 = vpop.permute.xlu0 %3544
        %3546 = vrot.lane.b32.xlu0 %v2862, 119
        %v3547 = vpop.permute.xlu0 %3546
        %3548 = vrot.lane.b32.xlu0 %v2863, 119
        %v3549 = vpop.permute.xlu0 %3548
        %3550 = vrot.lane.b32.xlu0 %v2864, 119
        %v3551 = vpop.permute.xlu0 %3550
        %3552 = vrot.lane.b32.xlu0 %v2865, 119
        %v3553 = vpop.permute.xlu0 %3552
        %v3570 = vadd.f32 %v3506, %v3523
        %v3571 = vadd.f32 %v3507, %v3525
        %v3572 = vadd.f32 %v3508, %v3527
        %v3573 = vadd.f32 %v3509, %v3529
        %v3574 = vadd.f32 %v3510, %v3531
        %v3575 = vadd.f32 %v3511, %v3533
        %v3576 = vadd.f32 %v3512, %v3535
        %v3577 = vadd.f32 %v3513, %v3537
        %v3578 = vadd.f32 %v3514, %v3539
        %v3579 = vadd.f32 %v3515, %v3541
        %v3580 = vadd.f32 %v3516, %v3543
        %v3581 = vadd.f32 %v3517, %v3545
        %v3582 = vadd.f32 %v3518, %v3547
        %v3583 = vadd.f32 %v3519, %v3549
        %v3584 = vadd.f32 %v3520, %v3551
        %v3585 = vadd.f32 %v3521, %v3553
        %3602 = vrot.lane.b32.xlu0 %v2834, 118
        %v3603 = vpop.permute.xlu0 %3602
        %3604 = vrot.lane.b32.xlu0 %v2835, 118
        %v3605 = vpop.permute.xlu0 %3604
        %3606 = vrot.lane.b32.xlu0 %v2836, 118
        %v3607 = vpop.permute.xlu0 %3606
        %3608 = vrot.lane.b32.xlu0 %v2837, 118
        %v3609 = vpop.permute.xlu0 %3608
        %3610 = vrot.lane.b32.xlu0 %v2838, 118
        %v3611 = vpop.permute.xlu0 %3610
        %3612 = vrot.lane.b32.xlu0 %v2839, 118
        %v3613 = vpop.permute.xlu0 %3612
        %3614 = vrot.lane.b32.xlu0 %v2840, 118
        %v3615 = vpop.permute.xlu0 %3614
        %3616 = vrot.lane.b32.xlu0 %v2841, 118
        %v3617 = vpop.permute.xlu0 %3616
        %3618 = vrot.lane.b32.xlu0 %v2842, 118
        %v3619 = vpop.permute.xlu0 %3618
        %3620 = vrot.lane.b32.xlu0 %v2843, 118
        %v3621 = vpop.permute.xlu0 %3620
        %3622 = vrot.lane.b32.xlu0 %v2844, 118
        %v3623 = vpop.permute.xlu0 %3622
        %3624 = vrot.lane.b32.xlu0 %v2845, 118
        %v3625 = vpop.permute.xlu0 %3624
        %3626 = vrot.lane.b32.xlu0 %v2846, 118
        %v3627 = vpop.permute.xlu0 %3626
        %3628 = vrot.lane.b32.xlu0 %v2847, 118
        %v3629 = vpop.permute.xlu0 %3628
        %3630 = vrot.lane.b32.xlu0 %v2848, 118
        %v3631 = vpop.permute.xlu0 %3630
        %3632 = vrot.lane.b32.xlu0 %v2849, 118
        %v3633 = vpop.permute.xlu0 %3632
        %v3650 = vadd.f32 %v3570, %v3603
        %v3651 = vadd.f32 %v3571, %v3605
        %v3652 = vadd.f32 %v3572, %v3607
        %v3653 = vadd.f32 %v3573, %v3609
        %v3654 = vadd.f32 %v3574, %v3611
        %v3655 = vadd.f32 %v3575, %v3613
        %v3656 = vadd.f32 %v3576, %v3615
        %v3657 = vadd.f32 %v3577, %v3617
        %v3658 = vadd.f32 %v3578, %v3619
        %v3659 = vadd.f32 %v3579, %v3621
        %v3660 = vadd.f32 %v3580, %v3623
        %v3661 = vadd.f32 %v3581, %v3625
        %v3662 = vadd.f32 %v3582, %v3627
        %v3663 = vadd.f32 %v3583, %v3629
        %v3664 = vadd.f32 %v3584, %v3631
        %v3665 = vadd.f32 %v3585, %v3633
        %v3666 = vmul.f32 %v3650, 0.0010283801
        %v3667 = vmul.f32 %v3651, 0.0010283801
        %v3668 = vmul.f32 %v3654, 0.0010283801
        %v3669 = vmul.f32 %v3655, 0.0010283801
        %v3670 = vmul.f32 %v3658, 0.0010283801
        %v3671 = vmul.f32 %v3659, 0.0010283801
        %v3672 = vmul.f32 %v3662, 0.0010283801
        %v3673 = vmul.f32 %v3663, 0.0010283801
        %v3674 = vmul.f32 %v3650, 0.007598758
        %v3675 = vmul.f32 %v3651, 0.007598758
        %v3676 = vmul.f32 %v3652, 0.007598758
        %v3677 = vmul.f32 %v3654, 0.007598758
        %v3678 = vmul.f32 %v3655, 0.007598758
        %v3679 = vmul.f32 %v3656, 0.007598758
        %v3680 = vmul.f32 %v3658, 0.007598758
        %v3681 = vmul.f32 %v3659, 0.007598758
        %v3682 = vmul.f32 %v3660, 0.007598758
        %v3683 = vmul.f32 %v3662, 0.007598758
        %v3684 = vmul.f32 %v3663, 0.007598758
        %v3685 = vmul.f32 %v3664, 0.007598758
        %v3698 = vrot.slane %v3674, 1
        %v3699 = vrot.slane %v3675, 1
        %v3700 = vsel %vm1067, %v3698, %v3699
        %v3701 = vrot.slane %v3676, 1
        %v3702 = vsel %vm1067, %v3699, %v3701
        %v3703 = vrot.slane %v3677, 1
        %v3704 = vrot.slane %v3678, 1
        %v3705 = vsel %vm1067, %v3703, %v3704
        %v3706 = vrot.slane %v3679, 1
        %v3707 = vsel %vm1067, %v3704, %v3706
        %v3708 = vrot.slane %v3680, 1
        %v3709 = vrot.slane %v3681, 1
        %v3710 = vsel %vm1067, %v3708, %v3709
        %v3711 = vrot.slane %v3682, 1
        %v3712 = vsel %vm1067, %v3709, %v3711
        %v3713 = vrot.slane %v3683, 1
        %v3714 = vrot.slane %v3684, 1
        %v3715 = vsel %vm1067, %v3713, %v3714
        %v3716 = vrot.slane %v3685, 1
        %v3717 = vsel %vm1067, %v3714, %v3716
        %v3726 = vadd.f32 %v3666, %v3700
        %v3727 = vadd.f32 %v3667, %v3702
        %v3728 = vadd.f32 %v3668, %v3705
        %v3729 = vadd.f32 %v3669, %v3707
        %v3730 = vadd.f32 %v3670, %v3710
        %v3731 = vadd.f32 %v3671, %v3712
        %v3732 = vadd.f32 %v3672, %v3715
        %v3733 = vadd.f32 %v3673, %v3717
        %v3734 = vmul.f32 %v3650, 0.036000773
        %v3735 = vmul.f32 %v3651, 0.036000773
        %v3736 = vmul.f32 %v3652, 0.036000773
        %v3737 = vmul.f32 %v3654, 0.036000773
        %v3738 = vmul.f32 %v3655, 0.036000773
        %v3739 = vmul.f32 %v3656, 0.036000773
        %v3740 = vmul.f32 %v3658, 0.036000773
        %v3741 = vmul.f32 %v3659, 0.036000773
        %v3742 = vmul.f32 %v3660, 0.036000773
        %v3743 = vmul.f32 %v3662, 0.036000773
        %v3744 = vmul.f32 %v3663, 0.036000773
        %v3745 = vmul.f32 %v3664, 0.036000773
        %v3758 = vrot.slane %v3734, 2
        %v3759 = vrot.slane %v3735, 2
        %v3760 = vsel %vm1128, %v3758, %v3759
        %v3761 = vrot.slane %v3736, 2
        %v3762 = vsel %vm1128, %v3759, %v3761
        %v3763 = vrot.slane %v3737, 2
        %v3764 = vrot.slane %v3738, 2
        %v3765 = vsel %vm1128, %v3763, %v3764
        %v3766 = vrot.slane %v3739, 2
        %v3767 = vsel %vm1128, %v3764, %v3766
        %v3768 = vrot.slane %v3740, 2
        %v3769 = vrot.slane %v3741, 2
        %v3770 = vsel %vm1128, %v3768, %v3769
        %v3771 = vrot.slane %v3742, 2
        %v3772 = vsel %vm1128, %v3769, %v3771
        %v3773 = vrot.slane %v3743, 2
        %v3774 = vrot.slane %v3744, 2
        %v3775 = vsel %vm1128, %v3773, %v3774
        %v3776 = vrot.slane %v3745, 2
        %v3777 = vsel %vm1128, %v3774, %v3776
        %v3786 = vadd.f32 %v3726, %v3760
        %v3787 = vadd.f32 %v3727, %v3762
        %v3788 = vadd.f32 %v3728, %v3765
        %v3789 = vadd.f32 %v3729, %v3767
        %v3790 = vadd.f32 %v3730, %v3770
        %v3791 = vadd.f32 %v3731, %v3772
        %v3792 = vadd.f32 %v3732, %v3775
        %v3793 = vadd.f32 %v3733, %v3777
        %v3794 = vmul.f32 %v3650, 0.10936069
        %v3795 = vmul.f32 %v3651, 0.10936069
        %v3796 = vmul.f32 %v3652, 0.10936069
        %v3797 = vmul.f32 %v3654, 0.10936069
        %v3798 = vmul.f32 %v3655, 0.10936069
        %v3799 = vmul.f32 %v3656, 0.10936069
        %v3800 = vmul.f32 %v3658, 0.10936069
        %v3801 = vmul.f32 %v3659, 0.10936069
        %v3802 = vmul.f32 %v3660, 0.10936069
        %v3803 = vmul.f32 %v3662, 0.10936069
        %v3804 = vmul.f32 %v3663, 0.10936069
        %v3805 = vmul.f32 %v3664, 0.10936069
        %v3818 = vrot.slane %v3794, 3
        %v3819 = vrot.slane %v3795, 3
        %v3820 = vsel %vm1189, %v3818, %v3819
        %v3821 = vrot.slane %v3796, 3
        %v3822 = vsel %vm1189, %v3819, %v3821
        %v3823 = vrot.slane %v3797, 3
        %v3824 = vrot.slane %v3798, 3
        %v3825 = vsel %vm1189, %v3823, %v3824
        %v3826 = vrot.slane %v3799, 3
        %v3827 = vsel %vm1189, %v3824, %v3826
        %v3828 = vrot.slane %v3800, 3
        %v3829 = vrot.slane %v3801, 3
        %v3830 = vsel %vm1189, %v3828, %v3829
        %v3831 = vrot.slane %v3802, 3
        %v3832 = vsel %vm1189, %v3829, %v3831
        %v3833 = vrot.slane %v3803, 3
        %v3834 = vrot.slane %v3804, 3
        %v3835 = vsel %vm1189, %v3833, %v3834
        %v3836 = vrot.slane %v3805, 3
        %v3837 = vsel %vm1189, %v3834, %v3836
        %v3846 = vadd.f32 %v3786, %v3820
        %v3847 = vadd.f32 %v3787, %v3822
        %v3848 = vadd.f32 %v3788, %v3825
        %v3849 = vadd.f32 %v3789, %v3827
        %v3850 = vadd.f32 %v3790, %v3830
        %v3851 = vadd.f32 %v3791, %v3832
        %v3852 = vadd.f32 %v3792, %v3835
        %v3853 = vadd.f32 %v3793, %v3837
        %v3854 = vmul.f32 %v3650, 0.21300554
        %v3855 = vmul.f32 %v3651, 0.21300554
        %v3856 = vmul.f32 %v3652, 0.21300554
        %v3857 = vmul.f32 %v3654, 0.21300554
        %v3858 = vmul.f32 %v3655, 0.21300554
        %v3859 = vmul.f32 %v3656, 0.21300554
        %v3860 = vmul.f32 %v3658, 0.21300554
        %v3861 = vmul.f32 %v3659, 0.21300554
        %v3862 = vmul.f32 %v3660, 0.21300554
        %v3863 = vmul.f32 %v3662, 0.21300554
        %v3864 = vmul.f32 %v3663, 0.21300554
        %v3865 = vmul.f32 %v3664, 0.21300554
        %v3878 = vrot.slane %v3854, 4
        %v3879 = vrot.slane %v3855, 4
        %v3880 = vsel %vm1250, %v3878, %v3879
        %v3881 = vrot.slane %v3856, 4
        %v3882 = vsel %vm1250, %v3879, %v3881
        %v3883 = vrot.slane %v3857, 4
        %v3884 = vrot.slane %v3858, 4
        %v3885 = vsel %vm1250, %v3883, %v3884
        %v3886 = vrot.slane %v3859, 4
        %v3887 = vsel %vm1250, %v3884, %v3886
        %v3888 = vrot.slane %v3860, 4
        %v3889 = vrot.slane %v3861, 4
        %v3890 = vsel %vm1250, %v3888, %v3889
        %v3891 = vrot.slane %v3862, 4
        %v3892 = vsel %vm1250, %v3889, %v3891
        %v3893 = vrot.slane %v3863, 4
        %v3894 = vrot.slane %v3864, 4
        %v3895 = vsel %vm1250, %v3893, %v3894
        %v3896 = vrot.slane %v3865, 4
        %v3897 = vsel %vm1250, %v3894, %v3896
        %v3906 = vadd.f32 %v3846, %v3880
        %v3907 = vadd.f32 %v3847, %v3882
        %v3908 = vadd.f32 %v3848, %v3885
        %v3909 = vadd.f32 %v3849, %v3887
        %v3910 = vadd.f32 %v3850, %v3890
        %v3911 = vadd.f32 %v3851, %v3892
        %v3912 = vadd.f32 %v3852, %v3895
        %v3913 = vadd.f32 %v3853, %v3897
        %v3914 = vmul.f32 %v3650, 0.26601171
        %v3915 = vmul.f32 %v3651, 0.26601171
        %v3916 = vmul.f32 %v3652, 0.26601171
        %v3917 = vmul.f32 %v3654, 0.26601171
        %v3918 = vmul.f32 %v3655, 0.26601171
        %v3919 = vmul.f32 %v3656, 0.26601171
        %v3920 = vmul.f32 %v3658, 0.26601171
        %v3921 = vmul.f32 %v3659, 0.26601171
        %v3922 = vmul.f32 %v3660, 0.26601171
        %v3923 = vmul.f32 %v3662, 0.26601171
        %v3924 = vmul.f32 %v3663, 0.26601171
        %v3925 = vmul.f32 %v3664, 0.26601171
        %v3938 = vrot.slane %v3914, 5
        %v3939 = vrot.slane %v3915, 5
        %v3940 = vsel %vm1311, %v3938, %v3939
        %v3941 = vrot.slane %v3916, 5
        %v3942 = vsel %vm1311, %v3939, %v3941
        %v3943 = vrot.slane %v3917, 5
        %v3944 = vrot.slane %v3918, 5
        %v3945 = vsel %vm1311, %v3943, %v3944
        %v3946 = vrot.slane %v3919, 5
        %v3947 = vsel %vm1311, %v3944, %v3946
        %v3948 = vrot.slane %v3920, 5
        %v3949 = vrot.slane %v3921, 5
        %v3950 = vsel %vm1311, %v3948, %v3949
        %v3951 = vrot.slane %v3922, 5
        %v3952 = vsel %vm1311, %v3949, %v3951
        %v3953 = vrot.slane %v3923, 5
        %v3954 = vrot.slane %v3924, 5
        %v3955 = vsel %vm1311, %v3953, %v3954
        %v3956 = vrot.slane %v3925, 5
        %v3957 = vsel %vm1311, %v3954, %v3956
        %v3966 = vadd.f32 %v3906, %v3940
        %v3967 = vadd.f32 %v3907, %v3942
        %v3968 = vadd.f32 %v3908, %v3945
        %v3969 = vadd.f32 %v3909, %v3947
        %v3970 = vadd.f32 %v3910, %v3950
        %v3971 = vadd.f32 %v3911, %v3952
        %v3972 = vadd.f32 %v3912, %v3955
        %v3973 = vadd.f32 %v3913, %v3957
        %v3974 = vrot.slane %v3854, 6
        %v3975 = vrot.slane %v3855, 6
        %v3976 = vsel %vm1348, %v3974, %v3975
        %v3977 = vrot.slane %v3856, 6
        %v3978 = vsel %vm1348, %v3975, %v3977
        %v3979 = vrot.slane %v3857, 6
        %v3980 = vrot.slane %v3858, 6
        %v3981 = vsel %vm1348, %v3979, %v3980
        %v3982 = vrot.slane %v3859, 6
        %v3983 = vsel %vm1348, %v3980, %v3982
        %v3984 = vrot.slane %v3860, 6
        %v3985 = vrot.slane %v3861, 6
        %v3986 = vsel %vm1348, %v3984, %v3985
        %v3987 = vrot.slane %v3862, 6
        %v3988 = vsel %vm1348, %v3985, %v3987
        %v3989 = vrot.slane %v3863, 6
        %v3990 = vrot.slane %v3864, 6
        %v3991 = vsel %vm1348, %v3989, %v3990
        %v3992 = vrot.slane %v3865, 6
        %v3993 = vsel %vm1348, %v3990, %v3992
        %v4002 = vadd.f32 %v3966, %v3976
        %v4003 = vadd.f32 %v3967, %v3978
        %v4004 = vadd.f32 %v3968, %v3981
        %v4005 = vadd.f32 %v3969, %v3983
        %v4006 = vadd.f32 %v3970, %v3986
        %v4007 = vadd.f32 %v3971, %v3988
        %v4008 = vadd.f32 %v3972, %v3991
        %v4009 = vadd.f32 %v3973, %v3993
        %v4010 = vrot.slane %v3794, 7
        %v4011 = vrot.slane %v3795, 7
        %v4012 = vsel %vm1385, %v4010, %v4011
        %v4013 = vrot.slane %v3796, 7
        %v4014 = vsel %vm1385, %v4011, %v4013
        %v4015 = vrot.slane %v3797, 7
        %v4016 = vrot.slane %v3798, 7
        %v4017 = vsel %vm1385, %v4015, %v4016
        %v4018 = vrot.slane %v3799, 7
        %v4019 = vsel %vm1385, %v4016, %v4018
        %v4020 = vrot.slane %v3800, 7
        %v4021 = vrot.slane %v3801, 7
        %v4022 = vsel %vm1385, %v4020, %v4021
        %v4023 = vrot.slane %v3802, 7
        %v4024 = vsel %vm1385, %v4021, %v4023
        %v4025 = vrot.slane %v3803, 7
        %v4026 = vrot.slane %v3804, 7
        %v4027 = vsel %vm1385, %v4025, %v4026
        %v4028 = vrot.slane %v3805, 7
        %v4029 = vsel %vm1385, %v4026, %v4028
        %v4038 = vadd.f32 %v4002, %v4012
        %v4039 = vadd.f32 %v4003, %v4014
        %v4040 = vadd.f32 %v4004, %v4017
        %v4041 = vadd.f32 %v4005, %v4019
        %v4042 = vadd.f32 %v4006, %v4022
        %v4043 = vadd.f32 %v4007, %v4024
        %v4044 = vadd.f32 %v4008, %v4027
        %v4045 = vadd.f32 %v4009, %v4029
        %v4046 = vadd.f32 %v4038, %v3735
        %v4047 = vadd.f32 %v4039, %v3736
        %v4048 = vadd.f32 %v4040, %v3738
        %v4049 = vadd.f32 %v4041, %v3739
        %v4050 = vadd.f32 %v4042, %v3741
        %v4051 = vadd.f32 %v4043, %v3742
        %v4052 = vadd.f32 %v4044, %v3744
        %v4053 = vadd.f32 %v4045, %v3745
        %v4054 = vmul.f32 %v3653, 0.007598758
        %v4055 = vmul.f32 %v3657, 0.007598758
        %v4056 = vmul.f32 %v3661, 0.007598758
        %v4057 = vmul.f32 %v3665, 0.007598758
        %v4062 = vrot.slane %v4054, 1
        %v4063 = vsel %vm1067, %v3701, %v4062
        %v4064 = vrot.slane %v4055, 1
        %v4065 = vsel %vm1067, %v3706, %v4064
        %v4066 = vrot.slane %v4056, 1
        %v4067 = vsel %vm1067, %v3711, %v4066
        %v4068 = vrot.slane %v4057, 1
        %v4069 = vsel %vm1067, %v3716, %v4068
        %v4074 = vadd.f32 %v4046, %v3702
        %v4075 = vadd.f32 %v4047, %v4063
        %v4076 = vadd.f32 %v4048, %v3707
        %v4077 = vadd.f32 %v4049, %v4065
        %v4078 = vadd.f32 %v4050, %v3712
        %v4079 = vadd.f32 %v4051, %v4067
        %v4080 = vadd.f32 %v4052, %v3717
        %v4081 = vadd.f32 %v4053, %v4069
        %v4082 = vmul.f32 %v3652, 0.0010283801
        %v4083 = vmul.f32 %v3653, 0.0010283801
        %v4084 = vmul.f32 %v3656, 0.0010283801
        %v4085 = vmul.f32 %v3657, 0.0010283801
        %v4086 = vmul.f32 %v3660, 0.0010283801
        %v4087 = vmul.f32 %v3661, 0.0010283801
        %v4088 = vmul.f32 %v3664, 0.0010283801
        %v4089 = vmul.f32 %v3665, 0.0010283801
        %v4102 = vrot.slane %v3667, 2
        %v4103 = vrot.slane %v4082, 2
        %v4104 = vsel %vm1128, %v4102, %v4103
        %v4105 = vrot.slane %v4083, 2
        %v4106 = vsel %vm1128, %v4103, %v4105
        %v4107 = vrot.slane %v3669, 2
        %v4108 = vrot.slane %v4084, 2
        %v4109 = vsel %vm1128, %v4107, %v4108
        %v4110 = vrot.slane %v4085, 2
        %v4111 = vsel %vm1128, %v4108, %v4110
        %v4112 = vrot.slane %v3671, 2
        %v4113 = vrot.slane %v4086, 2
        %v4114 = vsel %vm1128, %v4112, %v4113
        %v4115 = vrot.slane %v4087, 2
        %v4116 = vsel %vm1128, %v4113, %v4115
        %v4117 = vrot.slane %v3673, 2
        %v4118 = vrot.slane %v4088, 2
        %v4119 = vsel %vm1128, %v4117, %v4118
        %v4120 = vrot.slane %v4089, 2
        %v4121 = vsel %vm1128, %v4118, %v4120
        %v4130 = vadd.f32 %v4074, %v4104
        %v4131 = vadd.f32 %v4075, %v4106
        %v4132 = vadd.f32 %v4076, %v4109
        %v4133 = vadd.f32 %v4077, %v4111
        %v4134 = vadd.f32 %v4078, %v4114
        %v4135 = vadd.f32 %v4079, %v4116
        %v4136 = vadd.f32 %v4080, %v4119
        %v4137 = vadd.f32 %v4081, %v4121
        %v4138 = vmul.f32 %v187, %v187
        %v4139 = vmul.f32 %v188, %v188
        %v4140 = vmul.f32 %v189, %v189
        %v4141 = vmul.f32 %v190, %v190
        %v4142 = vmul.f32 %v191, %v191
        %v4143 = vmul.f32 %v192, %v192
        %v4144 = vmul.f32 %v193, %v193
        %v4145 = vmul.f32 %v194, %v194
        %v4146 = vmul.f32 %v195, %v195
        %v4147 = vmul.f32 %v196, %v196
        %v4148 = vmul.f32 %v197, %v197
        %v4149 = vmul.f32 %v198, %v198
        %v4150 = vmul.f32 %v199, %v199
        %v4151 = vmul.f32 %v200, %v200
        %v4152 = vmul.f32 %v201, %v201
        %v4153 = vmul.f32 %v202, %v202
        %v4154 = vmul.f32 %v4138, 0.0010283801
        %v4155 = vmul.f32 %v4139, 0.0010283801
        %v4156 = vmul.f32 %v4140, 0.0010283801
        %v4157 = vmul.f32 %v4141, 0.0010283801
        %v4158 = vmul.f32 %v4142, 0.0010283801
        %v4159 = vmul.f32 %v4143, 0.0010283801
        %v4160 = vmul.f32 %v4144, 0.0010283801
        %v4161 = vmul.f32 %v4145, 0.0010283801
        %v4162 = vmul.f32 %v4146, 0.0010283801
        %v4163 = vmul.f32 %v4147, 0.0010283801
        %v4164 = vmul.f32 %v4148, 0.0010283801
        %v4165 = vmul.f32 %v4149, 0.0010283801
        %v4166 = vmul.f32 %v4150, 0.0010283801
        %v4167 = vmul.f32 %v4151, 0.0010283801
        %v4168 = vmul.f32 %v4152, 0.0010283801
        %v4169 = vmul.f32 %v4153, 0.0010283801
        %v4170 = vmul.f32 %v4138, 0.007598758
        %v4171 = vmul.f32 %v4139, 0.007598758
        %v4172 = vmul.f32 %v4140, 0.007598758
        %v4173 = vmul.f32 %v4141, 0.007598758
        %v4174 = vmul.f32 %v4142, 0.007598758
        %v4175 = vmul.f32 %v4143, 0.007598758
        %v4176 = vmul.f32 %v4144, 0.007598758
        %v4177 = vmul.f32 %v4145, 0.007598758
        %v4178 = vmul.f32 %v4146, 0.007598758
        %v4179 = vmul.f32 %v4147, 0.007598758
        %v4180 = vmul.f32 %v4148, 0.007598758
        %v4181 = vmul.f32 %v4149, 0.007598758
        %v4182 = vmul.f32 %v4150, 0.007598758
        %v4183 = vmul.f32 %v4151, 0.007598758
        %v4184 = vmul.f32 %v4152, 0.007598758
        %v4185 = vmul.f32 %v4153, 0.007598758
        %4202 = vrot.lane.b32.xlu0 %v4170, 127
        %v4203 = vpop.permute.xlu0 %4202
        %4204 = vrot.lane.b32.xlu0 %v4171, 127
        %v4205 = vpop.permute.xlu0 %4204
        %4206 = vrot.lane.b32.xlu0 %v4172, 127
        %v4207 = vpop.permute.xlu0 %4206
        %4208 = vrot.lane.b32.xlu0 %v4173, 127
        %v4209 = vpop.permute.xlu0 %4208
        %4210 = vrot.lane.b32.xlu0 %v4174, 127
        %v4211 = vpop.permute.xlu0 %4210
        %4212 = vrot.lane.b32.xlu0 %v4175, 127
        %v4213 = vpop.permute.xlu0 %4212
        %4214 = vrot.lane.b32.xlu0 %v4176, 127
        %v4215 = vpop.permute.xlu0 %4214
        %4216 = vrot.lane.b32.xlu0 %v4177, 127
        %v4217 = vpop.permute.xlu0 %4216
        %4218 = vrot.lane.b32.xlu0 %v4178, 127
        %v4219 = vpop.permute.xlu0 %4218
        %4220 = vrot.lane.b32.xlu0 %v4179, 127
        %v4221 = vpop.permute.xlu0 %4220
        %4222 = vrot.lane.b32.xlu0 %v4180, 127
        %v4223 = vpop.permute.xlu0 %4222
        %4224 = vrot.lane.b32.xlu0 %v4181, 127
        %v4225 = vpop.permute.xlu0 %4224
        %4226 = vrot.lane.b32.xlu0 %v4182, 127
        %v4227 = vpop.permute.xlu0 %4226
        %4228 = vrot.lane.b32.xlu0 %v4183, 127
        %v4229 = vpop.permute.xlu0 %4228
        %4230 = vrot.lane.b32.xlu0 %v4184, 127
        %v4231 = vpop.permute.xlu0 %4230
        %4232 = vrot.lane.b32.xlu0 %v4185, 127
        %v4233 = vpop.permute.xlu0 %4232
        %v4250 = vadd.f32 %v4154, %v4203
        %v4251 = vadd.f32 %v4155, %v4205
        %v4252 = vadd.f32 %v4156, %v4207
        %v4253 = vadd.f32 %v4157, %v4209
        %v4254 = vadd.f32 %v4158, %v4211
        %v4255 = vadd.f32 %v4159, %v4213
        %v4256 = vadd.f32 %v4160, %v4215
        %v4257 = vadd.f32 %v4161, %v4217
        %v4258 = vadd.f32 %v4162, %v4219
        %v4259 = vadd.f32 %v4163, %v4221
        %v4260 = vadd.f32 %v4164, %v4223
        %v4261 = vadd.f32 %v4165, %v4225
        %v4262 = vadd.f32 %v4166, %v4227
        %v4263 = vadd.f32 %v4167, %v4229
        %v4264 = vadd.f32 %v4168, %v4231
        %v4265 = vadd.f32 %v4169, %v4233
        %v4266 = vmul.f32 %v4138, 0.036000773
        %v4267 = vmul.f32 %v4139, 0.036000773
        %v4268 = vmul.f32 %v4140, 0.036000773
        %v4269 = vmul.f32 %v4141, 0.036000773
        %v4270 = vmul.f32 %v4142, 0.036000773
        %v4271 = vmul.f32 %v4143, 0.036000773
        %v4272 = vmul.f32 %v4144, 0.036000773
        %v4273 = vmul.f32 %v4145, 0.036000773
        %v4274 = vmul.f32 %v4146, 0.036000773
        %v4275 = vmul.f32 %v4147, 0.036000773
        %v4276 = vmul.f32 %v4148, 0.036000773
        %v4277 = vmul.f32 %v4149, 0.036000773
        %v4278 = vmul.f32 %v4150, 0.036000773
        %v4279 = vmul.f32 %v4151, 0.036000773
        %v4280 = vmul.f32 %v4152, 0.036000773
        %v4281 = vmul.f32 %v4153, 0.036000773
        %4298 = vrot.lane.b32.xlu0 %v4266, 126
        %v4299 = vpop.permute.xlu0 %4298
        %4300 = vrot.lane.b32.xlu0 %v4267, 126
        %v4301 = vpop.permute.xlu0 %4300
        %4302 = vrot.lane.b32.xlu0 %v4268, 126
        %v4303 = vpop.permute.xlu0 %4302
        %4304 = vrot.lane.b32.xlu0 %v4269, 126
        %v4305 = vpop.permute.xlu0 %4304
        %4306 = vrot.lane.b32.xlu0 %v4270, 126
        %v4307 = vpop.permute.xlu0 %4306
        %4308 = vrot.lane.b32.xlu0 %v4271, 126
        %v4309 = vpop.permute.xlu0 %4308
        %4310 = vrot.lane.b32.xlu0 %v4272, 126
        %v4311 = vpop.permute.xlu0 %4310
        %4312 = vrot.lane.b32.xlu0 %v4273, 126
        %v4313 = vpop.permute.xlu0 %4312
        %4314 = vrot.lane.b32.xlu0 %v4274, 126
        %v4315 = vpop.permute.xlu0 %4314
        %4316 = vrot.lane.b32.xlu0 %v4275, 126
        %v4317 = vpop.permute.xlu0 %4316
        %4318 = vrot.lane.b32.xlu0 %v4276, 126
        %v4319 = vpop.permute.xlu0 %4318
        %4320 = vrot.lane.b32.xlu0 %v4277, 126
        %v4321 = vpop.permute.xlu0 %4320
        %4322 = vrot.lane.b32.xlu0 %v4278, 126
        %v4323 = vpop.permute.xlu0 %4322
        %4324 = vrot.lane.b32.xlu0 %v4279, 126
        %v4325 = vpop.permute.xlu0 %4324
        %4326 = vrot.lane.b32.xlu0 %v4280, 126
        %v4327 = vpop.permute.xlu0 %4326
        %4328 = vrot.lane.b32.xlu0 %v4281, 126
        %v4329 = vpop.permute.xlu0 %4328
        %v4346 = vadd.f32 %v4250, %v4299
        %v4347 = vadd.f32 %v4251, %v4301
        %v4348 = vadd.f32 %v4252, %v4303
        %v4349 = vadd.f32 %v4253, %v4305
        %v4350 = vadd.f32 %v4254, %v4307
        %v4351 = vadd.f32 %v4255, %v4309
        %v4352 = vadd.f32 %v4256, %v4311
        %v4353 = vadd.f32 %v4257, %v4313
        %v4354 = vadd.f32 %v4258, %v4315
        %v4355 = vadd.f32 %v4259, %v4317
        %v4356 = vadd.f32 %v4260, %v4319
        %v4357 = vadd.f32 %v4261, %v4321
        %v4358 = vadd.f32 %v4262, %v4323
        %v4359 = vadd.f32 %v4263, %v4325
        %v4360 = vadd.f32 %v4264, %v4327
        %v4361 = vadd.f32 %v4265, %v4329
        %v4362 = vmul.f32 %v4138, 0.10936069
        %v4363 = vmul.f32 %v4139, 0.10936069
        %v4364 = vmul.f32 %v4140, 0.10936069
        %v4365 = vmul.f32 %v4141, 0.10936069
        %v4366 = vmul.f32 %v4142, 0.10936069
        %v4367 = vmul.f32 %v4143, 0.10936069
        %v4368 = vmul.f32 %v4144, 0.10936069
        %v4369 = vmul.f32 %v4145, 0.10936069
        %v4370 = vmul.f32 %v4146, 0.10936069
        %v4371 = vmul.f32 %v4147, 0.10936069
        %v4372 = vmul.f32 %v4148, 0.10936069
        %v4373 = vmul.f32 %v4149, 0.10936069
        %v4374 = vmul.f32 %v4150, 0.10936069
        %v4375 = vmul.f32 %v4151, 0.10936069
        %v4376 = vmul.f32 %v4152, 0.10936069
        %v4377 = vmul.f32 %v4153, 0.10936069
        %4394 = vrot.lane.b32.xlu0 %v4362, 125
        %v4395 = vpop.permute.xlu0 %4394
        %4396 = vrot.lane.b32.xlu0 %v4363, 125
        %v4397 = vpop.permute.xlu0 %4396
        %4398 = vrot.lane.b32.xlu0 %v4364, 125
        %v4399 = vpop.permute.xlu0 %4398
        %4400 = vrot.lane.b32.xlu0 %v4365, 125
        %v4401 = vpop.permute.xlu0 %4400
        %4402 = vrot.lane.b32.xlu0 %v4366, 125
        %v4403 = vpop.permute.xlu0 %4402
        %4404 = vrot.lane.b32.xlu0 %v4367, 125
        %v4405 = vpop.permute.xlu0 %4404
        %4406 = vrot.lane.b32.xlu0 %v4368, 125
        %v4407 = vpop.permute.xlu0 %4406
        %4408 = vrot.lane.b32.xlu0 %v4369, 125
        %v4409 = vpop.permute.xlu0 %4408
        %4410 = vrot.lane.b32.xlu0 %v4370, 125
        %v4411 = vpop.permute.xlu0 %4410
        %4412 = vrot.lane.b32.xlu0 %v4371, 125
        %v4413 = vpop.permute.xlu0 %4412
        %4414 = vrot.lane.b32.xlu0 %v4372, 125
        %v4415 = vpop.permute.xlu0 %4414
        %4416 = vrot.lane.b32.xlu0 %v4373, 125
        %v4417 = vpop.permute.xlu0 %4416
        %4418 = vrot.lane.b32.xlu0 %v4374, 125
        %v4419 = vpop.permute.xlu0 %4418
        %4420 = vrot.lane.b32.xlu0 %v4375, 125
        %v4421 = vpop.permute.xlu0 %4420
        %4422 = vrot.lane.b32.xlu0 %v4376, 125
        %v4423 = vpop.permute.xlu0 %4422
        %4424 = vrot.lane.b32.xlu0 %v4377, 125
        %v4425 = vpop.permute.xlu0 %4424
        %v4442 = vadd.f32 %v4346, %v4395
        %v4443 = vadd.f32 %v4347, %v4397
        %v4444 = vadd.f32 %v4348, %v4399
        %v4445 = vadd.f32 %v4349, %v4401
        %v4446 = vadd.f32 %v4350, %v4403
        %v4447 = vadd.f32 %v4351, %v4405
        %v4448 = vadd.f32 %v4352, %v4407
        %v4449 = vadd.f32 %v4353, %v4409
        %v4450 = vadd.f32 %v4354, %v4411
        %v4451 = vadd.f32 %v4355, %v4413
        %v4452 = vadd.f32 %v4356, %v4415
        %v4453 = vadd.f32 %v4357, %v4417
        %v4454 = vadd.f32 %v4358, %v4419
        %v4455 = vadd.f32 %v4359, %v4421
        %v4456 = vadd.f32 %v4360, %v4423
        %v4457 = vadd.f32 %v4361, %v4425
        %v4458 = vmul.f32 %v4138, 0.21300554
        %v4459 = vmul.f32 %v4139, 0.21300554
        %v4460 = vmul.f32 %v4140, 0.21300554
        %v4461 = vmul.f32 %v4141, 0.21300554
        %v4462 = vmul.f32 %v4142, 0.21300554
        %v4463 = vmul.f32 %v4143, 0.21300554
        %v4464 = vmul.f32 %v4144, 0.21300554
        %v4465 = vmul.f32 %v4145, 0.21300554
        %v4466 = vmul.f32 %v4146, 0.21300554
        %v4467 = vmul.f32 %v4147, 0.21300554
        %v4468 = vmul.f32 %v4148, 0.21300554
        %v4469 = vmul.f32 %v4149, 0.21300554
        %v4470 = vmul.f32 %v4150, 0.21300554
        %v4471 = vmul.f32 %v4151, 0.21300554
        %v4472 = vmul.f32 %v4152, 0.21300554
        %v4473 = vmul.f32 %v4153, 0.21300554
        %4490 = vrot.lane.b32.xlu0 %v4458, 124
        %v4491 = vpop.permute.xlu0 %4490
        %4492 = vrot.lane.b32.xlu0 %v4459, 124
        %v4493 = vpop.permute.xlu0 %4492
        %4494 = vrot.lane.b32.xlu0 %v4460, 124
        %v4495 = vpop.permute.xlu0 %4494
        %4496 = vrot.lane.b32.xlu0 %v4461, 124
        %v4497 = vpop.permute.xlu0 %4496
        %4498 = vrot.lane.b32.xlu0 %v4462, 124
        %v4499 = vpop.permute.xlu0 %4498
        %4500 = vrot.lane.b32.xlu0 %v4463, 124
        %v4501 = vpop.permute.xlu0 %4500
        %4502 = vrot.lane.b32.xlu0 %v4464, 124
        %v4503 = vpop.permute.xlu0 %4502
        %4504 = vrot.lane.b32.xlu0 %v4465, 124
        %v4505 = vpop.permute.xlu0 %4504
        %4506 = vrot.lane.b32.xlu0 %v4466, 124
        %v4507 = vpop.permute.xlu0 %4506
        %4508 = vrot.lane.b32.xlu0 %v4467, 124
        %v4509 = vpop.permute.xlu0 %4508
        %4510 = vrot.lane.b32.xlu0 %v4468, 124
        %v4511 = vpop.permute.xlu0 %4510
        %4512 = vrot.lane.b32.xlu0 %v4469, 124
        %v4513 = vpop.permute.xlu0 %4512
        %4514 = vrot.lane.b32.xlu0 %v4470, 124
        %v4515 = vpop.permute.xlu0 %4514
        %4516 = vrot.lane.b32.xlu0 %v4471, 124
        %v4517 = vpop.permute.xlu0 %4516
        %4518 = vrot.lane.b32.xlu0 %v4472, 124
        %v4519 = vpop.permute.xlu0 %4518
        %4520 = vrot.lane.b32.xlu0 %v4473, 124
        %v4521 = vpop.permute.xlu0 %4520
        %v4538 = vadd.f32 %v4442, %v4491
        %v4539 = vadd.f32 %v4443, %v4493
        %v4540 = vadd.f32 %v4444, %v4495
        %v4541 = vadd.f32 %v4445, %v4497
        %v4542 = vadd.f32 %v4446, %v4499
        %v4543 = vadd.f32 %v4447, %v4501
        %v4544 = vadd.f32 %v4448, %v4503
        %v4545 = vadd.f32 %v4449, %v4505
        %v4546 = vadd.f32 %v4450, %v4507
        %v4547 = vadd.f32 %v4451, %v4509
        %v4548 = vadd.f32 %v4452, %v4511
        %v4549 = vadd.f32 %v4453, %v4513
        %v4550 = vadd.f32 %v4454, %v4515
        %v4551 = vadd.f32 %v4455, %v4517
        %v4552 = vadd.f32 %v4456, %v4519
        %v4553 = vadd.f32 %v4457, %v4521
        %v4554 = vmul.f32 %v4138, 0.26601171
        %v4555 = vmul.f32 %v4139, 0.26601171
        %v4556 = vmul.f32 %v4140, 0.26601171
        %v4557 = vmul.f32 %v4141, 0.26601171
        %v4558 = vmul.f32 %v4142, 0.26601171
        %v4559 = vmul.f32 %v4143, 0.26601171
        %v4560 = vmul.f32 %v4144, 0.26601171
        %v4561 = vmul.f32 %v4145, 0.26601171
        %v4562 = vmul.f32 %v4146, 0.26601171
        %v4563 = vmul.f32 %v4147, 0.26601171
        %v4564 = vmul.f32 %v4148, 0.26601171
        %v4565 = vmul.f32 %v4149, 0.26601171
        %v4566 = vmul.f32 %v4150, 0.26601171
        %v4567 = vmul.f32 %v4151, 0.26601171
        %v4568 = vmul.f32 %v4152, 0.26601171
        %v4569 = vmul.f32 %v4153, 0.26601171
        %4586 = vrot.lane.b32.xlu0 %v4554, 123
        %v4587 = vpop.permute.xlu0 %4586
        %4588 = vrot.lane.b32.xlu0 %v4555, 123
        %v4589 = vpop.permute.xlu0 %4588
        %4590 = vrot.lane.b32.xlu0 %v4556, 123
        %v4591 = vpop.permute.xlu0 %4590
        %4592 = vrot.lane.b32.xlu0 %v4557, 123
        %v4593 = vpop.permute.xlu0 %4592
        %4594 = vrot.lane.b32.xlu0 %v4558, 123
        %v4595 = vpop.permute.xlu0 %4594
        %4596 = vrot.lane.b32.xlu0 %v4559, 123
        %v4597 = vpop.permute.xlu0 %4596
        %4598 = vrot.lane.b32.xlu0 %v4560, 123
        %v4599 = vpop.permute.xlu0 %4598
        %4600 = vrot.lane.b32.xlu0 %v4561, 123
        %v4601 = vpop.permute.xlu0 %4600
        %4602 = vrot.lane.b32.xlu0 %v4562, 123
        %v4603 = vpop.permute.xlu0 %4602
        %4604 = vrot.lane.b32.xlu0 %v4563, 123
        %v4605 = vpop.permute.xlu0 %4604
        %4606 = vrot.lane.b32.xlu0 %v4564, 123
        %v4607 = vpop.permute.xlu0 %4606
        %4608 = vrot.lane.b32.xlu0 %v4565, 123
        %v4609 = vpop.permute.xlu0 %4608
        %4610 = vrot.lane.b32.xlu0 %v4566, 123
        %v4611 = vpop.permute.xlu0 %4610
        %4612 = vrot.lane.b32.xlu0 %v4567, 123
        %v4613 = vpop.permute.xlu0 %4612
        %4614 = vrot.lane.b32.xlu0 %v4568, 123
        %v4615 = vpop.permute.xlu0 %4614
        %4616 = vrot.lane.b32.xlu0 %v4569, 123
        %v4617 = vpop.permute.xlu0 %4616
        %v4634 = vadd.f32 %v4538, %v4587
        %v4635 = vadd.f32 %v4539, %v4589
        %v4636 = vadd.f32 %v4540, %v4591
        %v4637 = vadd.f32 %v4541, %v4593
        %v4638 = vadd.f32 %v4542, %v4595
        %v4639 = vadd.f32 %v4543, %v4597
        %v4640 = vadd.f32 %v4544, %v4599
        %v4641 = vadd.f32 %v4545, %v4601
        %v4642 = vadd.f32 %v4546, %v4603
        %v4643 = vadd.f32 %v4547, %v4605
        %v4644 = vadd.f32 %v4548, %v4607
        %v4645 = vadd.f32 %v4549, %v4609
        %v4646 = vadd.f32 %v4550, %v4611
        %v4647 = vadd.f32 %v4551, %v4613
        %v4648 = vadd.f32 %v4552, %v4615
        %v4649 = vadd.f32 %v4553, %v4617
        %4650 = vrot.lane.b32.xlu0 %v4458, 122
        %v4651 = vpop.permute.xlu0 %4650
        %4652 = vrot.lane.b32.xlu0 %v4459, 122
        %v4653 = vpop.permute.xlu0 %4652
        %4654 = vrot.lane.b32.xlu0 %v4460, 122
        %v4655 = vpop.permute.xlu0 %4654
        %4656 = vrot.lane.b32.xlu0 %v4461, 122
        %v4657 = vpop.permute.xlu0 %4656
        %4658 = vrot.lane.b32.xlu0 %v4462, 122
        %v4659 = vpop.permute.xlu0 %4658
        %4660 = vrot.lane.b32.xlu0 %v4463, 122
        %v4661 = vpop.permute.xlu0 %4660
        %4662 = vrot.lane.b32.xlu0 %v4464, 122
        %v4663 = vpop.permute.xlu0 %4662
        %4664 = vrot.lane.b32.xlu0 %v4465, 122
        %v4665 = vpop.permute.xlu0 %4664
        %4666 = vrot.lane.b32.xlu0 %v4466, 122
        %v4667 = vpop.permute.xlu0 %4666
        %4668 = vrot.lane.b32.xlu0 %v4467, 122
        %v4669 = vpop.permute.xlu0 %4668
        %4670 = vrot.lane.b32.xlu0 %v4468, 122
        %v4671 = vpop.permute.xlu0 %4670
        %4672 = vrot.lane.b32.xlu0 %v4469, 122
        %v4673 = vpop.permute.xlu0 %4672
        %4674 = vrot.lane.b32.xlu0 %v4470, 122
        %v4675 = vpop.permute.xlu0 %4674
        %4676 = vrot.lane.b32.xlu0 %v4471, 122
        %v4677 = vpop.permute.xlu0 %4676
        %4678 = vrot.lane.b32.xlu0 %v4472, 122
        %v4679 = vpop.permute.xlu0 %4678
        %4680 = vrot.lane.b32.xlu0 %v4473, 122
        %v4681 = vpop.permute.xlu0 %4680
        %v4698 = vadd.f32 %v4634, %v4651
        %v4699 = vadd.f32 %v4635, %v4653
        %v4700 = vadd.f32 %v4636, %v4655
        %v4701 = vadd.f32 %v4637, %v4657
        %v4702 = vadd.f32 %v4638, %v4659
        %v4703 = vadd.f32 %v4639, %v4661
        %v4704 = vadd.f32 %v4640, %v4663
        %v4705 = vadd.f32 %v4641, %v4665
        %v4706 = vadd.f32 %v4642, %v4667
        %v4707 = vadd.f32 %v4643, %v4669
        %v4708 = vadd.f32 %v4644, %v4671
        %v4709 = vadd.f32 %v4645, %v4673
        %v4710 = vadd.f32 %v4646, %v4675
        %v4711 = vadd.f32 %v4647, %v4677
        %v4712 = vadd.f32 %v4648, %v4679
        %v4713 = vadd.f32 %v4649, %v4681
        %4714 = vrot.lane.b32.xlu0 %v4362, 121
        %v4715 = vpop.permute.xlu0 %4714
        %4716 = vrot.lane.b32.xlu0 %v4363, 121
        %v4717 = vpop.permute.xlu0 %4716
        %4718 = vrot.lane.b32.xlu0 %v4364, 121
        %v4719 = vpop.permute.xlu0 %4718
        %4720 = vrot.lane.b32.xlu0 %v4365, 121
        %v4721 = vpop.permute.xlu0 %4720
        %4722 = vrot.lane.b32.xlu0 %v4366, 121
        %v4723 = vpop.permute.xlu0 %4722
        %4724 = vrot.lane.b32.xlu0 %v4367, 121
        %v4725 = vpop.permute.xlu0 %4724
        %4726 = vrot.lane.b32.xlu0 %v4368, 121
        %v4727 = vpop.permute.xlu0 %4726
        %4728 = vrot.lane.b32.xlu0 %v4369, 121
        %v4729 = vpop.permute.xlu0 %4728
        %4730 = vrot.lane.b32.xlu0 %v4370, 121
        %v4731 = vpop.permute.xlu0 %4730
        %4732 = vrot.lane.b32.xlu0 %v4371, 121
        %v4733 = vpop.permute.xlu0 %4732
        %4734 = vrot.lane.b32.xlu0 %v4372, 121
        %v4735 = vpop.permute.xlu0 %4734
        %4736 = vrot.lane.b32.xlu0 %v4373, 121
        %v4737 = vpop.permute.xlu0 %4736
        %4738 = vrot.lane.b32.xlu0 %v4374, 121
        %v4739 = vpop.permute.xlu0 %4738
        %4740 = vrot.lane.b32.xlu0 %v4375, 121
        %v4741 = vpop.permute.xlu0 %4740
        %4742 = vrot.lane.b32.xlu0 %v4376, 121
        %v4743 = vpop.permute.xlu0 %4742
        %4744 = vrot.lane.b32.xlu0 %v4377, 121
        %v4745 = vpop.permute.xlu0 %4744
        %v4762 = vadd.f32 %v4698, %v4715
        %v4763 = vadd.f32 %v4699, %v4717
        %v4764 = vadd.f32 %v4700, %v4719
        %v4765 = vadd.f32 %v4701, %v4721
        %v4766 = vadd.f32 %v4702, %v4723
        %v4767 = vadd.f32 %v4703, %v4725
        %v4768 = vadd.f32 %v4704, %v4727
        %v4769 = vadd.f32 %v4705, %v4729
        %v4770 = vadd.f32 %v4706, %v4731
        %v4771 = vadd.f32 %v4707, %v4733
        %v4772 = vadd.f32 %v4708, %v4735
        %v4773 = vadd.f32 %v4709, %v4737
        %v4774 = vadd.f32 %v4710, %v4739
        %v4775 = vadd.f32 %v4711, %v4741
        %v4776 = vadd.f32 %v4712, %v4743
        %v4777 = vadd.f32 %v4713, %v4745
        %4778 = vrot.lane.b32.xlu0 %v4266, 120
        %v4779 = vpop.permute.xlu0 %4778
        %4780 = vrot.lane.b32.xlu0 %v4267, 120
        %v4781 = vpop.permute.xlu0 %4780
        %4782 = vrot.lane.b32.xlu0 %v4268, 120
        %v4783 = vpop.permute.xlu0 %4782
        %4784 = vrot.lane.b32.xlu0 %v4269, 120
        %v4785 = vpop.permute.xlu0 %4784
        %4786 = vrot.lane.b32.xlu0 %v4270, 120
        %v4787 = vpop.permute.xlu0 %4786
        %4788 = vrot.lane.b32.xlu0 %v4271, 120
        %v4789 = vpop.permute.xlu0 %4788
        %4790 = vrot.lane.b32.xlu0 %v4272, 120
        %v4791 = vpop.permute.xlu0 %4790
        %4792 = vrot.lane.b32.xlu0 %v4273, 120
        %v4793 = vpop.permute.xlu0 %4792
        %4794 = vrot.lane.b32.xlu0 %v4274, 120
        %v4795 = vpop.permute.xlu0 %4794
        %4796 = vrot.lane.b32.xlu0 %v4275, 120
        %v4797 = vpop.permute.xlu0 %4796
        %4798 = vrot.lane.b32.xlu0 %v4276, 120
        %v4799 = vpop.permute.xlu0 %4798
        %4800 = vrot.lane.b32.xlu0 %v4277, 120
        %v4801 = vpop.permute.xlu0 %4800
        %4802 = vrot.lane.b32.xlu0 %v4278, 120
        %v4803 = vpop.permute.xlu0 %4802
        %4804 = vrot.lane.b32.xlu0 %v4279, 120
        %v4805 = vpop.permute.xlu0 %4804
        %4806 = vrot.lane.b32.xlu0 %v4280, 120
        %v4807 = vpop.permute.xlu0 %4806
        %4808 = vrot.lane.b32.xlu0 %v4281, 120
        %v4809 = vpop.permute.xlu0 %4808
        %v4826 = vadd.f32 %v4762, %v4779
        %v4827 = vadd.f32 %v4763, %v4781
        %v4828 = vadd.f32 %v4764, %v4783
        %v4829 = vadd.f32 %v4765, %v4785
        %v4830 = vadd.f32 %v4766, %v4787
        %v4831 = vadd.f32 %v4767, %v4789
        %v4832 = vadd.f32 %v4768, %v4791
        %v4833 = vadd.f32 %v4769, %v4793
        %v4834 = vadd.f32 %v4770, %v4795
        %v4835 = vadd.f32 %v4771, %v4797
        %v4836 = vadd.f32 %v4772, %v4799
        %v4837 = vadd.f32 %v4773, %v4801
        %v4838 = vadd.f32 %v4774, %v4803
        %v4839 = vadd.f32 %v4775, %v4805
        %v4840 = vadd.f32 %v4776, %v4807
        %v4841 = vadd.f32 %v4777, %v4809
        %4842 = vrot.lane.b32.xlu0 %v4170, 119
        %v4843 = vpop.permute.xlu0 %4842
        %4844 = vrot.lane.b32.xlu0 %v4171, 119
        %v4845 = vpop.permute.xlu0 %4844
        %4846 = vrot.lane.b32.xlu0 %v4172, 119
        %v4847 = vpop.permute.xlu0 %4846
        %4848 = vrot.lane.b32.xlu0 %v4173, 119
        %v4849 = vpop.permute.xlu0 %4848
        %4850 = vrot.lane.b32.xlu0 %v4174, 119
        %v4851 = vpop.permute.xlu0 %4850
        %4852 = vrot.lane.b32.xlu0 %v4175, 119
        %v4853 = vpop.permute.xlu0 %4852
        %4854 = vrot.lane.b32.xlu0 %v4176, 119
        %v4855 = vpop.permute.xlu0 %4854
        %4856 = vrot.lane.b32.xlu0 %v4177, 119
        %v4857 = vpop.permute.xlu0 %4856
        %4858 = vrot.lane.b32.xlu0 %v4178, 119
        %v4859 = vpop.permute.xlu0 %4858
        %4860 = vrot.lane.b32.xlu0 %v4179, 119
        %v4861 = vpop.permute.xlu0 %4860
        %4862 = vrot.lane.b32.xlu0 %v4180, 119
        %v4863 = vpop.permute.xlu0 %4862
        %4864 = vrot.lane.b32.xlu0 %v4181, 119
        %v4865 = vpop.permute.xlu0 %4864
        %4866 = vrot.lane.b32.xlu0 %v4182, 119
        %v4867 = vpop.permute.xlu0 %4866
        %4868 = vrot.lane.b32.xlu0 %v4183, 119
        %v4869 = vpop.permute.xlu0 %4868
        %4870 = vrot.lane.b32.xlu0 %v4184, 119
        %v4871 = vpop.permute.xlu0 %4870
        %4872 = vrot.lane.b32.xlu0 %v4185, 119
        %v4873 = vpop.permute.xlu0 %4872
        %v4890 = vadd.f32 %v4826, %v4843
        %v4891 = vadd.f32 %v4827, %v4845
        %v4892 = vadd.f32 %v4828, %v4847
        %v4893 = vadd.f32 %v4829, %v4849
        %v4894 = vadd.f32 %v4830, %v4851
        %v4895 = vadd.f32 %v4831, %v4853
        %v4896 = vadd.f32 %v4832, %v4855
        %v4897 = vadd.f32 %v4833, %v4857
        %v4898 = vadd.f32 %v4834, %v4859
        %v4899 = vadd.f32 %v4835, %v4861
        %v4900 = vadd.f32 %v4836, %v4863
        %v4901 = vadd.f32 %v4837, %v4865
        %v4902 = vadd.f32 %v4838, %v4867
        %v4903 = vadd.f32 %v4839, %v4869
        %v4904 = vadd.f32 %v4840, %v4871
        %v4905 = vadd.f32 %v4841, %v4873
        %4922 = vrot.lane.b32.xlu0 %v4154, 118
        %v4923 = vpop.permute.xlu0 %4922
        %4924 = vrot.lane.b32.xlu0 %v4155, 118
        %v4925 = vpop.permute.xlu0 %4924
        %4926 = vrot.lane.b32.xlu0 %v4156, 118
        %v4927 = vpop.permute.xlu0 %4926
        %4928 = vrot.lane.b32.xlu0 %v4157, 118
        %v4929 = vpop.permute.xlu0 %4928
        %4930 = vrot.lane.b32.xlu0 %v4158, 118
        %v4931 = vpop.permute.xlu0 %4930
        %4932 = vrot.lane.b32.xlu0 %v4159, 118
        %v4933 = vpop.permute.xlu0 %4932
        %4934 = vrot.lane.b32.xlu0 %v4160, 118
        %v4935 = vpop.permute.xlu0 %4934
        %4936 = vrot.lane.b32.xlu0 %v4161, 118
        %v4937 = vpop.permute.xlu0 %4936
        %4938 = vrot.lane.b32.xlu0 %v4162, 118
        %v4939 = vpop.permute.xlu0 %4938
        %4940 = vrot.lane.b32.xlu0 %v4163, 118
        %v4941 = vpop.permute.xlu0 %4940
        %4942 = vrot.lane.b32.xlu0 %v4164, 118
        %v4943 = vpop.permute.xlu0 %4942
        %4944 = vrot.lane.b32.xlu0 %v4165, 118
        %v4945 = vpop.permute.xlu0 %4944
        %4946 = vrot.lane.b32.xlu0 %v4166, 118
        %v4947 = vpop.permute.xlu0 %4946
        %4948 = vrot.lane.b32.xlu0 %v4167, 118
        %v4949 = vpop.permute.xlu0 %4948
        %4950 = vrot.lane.b32.xlu0 %v4168, 118
        %v4951 = vpop.permute.xlu0 %4950
        %4952 = vrot.lane.b32.xlu0 %v4169, 118
        %v4953 = vpop.permute.xlu0 %4952
        %v4970 = vadd.f32 %v4890, %v4923
        %v4971 = vadd.f32 %v4891, %v4925
        %v4972 = vadd.f32 %v4892, %v4927
        %v4973 = vadd.f32 %v4893, %v4929
        %v4974 = vadd.f32 %v4894, %v4931
        %v4975 = vadd.f32 %v4895, %v4933
        %v4976 = vadd.f32 %v4896, %v4935
        %v4977 = vadd.f32 %v4897, %v4937
        %v4978 = vadd.f32 %v4898, %v4939
        %v4979 = vadd.f32 %v4899, %v4941
        %v4980 = vadd.f32 %v4900, %v4943
        %v4981 = vadd.f32 %v4901, %v4945
        %v4982 = vadd.f32 %v4902, %v4947
        %v4983 = vadd.f32 %v4903, %v4949
        %v4984 = vadd.f32 %v4904, %v4951
        %v4985 = vadd.f32 %v4905, %v4953
        %v4986 = vmul.f32 %v4970, 0.0010283801
        %v4987 = vmul.f32 %v4971, 0.0010283801
        %v4988 = vmul.f32 %v4974, 0.0010283801
        %v4989 = vmul.f32 %v4975, 0.0010283801
        %v4990 = vmul.f32 %v4978, 0.0010283801
        %v4991 = vmul.f32 %v4979, 0.0010283801
        %v4992 = vmul.f32 %v4982, 0.0010283801
        %v4993 = vmul.f32 %v4983, 0.0010283801
        %v4994 = vmul.f32 %v4970, 0.007598758
        %v4995 = vmul.f32 %v4971, 0.007598758
        %v4996 = vmul.f32 %v4972, 0.007598758
        %v4997 = vmul.f32 %v4974, 0.007598758
        %v4998 = vmul.f32 %v4975, 0.007598758
        %v4999 = vmul.f32 %v4976, 0.007598758
        %v5000 = vmul.f32 %v4978, 0.007598758
        %v5001 = vmul.f32 %v4979, 0.007598758
        %v5002 = vmul.f32 %v4980, 0.007598758
        %v5003 = vmul.f32 %v4982, 0.007598758
        %v5004 = vmul.f32 %v4983, 0.007598758
        %v5005 = vmul.f32 %v4984, 0.007598758
        %v5018 = vrot.slane %v4994, 1
        %v5019 = vrot.slane %v4995, 1
        %v5020 = vsel %vm1067, %v5018, %v5019
        %v5021 = vrot.slane %v4996, 1
        %v5022 = vsel %vm1067, %v5019, %v5021
        %v5023 = vrot.slane %v4997, 1
        %v5024 = vrot.slane %v4998, 1
        %v5025 = vsel %vm1067, %v5023, %v5024
        %v5026 = vrot.slane %v4999, 1
        %v5027 = vsel %vm1067, %v5024, %v5026
        %v5028 = vrot.slane %v5000, 1
        %v5029 = vrot.slane %v5001, 1
        %v5030 = vsel %vm1067, %v5028, %v5029
        %v5031 = vrot.slane %v5002, 1
        %v5032 = vsel %vm1067, %v5029, %v5031
        %v5033 = vrot.slane %v5003, 1
        %v5034 = vrot.slane %v5004, 1
        %v5035 = vsel %vm1067, %v5033, %v5034
        %v5036 = vrot.slane %v5005, 1
        %v5037 = vsel %vm1067, %v5034, %v5036
        %v5046 = vadd.f32 %v4986, %v5020
        %v5047 = vadd.f32 %v4987, %v5022
        %v5048 = vadd.f32 %v4988, %v5025
        %v5049 = vadd.f32 %v4989, %v5027
        %v5050 = vadd.f32 %v4990, %v5030
        %v5051 = vadd.f32 %v4991, %v5032
        %v5052 = vadd.f32 %v4992, %v5035
        %v5053 = vadd.f32 %v4993, %v5037
        %v5054 = vmul.f32 %v4970, 0.036000773
        %v5055 = vmul.f32 %v4971, 0.036000773
        %v5056 = vmul.f32 %v4972, 0.036000773
        %v5057 = vmul.f32 %v4974, 0.036000773
        %v5058 = vmul.f32 %v4975, 0.036000773
        %v5059 = vmul.f32 %v4976, 0.036000773
        %v5060 = vmul.f32 %v4978, 0.036000773
        %v5061 = vmul.f32 %v4979, 0.036000773
        %v5062 = vmul.f32 %v4980, 0.036000773
        %v5063 = vmul.f32 %v4982, 0.036000773
        %v5064 = vmul.f32 %v4983, 0.036000773
        %v5065 = vmul.f32 %v4984, 0.036000773
        %v5078 = vrot.slane %v5054, 2
        %v5079 = vrot.slane %v5055, 2
        %v5080 = vsel %vm1128, %v5078, %v5079
        %v5081 = vrot.slane %v5056, 2
        %v5082 = vsel %vm1128, %v5079, %v5081
        %v5083 = vrot.slane %v5057, 2
        %v5084 = vrot.slane %v5058, 2
        %v5085 = vsel %vm1128, %v5083, %v5084
        %v5086 = vrot.slane %v5059, 2
        %v5087 = vsel %vm1128, %v5084, %v5086
        %v5088 = vrot.slane %v5060, 2
        %v5089 = vrot.slane %v5061, 2
        %v5090 = vsel %vm1128, %v5088, %v5089
        %v5091 = vrot.slane %v5062, 2
        %v5092 = vsel %vm1128, %v5089, %v5091
        %v5093 = vrot.slane %v5063, 2
        %v5094 = vrot.slane %v5064, 2
        %v5095 = vsel %vm1128, %v5093, %v5094
        %v5096 = vrot.slane %v5065, 2
        %v5097 = vsel %vm1128, %v5094, %v5096
        %v5106 = vadd.f32 %v5046, %v5080
        %v5107 = vadd.f32 %v5047, %v5082
        %v5108 = vadd.f32 %v5048, %v5085
        %v5109 = vadd.f32 %v5049, %v5087
        %v5110 = vadd.f32 %v5050, %v5090
        %v5111 = vadd.f32 %v5051, %v5092
        %v5112 = vadd.f32 %v5052, %v5095
        %v5113 = vadd.f32 %v5053, %v5097
        %v5114 = vmul.f32 %v4970, 0.10936069
        %v5115 = vmul.f32 %v4971, 0.10936069
        %v5116 = vmul.f32 %v4972, 0.10936069
        %v5117 = vmul.f32 %v4974, 0.10936069
        %v5118 = vmul.f32 %v4975, 0.10936069
        %v5119 = vmul.f32 %v4976, 0.10936069
        %v5120 = vmul.f32 %v4978, 0.10936069
        %v5121 = vmul.f32 %v4979, 0.10936069
        %v5122 = vmul.f32 %v4980, 0.10936069
        %v5123 = vmul.f32 %v4982, 0.10936069
        %v5124 = vmul.f32 %v4983, 0.10936069
        %v5125 = vmul.f32 %v4984, 0.10936069
        %v5138 = vrot.slane %v5114, 3
        %v5139 = vrot.slane %v5115, 3
        %v5140 = vsel %vm1189, %v5138, %v5139
        %v5141 = vrot.slane %v5116, 3
        %v5142 = vsel %vm1189, %v5139, %v5141
        %v5143 = vrot.slane %v5117, 3
        %v5144 = vrot.slane %v5118, 3
        %v5145 = vsel %vm1189, %v5143, %v5144
        %v5146 = vrot.slane %v5119, 3
        %v5147 = vsel %vm1189, %v5144, %v5146
        %v5148 = vrot.slane %v5120, 3
        %v5149 = vrot.slane %v5121, 3
        %v5150 = vsel %vm1189, %v5148, %v5149
        %v5151 = vrot.slane %v5122, 3
        %v5152 = vsel %vm1189, %v5149, %v5151
        %v5153 = vrot.slane %v5123, 3
        %v5154 = vrot.slane %v5124, 3
        %v5155 = vsel %vm1189, %v5153, %v5154
        %v5156 = vrot.slane %v5125, 3
        %v5157 = vsel %vm1189, %v5154, %v5156
        %v5166 = vadd.f32 %v5106, %v5140
        %v5167 = vadd.f32 %v5107, %v5142
        %v5168 = vadd.f32 %v5108, %v5145
        %v5169 = vadd.f32 %v5109, %v5147
        %v5170 = vadd.f32 %v5110, %v5150
        %v5171 = vadd.f32 %v5111, %v5152
        %v5172 = vadd.f32 %v5112, %v5155
        %v5173 = vadd.f32 %v5113, %v5157
        %v5174 = vmul.f32 %v4970, 0.21300554
        %v5175 = vmul.f32 %v4971, 0.21300554
        %v5176 = vmul.f32 %v4972, 0.21300554
        %v5177 = vmul.f32 %v4974, 0.21300554
        %v5178 = vmul.f32 %v4975, 0.21300554
        %v5179 = vmul.f32 %v4976, 0.21300554
        %v5180 = vmul.f32 %v4978, 0.21300554
        %v5181 = vmul.f32 %v4979, 0.21300554
        %v5182 = vmul.f32 %v4980, 0.21300554
        %v5183 = vmul.f32 %v4982, 0.21300554
        %v5184 = vmul.f32 %v4983, 0.21300554
        %v5185 = vmul.f32 %v4984, 0.21300554
        %v5198 = vrot.slane %v5174, 4
        %v5199 = vrot.slane %v5175, 4
        %v5200 = vsel %vm1250, %v5198, %v5199
        %v5201 = vrot.slane %v5176, 4
        %v5202 = vsel %vm1250, %v5199, %v5201
        %v5203 = vrot.slane %v5177, 4
        %v5204 = vrot.slane %v5178, 4
        %v5205 = vsel %vm1250, %v5203, %v5204
        %v5206 = vrot.slane %v5179, 4
        %v5207 = vsel %vm1250, %v5204, %v5206
        %v5208 = vrot.slane %v5180, 4
        %v5209 = vrot.slane %v5181, 4
        %v5210 = vsel %vm1250, %v5208, %v5209
        %v5211 = vrot.slane %v5182, 4
        %v5212 = vsel %vm1250, %v5209, %v5211
        %v5213 = vrot.slane %v5183, 4
        %v5214 = vrot.slane %v5184, 4
        %v5215 = vsel %vm1250, %v5213, %v5214
        %v5216 = vrot.slane %v5185, 4
        %v5217 = vsel %vm1250, %v5214, %v5216
        %v5226 = vadd.f32 %v5166, %v5200
        %v5227 = vadd.f32 %v5167, %v5202
        %v5228 = vadd.f32 %v5168, %v5205
        %v5229 = vadd.f32 %v5169, %v5207
        %v5230 = vadd.f32 %v5170, %v5210
        %v5231 = vadd.f32 %v5171, %v5212
        %v5232 = vadd.f32 %v5172, %v5215
        %v5233 = vadd.f32 %v5173, %v5217
        %v5234 = vmul.f32 %v4970, 0.26601171
        %v5235 = vmul.f32 %v4971, 0.26601171
        %v5236 = vmul.f32 %v4972, 0.26601171
        %v5237 = vmul.f32 %v4974, 0.26601171
        %v5238 = vmul.f32 %v4975, 0.26601171
        %v5239 = vmul.f32 %v4976, 0.26601171
        %v5240 = vmul.f32 %v4978, 0.26601171
        %v5241 = vmul.f32 %v4979, 0.26601171
        %v5242 = vmul.f32 %v4980, 0.26601171
        %v5243 = vmul.f32 %v4982, 0.26601171
        %v5244 = vmul.f32 %v4983, 0.26601171
        %v5245 = vmul.f32 %v4984, 0.26601171
        %v5258 = vrot.slane %v5234, 5
        %v5259 = vrot.slane %v5235, 5
        %v5260 = vsel %vm1311, %v5258, %v5259
        %v5261 = vrot.slane %v5236, 5
        %v5262 = vsel %vm1311, %v5259, %v5261
        %v5263 = vrot.slane %v5237, 5
        %v5264 = vrot.slane %v5238, 5
        %v5265 = vsel %vm1311, %v5263, %v5264
        %v5266 = vrot.slane %v5239, 5
        %v5267 = vsel %vm1311, %v5264, %v5266
        %v5268 = vrot.slane %v5240, 5
        %v5269 = vrot.slane %v5241, 5
        %v5270 = vsel %vm1311, %v5268, %v5269
        %v5271 = vrot.slane %v5242, 5
        %v5272 = vsel %vm1311, %v5269, %v5271
        %v5273 = vrot.slane %v5243, 5
        %v5274 = vrot.slane %v5244, 5
        %v5275 = vsel %vm1311, %v5273, %v5274
        %v5276 = vrot.slane %v5245, 5
        %v5277 = vsel %vm1311, %v5274, %v5276
        %v5286 = vadd.f32 %v5226, %v5260
        %v5287 = vadd.f32 %v5227, %v5262
        %v5288 = vadd.f32 %v5228, %v5265
        %v5289 = vadd.f32 %v5229, %v5267
        %v5290 = vadd.f32 %v5230, %v5270
        %v5291 = vadd.f32 %v5231, %v5272
        %v5292 = vadd.f32 %v5232, %v5275
        %v5293 = vadd.f32 %v5233, %v5277
        %v5294 = vrot.slane %v5174, 6
        %v5295 = vrot.slane %v5175, 6
        %v5296 = vsel %vm1348, %v5294, %v5295
        %v5297 = vrot.slane %v5176, 6
        %v5298 = vsel %vm1348, %v5295, %v5297
        %v5299 = vrot.slane %v5177, 6
        %v5300 = vrot.slane %v5178, 6
        %v5301 = vsel %vm1348, %v5299, %v5300
        %v5302 = vrot.slane %v5179, 6
        %v5303 = vsel %vm1348, %v5300, %v5302
        %v5304 = vrot.slane %v5180, 6
        %v5305 = vrot.slane %v5181, 6
        %v5306 = vsel %vm1348, %v5304, %v5305
        %v5307 = vrot.slane %v5182, 6
        %v5308 = vsel %vm1348, %v5305, %v5307
        %v5309 = vrot.slane %v5183, 6
        %v5310 = vrot.slane %v5184, 6
        %v5311 = vsel %vm1348, %v5309, %v5310
        %v5312 = vrot.slane %v5185, 6
        %v5313 = vsel %vm1348, %v5310, %v5312
        %v5322 = vadd.f32 %v5286, %v5296
        %v5323 = vadd.f32 %v5287, %v5298
        %v5324 = vadd.f32 %v5288, %v5301
        %v5325 = vadd.f32 %v5289, %v5303
        %v5326 = vadd.f32 %v5290, %v5306
        %v5327 = vadd.f32 %v5291, %v5308
        %v5328 = vadd.f32 %v5292, %v5311
        %v5329 = vadd.f32 %v5293, %v5313
        %v5330 = vrot.slane %v5114, 7
        %v5331 = vrot.slane %v5115, 7
        %v5332 = vsel %vm1385, %v5330, %v5331
        %v5333 = vrot.slane %v5116, 7
        %v5334 = vsel %vm1385, %v5331, %v5333
        %v5335 = vrot.slane %v5117, 7
        %v5336 = vrot.slane %v5118, 7
        %v5337 = vsel %vm1385, %v5335, %v5336
        %v5338 = vrot.slane %v5119, 7
        %v5339 = vsel %vm1385, %v5336, %v5338
        %v5340 = vrot.slane %v5120, 7
        %v5341 = vrot.slane %v5121, 7
        %v5342 = vsel %vm1385, %v5340, %v5341
        %v5343 = vrot.slane %v5122, 7
        %v5344 = vsel %vm1385, %v5341, %v5343
        %v5345 = vrot.slane %v5123, 7
        %v5346 = vrot.slane %v5124, 7
        %v5347 = vsel %vm1385, %v5345, %v5346
        %v5348 = vrot.slane %v5125, 7
        %v5349 = vsel %vm1385, %v5346, %v5348
        %v5358 = vadd.f32 %v5322, %v5332
        %v5359 = vadd.f32 %v5323, %v5334
        %v5360 = vadd.f32 %v5324, %v5337
        %v5361 = vadd.f32 %v5325, %v5339
        %v5362 = vadd.f32 %v5326, %v5342
        %v5363 = vadd.f32 %v5327, %v5344
        %v5364 = vadd.f32 %v5328, %v5347
        %v5365 = vadd.f32 %v5329, %v5349
        %v5366 = vadd.f32 %v5358, %v5055
        %v5367 = vadd.f32 %v5359, %v5056
        %v5368 = vadd.f32 %v5360, %v5058
        %v5369 = vadd.f32 %v5361, %v5059
        %v5370 = vadd.f32 %v5362, %v5061
        %v5371 = vadd.f32 %v5363, %v5062
        %v5372 = vadd.f32 %v5364, %v5064
        %v5373 = vadd.f32 %v5365, %v5065
        %v5374 = vmul.f32 %v4973, 0.007598758
        %v5375 = vmul.f32 %v4977, 0.007598758
        %v5376 = vmul.f32 %v4981, 0.007598758
        %v5377 = vmul.f32 %v4985, 0.007598758
        %v5382 = vrot.slane %v5374, 1
        %v5383 = vsel %vm1067, %v5021, %v5382
        %v5384 = vrot.slane %v5375, 1
        %v5385 = vsel %vm1067, %v5026, %v5384
        %v5386 = vrot.slane %v5376, 1
        %v5387 = vsel %vm1067, %v5031, %v5386
        %v5388 = vrot.slane %v5377, 1
        %v5389 = vsel %vm1067, %v5036, %v5388
        %v5394 = vadd.f32 %v5366, %v5022
        %v5395 = vadd.f32 %v5367, %v5383
        %v5396 = vadd.f32 %v5368, %v5027
        %v5397 = vadd.f32 %v5369, %v5385
        %v5398 = vadd.f32 %v5370, %v5032
        %v5399 = vadd.f32 %v5371, %v5387
        %v5400 = vadd.f32 %v5372, %v5037
        %v5401 = vadd.f32 %v5373, %v5389
        %v5402 = vmul.f32 %v4972, 0.0010283801
        %v5403 = vmul.f32 %v4973, 0.0010283801
        %v5404 = vmul.f32 %v4976, 0.0010283801
        %v5405 = vmul.f32 %v4977, 0.0010283801
        %v5406 = vmul.f32 %v4980, 0.0010283801
        %v5407 = vmul.f32 %v4981, 0.0010283801
        %v5408 = vmul.f32 %v4984, 0.0010283801
        %v5409 = vmul.f32 %v4985, 0.0010283801
        %v5422 = vrot.slane %v4987, 2
        %v5423 = vrot.slane %v5402, 2
        %v5424 = vsel %vm1128, %v5422, %v5423
        %v5425 = vrot.slane %v5403, 2
        %v5426 = vsel %vm1128, %v5423, %v5425
        %v5427 = vrot.slane %v4989, 2
        %v5428 = vrot.slane %v5404, 2
        %v5429 = vsel %vm1128, %v5427, %v5428
        %v5430 = vrot.slane %v5405, 2
        %v5431 = vsel %vm1128, %v5428, %v5430
        %v5432 = vrot.slane %v4991, 2
        %v5433 = vrot.slane %v5406, 2
        %v5434 = vsel %vm1128, %v5432, %v5433
        %v5435 = vrot.slane %v5407, 2
        %v5436 = vsel %vm1128, %v5433, %v5435
        %v5437 = vrot.slane %v4993, 2
        %v5438 = vrot.slane %v5408, 2
        %v5439 = vsel %vm1128, %v5437, %v5438
        %v5440 = vrot.slane %v5409, 2
        %v5441 = vsel %vm1128, %v5438, %v5440
        %v5450 = vadd.f32 %v5394, %v5424
        %v5451 = vadd.f32 %v5395, %v5426
        %v5452 = vadd.f32 %v5396, %v5429
        %v5453 = vadd.f32 %v5397, %v5431
        %v5454 = vadd.f32 %v5398, %v5434
        %v5455 = vadd.f32 %v5399, %v5436
        %v5456 = vadd.f32 %v5400, %v5439
        %v5457 = vadd.f32 %v5401, %v5441
        %v5458 = vmul.f32 %v171, %v187
        %v5459 = vmul.f32 %v172, %v188
        %v5460 = vmul.f32 %v173, %v189
        %v5461 = vmul.f32 %v174, %v190
        %v5462 = vmul.f32 %v175, %v191
        %v5463 = vmul.f32 %v176, %v192
        %v5464 = vmul.f32 %v177, %v193
        %v5465 = vmul.f32 %v178, %v194
        %v5466 = vmul.f32 %v179, %v195
        %v5467 = vmul.f32 %v180, %v196
        %v5468 = vmul.f32 %v181, %v197
        %v5469 = vmul.f32 %v182, %v198
        %v5470 = vmul.f32 %v183, %v199
        %v5471 = vmul.f32 %v184, %v200
        %v5472 = vmul.f32 %v185, %v201
        %v5473 = vmul.f32 %v186, %v202
        %v5474 = vmul.f32 %v5458, 0.0010283801
        %v5475 = vmul.f32 %v5459, 0.0010283801
        %v5476 = vmul.f32 %v5460, 0.0010283801
        %v5477 = vmul.f32 %v5461, 0.0010283801
        %v5478 = vmul.f32 %v5462, 0.0010283801
        %v5479 = vmul.f32 %v5463, 0.0010283801
        %v5480 = vmul.f32 %v5464, 0.0010283801
        %v5481 = vmul.f32 %v5465, 0.0010283801
        %v5482 = vmul.f32 %v5466, 0.0010283801
        %v5483 = vmul.f32 %v5467, 0.0010283801
        %v5484 = vmul.f32 %v5468, 0.0010283801
        %v5485 = vmul.f32 %v5469, 0.0010283801
        %v5486 = vmul.f32 %v5470, 0.0010283801
        %v5487 = vmul.f32 %v5471, 0.0010283801
        %v5488 = vmul.f32 %v5472, 0.0010283801
        %v5489 = vmul.f32 %v5473, 0.0010283801
        %v5490 = vmul.f32 %v5458, 0.007598758
        %v5491 = vmul.f32 %v5459, 0.007598758
        %v5492 = vmul.f32 %v5460, 0.007598758
        %v5493 = vmul.f32 %v5461, 0.007598758
        %v5494 = vmul.f32 %v5462, 0.007598758
        %v5495 = vmul.f32 %v5463, 0.007598758
        %v5496 = vmul.f32 %v5464, 0.007598758
        %v5497 = vmul.f32 %v5465, 0.007598758
        %v5498 = vmul.f32 %v5466, 0.007598758
        %v5499 = vmul.f32 %v5467, 0.007598758
        %v5500 = vmul.f32 %v5468, 0.007598758
        %v5501 = vmul.f32 %v5469, 0.007598758
        %v5502 = vmul.f32 %v5470, 0.007598758
        %v5503 = vmul.f32 %v5471, 0.007598758
        %v5504 = vmul.f32 %v5472, 0.007598758
        %v5505 = vmul.f32 %v5473, 0.007598758
        %5522 = vrot.lane.b32.xlu0 %v5490, 127
        %v5523 = vpop.permute.xlu0 %5522
        %5524 = vrot.lane.b32.xlu0 %v5491, 127
        %v5525 = vpop.permute.xlu0 %5524
        %5526 = vrot.lane.b32.xlu0 %v5492, 127
        %v5527 = vpop.permute.xlu0 %5526
        %5528 = vrot.lane.b32.xlu0 %v5493, 127
        %v5529 = vpop.permute.xlu0 %5528
        %5530 = vrot.lane.b32.xlu0 %v5494, 127
        %v5531 = vpop.permute.xlu0 %5530
        %5532 = vrot.lane.b32.xlu0 %v5495, 127
        %v5533 = vpop.permute.xlu0 %5532
        %5534 = vrot.lane.b32.xlu0 %v5496, 127
        %v5535 = vpop.permute.xlu0 %5534
        %5536 = vrot.lane.b32.xlu0 %v5497, 127
        %v5537 = vpop.permute.xlu0 %5536
        %5538 = vrot.lane.b32.xlu0 %v5498, 127
        %v5539 = vpop.permute.xlu0 %5538
        %5540 = vrot.lane.b32.xlu0 %v5499, 127
        %v5541 = vpop.permute.xlu0 %5540
        %5542 = vrot.lane.b32.xlu0 %v5500, 127
        %v5543 = vpop.permute.xlu0 %5542
        %5544 = vrot.lane.b32.xlu0 %v5501, 127
        %v5545 = vpop.permute.xlu0 %5544
        %5546 = vrot.lane.b32.xlu0 %v5502, 127
        %v5547 = vpop.permute.xlu0 %5546
        %5548 = vrot.lane.b32.xlu0 %v5503, 127
        %v5549 = vpop.permute.xlu0 %5548
        %5550 = vrot.lane.b32.xlu0 %v5504, 127
        %v5551 = vpop.permute.xlu0 %5550
        %5552 = vrot.lane.b32.xlu0 %v5505, 127
        %v5553 = vpop.permute.xlu0 %5552
        %v5570 = vadd.f32 %v5474, %v5523
        %v5571 = vadd.f32 %v5475, %v5525
        %v5572 = vadd.f32 %v5476, %v5527
        %v5573 = vadd.f32 %v5477, %v5529
        %v5574 = vadd.f32 %v5478, %v5531
        %v5575 = vadd.f32 %v5479, %v5533
        %v5576 = vadd.f32 %v5480, %v5535
        %v5577 = vadd.f32 %v5481, %v5537
        %v5578 = vadd.f32 %v5482, %v5539
        %v5579 = vadd.f32 %v5483, %v5541
        %v5580 = vadd.f32 %v5484, %v5543
        %v5581 = vadd.f32 %v5485, %v5545
        %v5582 = vadd.f32 %v5486, %v5547
        %v5583 = vadd.f32 %v5487, %v5549
        %v5584 = vadd.f32 %v5488, %v5551
        %v5585 = vadd.f32 %v5489, %v5553
        %v5586 = vmul.f32 %v5458, 0.036000773
        %v5587 = vmul.f32 %v5459, 0.036000773
        %v5588 = vmul.f32 %v5460, 0.036000773
        %v5589 = vmul.f32 %v5461, 0.036000773
        %v5590 = vmul.f32 %v5462, 0.036000773
        %v5591 = vmul.f32 %v5463, 0.036000773
        %v5592 = vmul.f32 %v5464, 0.036000773
        %v5593 = vmul.f32 %v5465, 0.036000773
        %v5594 = vmul.f32 %v5466, 0.036000773
        %v5595 = vmul.f32 %v5467, 0.036000773
        %v5596 = vmul.f32 %v5468, 0.036000773
        %v5597 = vmul.f32 %v5469, 0.036000773
        %v5598 = vmul.f32 %v5470, 0.036000773
        %v5599 = vmul.f32 %v5471, 0.036000773
        %v5600 = vmul.f32 %v5472, 0.036000773
        %v5601 = vmul.f32 %v5473, 0.036000773
        %5618 = vrot.lane.b32.xlu0 %v5586, 126
        %v5619 = vpop.permute.xlu0 %5618
        %5620 = vrot.lane.b32.xlu0 %v5587, 126
        %v5621 = vpop.permute.xlu0 %5620
        %5622 = vrot.lane.b32.xlu0 %v5588, 126
        %v5623 = vpop.permute.xlu0 %5622
        %5624 = vrot.lane.b32.xlu0 %v5589, 126
        %v5625 = vpop.permute.xlu0 %5624
        %5626 = vrot.lane.b32.xlu0 %v5590, 126
        %v5627 = vpop.permute.xlu0 %5626
        %5628 = vrot.lane.b32.xlu0 %v5591, 126
        %v5629 = vpop.permute.xlu0 %5628
        %5630 = vrot.lane.b32.xlu0 %v5592, 126
        %v5631 = vpop.permute.xlu0 %5630
        %5632 = vrot.lane.b32.xlu0 %v5593, 126
        %v5633 = vpop.permute.xlu0 %5632
        %5634 = vrot.lane.b32.xlu0 %v5594, 126
        %v5635 = vpop.permute.xlu0 %5634
        %5636 = vrot.lane.b32.xlu0 %v5595, 126
        %v5637 = vpop.permute.xlu0 %5636
        %5638 = vrot.lane.b32.xlu0 %v5596, 126
        %v5639 = vpop.permute.xlu0 %5638
        %5640 = vrot.lane.b32.xlu0 %v5597, 126
        %v5641 = vpop.permute.xlu0 %5640
        %5642 = vrot.lane.b32.xlu0 %v5598, 126
        %v5643 = vpop.permute.xlu0 %5642
        %5644 = vrot.lane.b32.xlu0 %v5599, 126
        %v5645 = vpop.permute.xlu0 %5644
        %5646 = vrot.lane.b32.xlu0 %v5600, 126
        %v5647 = vpop.permute.xlu0 %5646
        %5648 = vrot.lane.b32.xlu0 %v5601, 126
        %v5649 = vpop.permute.xlu0 %5648
        %v5666 = vadd.f32 %v5570, %v5619
        %v5667 = vadd.f32 %v5571, %v5621
        %v5668 = vadd.f32 %v5572, %v5623
        %v5669 = vadd.f32 %v5573, %v5625
        %v5670 = vadd.f32 %v5574, %v5627
        %v5671 = vadd.f32 %v5575, %v5629
        %v5672 = vadd.f32 %v5576, %v5631
        %v5673 = vadd.f32 %v5577, %v5633
        %v5674 = vadd.f32 %v5578, %v5635
        %v5675 = vadd.f32 %v5579, %v5637
        %v5676 = vadd.f32 %v5580, %v5639
        %v5677 = vadd.f32 %v5581, %v5641
        %v5678 = vadd.f32 %v5582, %v5643
        %v5679 = vadd.f32 %v5583, %v5645
        %v5680 = vadd.f32 %v5584, %v5647
        %v5681 = vadd.f32 %v5585, %v5649
        %v5682 = vmul.f32 %v5458, 0.10936069
        %v5683 = vmul.f32 %v5459, 0.10936069
        %v5684 = vmul.f32 %v5460, 0.10936069
        %v5685 = vmul.f32 %v5461, 0.10936069
        %v5686 = vmul.f32 %v5462, 0.10936069
        %v5687 = vmul.f32 %v5463, 0.10936069
        %v5688 = vmul.f32 %v5464, 0.10936069
        %v5689 = vmul.f32 %v5465, 0.10936069
        %v5690 = vmul.f32 %v5466, 0.10936069
        %v5691 = vmul.f32 %v5467, 0.10936069
        %v5692 = vmul.f32 %v5468, 0.10936069
        %v5693 = vmul.f32 %v5469, 0.10936069
        %v5694 = vmul.f32 %v5470, 0.10936069
        %v5695 = vmul.f32 %v5471, 0.10936069
        %v5696 = vmul.f32 %v5472, 0.10936069
        %v5697 = vmul.f32 %v5473, 0.10936069
        %5714 = vrot.lane.b32.xlu0 %v5682, 125
        %v5715 = vpop.permute.xlu0 %5714
        %5716 = vrot.lane.b32.xlu0 %v5683, 125
        %v5717 = vpop.permute.xlu0 %5716
        %5718 = vrot.lane.b32.xlu0 %v5684, 125
        %v5719 = vpop.permute.xlu0 %5718
        %5720 = vrot.lane.b32.xlu0 %v5685, 125
        %v5721 = vpop.permute.xlu0 %5720
        %5722 = vrot.lane.b32.xlu0 %v5686, 125
        %v5723 = vpop.permute.xlu0 %5722
        %5724 = vrot.lane.b32.xlu0 %v5687, 125
        %v5725 = vpop.permute.xlu0 %5724
        %5726 = vrot.lane.b32.xlu0 %v5688, 125
        %v5727 = vpop.permute.xlu0 %5726
        %5728 = vrot.lane.b32.xlu0 %v5689, 125
        %v5729 = vpop.permute.xlu0 %5728
        %5730 = vrot.lane.b32.xlu0 %v5690, 125
        %v5731 = vpop.permute.xlu0 %5730
        %5732 = vrot.lane.b32.xlu0 %v5691, 125
        %v5733 = vpop.permute.xlu0 %5732
        %5734 = vrot.lane.b32.xlu0 %v5692, 125
        %v5735 = vpop.permute.xlu0 %5734
        %5736 = vrot.lane.b32.xlu0 %v5693, 125
        %v5737 = vpop.permute.xlu0 %5736
        %5738 = vrot.lane.b32.xlu0 %v5694, 125
        %v5739 = vpop.permute.xlu0 %5738
        %5740 = vrot.lane.b32.xlu0 %v5695, 125
        %v5741 = vpop.permute.xlu0 %5740
        %5742 = vrot.lane.b32.xlu0 %v5696, 125
        %v5743 = vpop.permute.xlu0 %5742
        %5744 = vrot.lane.b32.xlu0 %v5697, 125
        %v5745 = vpop.permute.xlu0 %5744
        %v5762 = vadd.f32 %v5666, %v5715
        %v5763 = vadd.f32 %v5667, %v5717
        %v5764 = vadd.f32 %v5668, %v5719
        %v5765 = vadd.f32 %v5669, %v5721
        %v5766 = vadd.f32 %v5670, %v5723
        %v5767 = vadd.f32 %v5671, %v5725
        %v5768 = vadd.f32 %v5672, %v5727
        %v5769 = vadd.f32 %v5673, %v5729
        %v5770 = vadd.f32 %v5674, %v5731
        %v5771 = vadd.f32 %v5675, %v5733
        %v5772 = vadd.f32 %v5676, %v5735
        %v5773 = vadd.f32 %v5677, %v5737
        %v5774 = vadd.f32 %v5678, %v5739
        %v5775 = vadd.f32 %v5679, %v5741
        %v5776 = vadd.f32 %v5680, %v5743
        %v5777 = vadd.f32 %v5681, %v5745
        %v5778 = vmul.f32 %v5458, 0.21300554
        %v5779 = vmul.f32 %v5459, 0.21300554
        %v5780 = vmul.f32 %v5460, 0.21300554
        %v5781 = vmul.f32 %v5461, 0.21300554
        %v5782 = vmul.f32 %v5462, 0.21300554
        %v5783 = vmul.f32 %v5463, 0.21300554
        %v5784 = vmul.f32 %v5464, 0.21300554
        %v5785 = vmul.f32 %v5465, 0.21300554
        %v5786 = vmul.f32 %v5466, 0.21300554
        %v5787 = vmul.f32 %v5467, 0.21300554
        %v5788 = vmul.f32 %v5468, 0.21300554
        %v5789 = vmul.f32 %v5469, 0.21300554
        %v5790 = vmul.f32 %v5470, 0.21300554
        %v5791 = vmul.f32 %v5471, 0.21300554
        %v5792 = vmul.f32 %v5472, 0.21300554
        %v5793 = vmul.f32 %v5473, 0.21300554
        %5810 = vrot.lane.b32.xlu0 %v5778, 124
        %v5811 = vpop.permute.xlu0 %5810
        %5812 = vrot.lane.b32.xlu0 %v5779, 124
        %v5813 = vpop.permute.xlu0 %5812
        %5814 = vrot.lane.b32.xlu0 %v5780, 124
        %v5815 = vpop.permute.xlu0 %5814
        %5816 = vrot.lane.b32.xlu0 %v5781, 124
        %v5817 = vpop.permute.xlu0 %5816
        %5818 = vrot.lane.b32.xlu0 %v5782, 124
        %v5819 = vpop.permute.xlu0 %5818
        %5820 = vrot.lane.b32.xlu0 %v5783, 124
        %v5821 = vpop.permute.xlu0 %5820
        %5822 = vrot.lane.b32.xlu0 %v5784, 124
        %v5823 = vpop.permute.xlu0 %5822
        %5824 = vrot.lane.b32.xlu0 %v5785, 124
        %v5825 = vpop.permute.xlu0 %5824
        %5826 = vrot.lane.b32.xlu0 %v5786, 124
        %v5827 = vpop.permute.xlu0 %5826
        %5828 = vrot.lane.b32.xlu0 %v5787, 124
        %v5829 = vpop.permute.xlu0 %5828
        %5830 = vrot.lane.b32.xlu0 %v5788, 124
        %v5831 = vpop.permute.xlu0 %5830
        %5832 = vrot.lane.b32.xlu0 %v5789, 124
        %v5833 = vpop.permute.xlu0 %5832
        %5834 = vrot.lane.b32.xlu0 %v5790, 124
        %v5835 = vpop.permute.xlu0 %5834
        %5836 = vrot.lane.b32.xlu0 %v5791, 124
        %v5837 = vpop.permute.xlu0 %5836
        %5838 = vrot.lane.b32.xlu0 %v5792, 124
        %v5839 = vpop.permute.xlu0 %5838
        %5840 = vrot.lane.b32.xlu0 %v5793, 124
        %v5841 = vpop.permute.xlu0 %5840
        %v5858 = vadd.f32 %v5762, %v5811
        %v5859 = vadd.f32 %v5763, %v5813
        %v5860 = vadd.f32 %v5764, %v5815
        %v5861 = vadd.f32 %v5765, %v5817
        %v5862 = vadd.f32 %v5766, %v5819
        %v5863 = vadd.f32 %v5767, %v5821
        %v5864 = vadd.f32 %v5768, %v5823
        %v5865 = vadd.f32 %v5769, %v5825
        %v5866 = vadd.f32 %v5770, %v5827
        %v5867 = vadd.f32 %v5771, %v5829
        %v5868 = vadd.f32 %v5772, %v5831
        %v5869 = vadd.f32 %v5773, %v5833
        %v5870 = vadd.f32 %v5774, %v5835
        %v5871 = vadd.f32 %v5775, %v5837
        %v5872 = vadd.f32 %v5776, %v5839
        %v5873 = vadd.f32 %v5777, %v5841
        %v5874 = vmul.f32 %v5458, 0.26601171
        %v5875 = vmul.f32 %v5459, 0.26601171
        %v5876 = vmul.f32 %v5460, 0.26601171
        %v5877 = vmul.f32 %v5461, 0.26601171
        %v5878 = vmul.f32 %v5462, 0.26601171
        %v5879 = vmul.f32 %v5463, 0.26601171
        %v5880 = vmul.f32 %v5464, 0.26601171
        %v5881 = vmul.f32 %v5465, 0.26601171
        %v5882 = vmul.f32 %v5466, 0.26601171
        %v5883 = vmul.f32 %v5467, 0.26601171
        %v5884 = vmul.f32 %v5468, 0.26601171
        %v5885 = vmul.f32 %v5469, 0.26601171
        %v5886 = vmul.f32 %v5470, 0.26601171
        %v5887 = vmul.f32 %v5471, 0.26601171
        %v5888 = vmul.f32 %v5472, 0.26601171
        %v5889 = vmul.f32 %v5473, 0.26601171
        %5906 = vrot.lane.b32.xlu0 %v5874, 123
        %v5907 = vpop.permute.xlu0 %5906
        %5908 = vrot.lane.b32.xlu0 %v5875, 123
        %v5909 = vpop.permute.xlu0 %5908
        %5910 = vrot.lane.b32.xlu0 %v5876, 123
        %v5911 = vpop.permute.xlu0 %5910
        %5912 = vrot.lane.b32.xlu0 %v5877, 123
        %v5913 = vpop.permute.xlu0 %5912
        %5914 = vrot.lane.b32.xlu0 %v5878, 123
        %v5915 = vpop.permute.xlu0 %5914
        %5916 = vrot.lane.b32.xlu0 %v5879, 123
        %v5917 = vpop.permute.xlu0 %5916
        %5918 = vrot.lane.b32.xlu0 %v5880, 123
        %v5919 = vpop.permute.xlu0 %5918
        %5920 = vrot.lane.b32.xlu0 %v5881, 123
        %v5921 = vpop.permute.xlu0 %5920
        %5922 = vrot.lane.b32.xlu0 %v5882, 123
        %v5923 = vpop.permute.xlu0 %5922
        %5924 = vrot.lane.b32.xlu0 %v5883, 123
        %v5925 = vpop.permute.xlu0 %5924
        %5926 = vrot.lane.b32.xlu0 %v5884, 123
        %v5927 = vpop.permute.xlu0 %5926
        %5928 = vrot.lane.b32.xlu0 %v5885, 123
        %v5929 = vpop.permute.xlu0 %5928
        %5930 = vrot.lane.b32.xlu0 %v5886, 123
        %v5931 = vpop.permute.xlu0 %5930
        %5932 = vrot.lane.b32.xlu0 %v5887, 123
        %v5933 = vpop.permute.xlu0 %5932
        %5934 = vrot.lane.b32.xlu0 %v5888, 123
        %v5935 = vpop.permute.xlu0 %5934
        %5936 = vrot.lane.b32.xlu0 %v5889, 123
        %v5937 = vpop.permute.xlu0 %5936
        %v5954 = vadd.f32 %v5858, %v5907
        %v5955 = vadd.f32 %v5859, %v5909
        %v5956 = vadd.f32 %v5860, %v5911
        %v5957 = vadd.f32 %v5861, %v5913
        %v5958 = vadd.f32 %v5862, %v5915
        %v5959 = vadd.f32 %v5863, %v5917
        %v5960 = vadd.f32 %v5864, %v5919
        %v5961 = vadd.f32 %v5865, %v5921
        %v5962 = vadd.f32 %v5866, %v5923
        %v5963 = vadd.f32 %v5867, %v5925
        %v5964 = vadd.f32 %v5868, %v5927
        %v5965 = vadd.f32 %v5869, %v5929
        %v5966 = vadd.f32 %v5870, %v5931
        %v5967 = vadd.f32 %v5871, %v5933
        %v5968 = vadd.f32 %v5872, %v5935
        %v5969 = vadd.f32 %v5873, %v5937
        %5970 = vrot.lane.b32.xlu0 %v5778, 122
        %v5971 = vpop.permute.xlu0 %5970
        %5972 = vrot.lane.b32.xlu0 %v5779, 122
        %v5973 = vpop.permute.xlu0 %5972
        %5974 = vrot.lane.b32.xlu0 %v5780, 122
        %v5975 = vpop.permute.xlu0 %5974
        %5976 = vrot.lane.b32.xlu0 %v5781, 122
        %v5977 = vpop.permute.xlu0 %5976
        %5978 = vrot.lane.b32.xlu0 %v5782, 122
        %v5979 = vpop.permute.xlu0 %5978
        %5980 = vrot.lane.b32.xlu0 %v5783, 122
        %v5981 = vpop.permute.xlu0 %5980
        %5982 = vrot.lane.b32.xlu0 %v5784, 122
        %v5983 = vpop.permute.xlu0 %5982
        %5984 = vrot.lane.b32.xlu0 %v5785, 122
        %v5985 = vpop.permute.xlu0 %5984
        %5986 = vrot.lane.b32.xlu0 %v5786, 122
        %v5987 = vpop.permute.xlu0 %5986
        %5988 = vrot.lane.b32.xlu0 %v5787, 122
        %v5989 = vpop.permute.xlu0 %5988
        %5990 = vrot.lane.b32.xlu0 %v5788, 122
        %v5991 = vpop.permute.xlu0 %5990
        %5992 = vrot.lane.b32.xlu0 %v5789, 122
        %v5993 = vpop.permute.xlu0 %5992
        %5994 = vrot.lane.b32.xlu0 %v5790, 122
        %v5995 = vpop.permute.xlu0 %5994
        %5996 = vrot.lane.b32.xlu0 %v5791, 122
        %v5997 = vpop.permute.xlu0 %5996
        %5998 = vrot.lane.b32.xlu0 %v5792, 122
        %v5999 = vpop.permute.xlu0 %5998
        %6000 = vrot.lane.b32.xlu0 %v5793, 122
        %v6001 = vpop.permute.xlu0 %6000
        %v6018 = vadd.f32 %v5954, %v5971
        %v6019 = vadd.f32 %v5955, %v5973
        %v6020 = vadd.f32 %v5956, %v5975
        %v6021 = vadd.f32 %v5957, %v5977
        %v6022 = vadd.f32 %v5958, %v5979
        %v6023 = vadd.f32 %v5959, %v5981
        %v6024 = vadd.f32 %v5960, %v5983
        %v6025 = vadd.f32 %v5961, %v5985
        %v6026 = vadd.f32 %v5962, %v5987
        %v6027 = vadd.f32 %v5963, %v5989
        %v6028 = vadd.f32 %v5964, %v5991
        %v6029 = vadd.f32 %v5965, %v5993
        %v6030 = vadd.f32 %v5966, %v5995
        %v6031 = vadd.f32 %v5967, %v5997
        %v6032 = vadd.f32 %v5968, %v5999
        %v6033 = vadd.f32 %v5969, %v6001
        %6034 = vrot.lane.b32.xlu0 %v5682, 121
        %v6035 = vpop.permute.xlu0 %6034
        %6036 = vrot.lane.b32.xlu0 %v5683, 121
        %v6037 = vpop.permute.xlu0 %6036
        %6038 = vrot.lane.b32.xlu0 %v5684, 121
        %v6039 = vpop.permute.xlu0 %6038
        %6040 = vrot.lane.b32.xlu0 %v5685, 121
        %v6041 = vpop.permute.xlu0 %6040
        %6042 = vrot.lane.b32.xlu0 %v5686, 121
        %v6043 = vpop.permute.xlu0 %6042
        %6044 = vrot.lane.b32.xlu0 %v5687, 121
        %v6045 = vpop.permute.xlu0 %6044
        %6046 = vrot.lane.b32.xlu0 %v5688, 121
        %v6047 = vpop.permute.xlu0 %6046
        %6048 = vrot.lane.b32.xlu0 %v5689, 121
        %v6049 = vpop.permute.xlu0 %6048
        %6050 = vrot.lane.b32.xlu0 %v5690, 121
        %v6051 = vpop.permute.xlu0 %6050
        %6052 = vrot.lane.b32.xlu0 %v5691, 121
        %v6053 = vpop.permute.xlu0 %6052
        %6054 = vrot.lane.b32.xlu0 %v5692, 121
        %v6055 = vpop.permute.xlu0 %6054
        %6056 = vrot.lane.b32.xlu0 %v5693, 121
        %v6057 = vpop.permute.xlu0 %6056
        %6058 = vrot.lane.b32.xlu0 %v5694, 121
        %v6059 = vpop.permute.xlu0 %6058
        %6060 = vrot.lane.b32.xlu0 %v5695, 121
        %v6061 = vpop.permute.xlu0 %6060
        %6062 = vrot.lane.b32.xlu0 %v5696, 121
        %v6063 = vpop.permute.xlu0 %6062
        %6064 = vrot.lane.b32.xlu0 %v5697, 121
        %v6065 = vpop.permute.xlu0 %6064
        %v6082 = vadd.f32 %v6018, %v6035
        %v6083 = vadd.f32 %v6019, %v6037
        %v6084 = vadd.f32 %v6020, %v6039
        %v6085 = vadd.f32 %v6021, %v6041
        %v6086 = vadd.f32 %v6022, %v6043
        %v6087 = vadd.f32 %v6023, %v6045
        %v6088 = vadd.f32 %v6024, %v6047
        %v6089 = vadd.f32 %v6025, %v6049
        %v6090 = vadd.f32 %v6026, %v6051
        %v6091 = vadd.f32 %v6027, %v6053
        %v6092 = vadd.f32 %v6028, %v6055
        %v6093 = vadd.f32 %v6029, %v6057
        %v6094 = vadd.f32 %v6030, %v6059
        %v6095 = vadd.f32 %v6031, %v6061
        %v6096 = vadd.f32 %v6032, %v6063
        %v6097 = vadd.f32 %v6033, %v6065
        %6098 = vrot.lane.b32.xlu0 %v5586, 120
        %v6099 = vpop.permute.xlu0 %6098
        %6100 = vrot.lane.b32.xlu0 %v5587, 120
        %v6101 = vpop.permute.xlu0 %6100
        %6102 = vrot.lane.b32.xlu0 %v5588, 120
        %v6103 = vpop.permute.xlu0 %6102
        %6104 = vrot.lane.b32.xlu0 %v5589, 120
        %v6105 = vpop.permute.xlu0 %6104
        %6106 = vrot.lane.b32.xlu0 %v5590, 120
        %v6107 = vpop.permute.xlu0 %6106
        %6108 = vrot.lane.b32.xlu0 %v5591, 120
        %v6109 = vpop.permute.xlu0 %6108
        %6110 = vrot.lane.b32.xlu0 %v5592, 120
        %v6111 = vpop.permute.xlu0 %6110
        %6112 = vrot.lane.b32.xlu0 %v5593, 120
        %v6113 = vpop.permute.xlu0 %6112
        %6114 = vrot.lane.b32.xlu0 %v5594, 120
        %v6115 = vpop.permute.xlu0 %6114
        %6116 = vrot.lane.b32.xlu0 %v5595, 120
        %v6117 = vpop.permute.xlu0 %6116
        %6118 = vrot.lane.b32.xlu0 %v5596, 120
        %v6119 = vpop.permute.xlu0 %6118
        %6120 = vrot.lane.b32.xlu0 %v5597, 120
        %v6121 = vpop.permute.xlu0 %6120
        %6122 = vrot.lane.b32.xlu0 %v5598, 120
        %v6123 = vpop.permute.xlu0 %6122
        %6124 = vrot.lane.b32.xlu0 %v5599, 120
        %v6125 = vpop.permute.xlu0 %6124
        %6126 = vrot.lane.b32.xlu0 %v5600, 120
        %v6127 = vpop.permute.xlu0 %6126
        %6128 = vrot.lane.b32.xlu0 %v5601, 120
        %v6129 = vpop.permute.xlu0 %6128
        %v6146 = vadd.f32 %v6082, %v6099
        %v6147 = vadd.f32 %v6083, %v6101
        %v6148 = vadd.f32 %v6084, %v6103
        %v6149 = vadd.f32 %v6085, %v6105
        %v6150 = vadd.f32 %v6086, %v6107
        %v6151 = vadd.f32 %v6087, %v6109
        %v6152 = vadd.f32 %v6088, %v6111
        %v6153 = vadd.f32 %v6089, %v6113
        %v6154 = vadd.f32 %v6090, %v6115
        %v6155 = vadd.f32 %v6091, %v6117
        %v6156 = vadd.f32 %v6092, %v6119
        %v6157 = vadd.f32 %v6093, %v6121
        %v6158 = vadd.f32 %v6094, %v6123
        %v6159 = vadd.f32 %v6095, %v6125
        %v6160 = vadd.f32 %v6096, %v6127
        %v6161 = vadd.f32 %v6097, %v6129
        %6162 = vrot.lane.b32.xlu0 %v5490, 119
        %v6163 = vpop.permute.xlu0 %6162
        %6164 = vrot.lane.b32.xlu0 %v5491, 119
        %v6165 = vpop.permute.xlu0 %6164
        %6166 = vrot.lane.b32.xlu0 %v5492, 119
        %v6167 = vpop.permute.xlu0 %6166
        %6168 = vrot.lane.b32.xlu0 %v5493, 119
        %v6169 = vpop.permute.xlu0 %6168
        %6170 = vrot.lane.b32.xlu0 %v5494, 119
        %v6171 = vpop.permute.xlu0 %6170
        %6172 = vrot.lane.b32.xlu0 %v5495, 119
        %v6173 = vpop.permute.xlu0 %6172
        %6174 = vrot.lane.b32.xlu0 %v5496, 119
        %v6175 = vpop.permute.xlu0 %6174
        %6176 = vrot.lane.b32.xlu0 %v5497, 119
        %v6177 = vpop.permute.xlu0 %6176
        %6178 = vrot.lane.b32.xlu0 %v5498, 119
        %v6179 = vpop.permute.xlu0 %6178
        %6180 = vrot.lane.b32.xlu0 %v5499, 119
        %v6181 = vpop.permute.xlu0 %6180
        %6182 = vrot.lane.b32.xlu0 %v5500, 119
        %v6183 = vpop.permute.xlu0 %6182
        %6184 = vrot.lane.b32.xlu0 %v5501, 119
        %v6185 = vpop.permute.xlu0 %6184
        %6186 = vrot.lane.b32.xlu0 %v5502, 119
        %v6187 = vpop.permute.xlu0 %6186
        %6188 = vrot.lane.b32.xlu0 %v5503, 119
        %v6189 = vpop.permute.xlu0 %6188
        %6190 = vrot.lane.b32.xlu0 %v5504, 119
        %v6191 = vpop.permute.xlu0 %6190
        %6192 = vrot.lane.b32.xlu0 %v5505, 119
        %v6193 = vpop.permute.xlu0 %6192
        %v6210 = vadd.f32 %v6146, %v6163
        %v6211 = vadd.f32 %v6147, %v6165
        %v6212 = vadd.f32 %v6148, %v6167
        %v6213 = vadd.f32 %v6149, %v6169
        %v6214 = vadd.f32 %v6150, %v6171
        %v6215 = vadd.f32 %v6151, %v6173
        %v6216 = vadd.f32 %v6152, %v6175
        %v6217 = vadd.f32 %v6153, %v6177
        %v6218 = vadd.f32 %v6154, %v6179
        %v6219 = vadd.f32 %v6155, %v6181
        %v6220 = vadd.f32 %v6156, %v6183
        %v6221 = vadd.f32 %v6157, %v6185
        %v6222 = vadd.f32 %v6158, %v6187
        %v6223 = vadd.f32 %v6159, %v6189
        %v6224 = vadd.f32 %v6160, %v6191
        %v6225 = vadd.f32 %v6161, %v6193
        %6242 = vrot.lane.b32.xlu0 %v5474, 118
        %v6243 = vpop.permute.xlu0 %6242
        %6244 = vrot.lane.b32.xlu0 %v5475, 118
        %v6245 = vpop.permute.xlu0 %6244
        %6246 = vrot.lane.b32.xlu0 %v5476, 118
        %v6247 = vpop.permute.xlu0 %6246
        %6248 = vrot.lane.b32.xlu0 %v5477, 118
        %v6249 = vpop.permute.xlu0 %6248
        %6250 = vrot.lane.b32.xlu0 %v5478, 118
        %v6251 = vpop.permute.xlu0 %6250
        %6252 = vrot.lane.b32.xlu0 %v5479, 118
        %v6253 = vpop.permute.xlu0 %6252
        %6254 = vrot.lane.b32.xlu0 %v5480, 118
        %v6255 = vpop.permute.xlu0 %6254
        %6256 = vrot.lane.b32.xlu0 %v5481, 118
        %v6257 = vpop.permute.xlu0 %6256
        %6258 = vrot.lane.b32.xlu0 %v5482, 118
        %v6259 = vpop.permute.xlu0 %6258
        %6260 = vrot.lane.b32.xlu0 %v5483, 118
        %v6261 = vpop.permute.xlu0 %6260
        %6262 = vrot.lane.b32.xlu0 %v5484, 118
        %v6263 = vpop.permute.xlu0 %6262
        %6264 = vrot.lane.b32.xlu0 %v5485, 118
        %v6265 = vpop.permute.xlu0 %6264
        %6266 = vrot.lane.b32.xlu0 %v5486, 118
        %v6267 = vpop.permute.xlu0 %6266
        %6268 = vrot.lane.b32.xlu0 %v5487, 118
        %v6269 = vpop.permute.xlu0 %6268
        %6270 = vrot.lane.b32.xlu0 %v5488, 118
        %v6271 = vpop.permute.xlu0 %6270
        %6272 = vrot.lane.b32.xlu0 %v5489, 118
        %v6273 = vpop.permute.xlu0 %6272
        %v6290 = vadd.f32 %v6210, %v6243
        %v6291 = vadd.f32 %v6211, %v6245
        %v6292 = vadd.f32 %v6212, %v6247
        %v6293 = vadd.f32 %v6213, %v6249
        %v6294 = vadd.f32 %v6214, %v6251
        %v6295 = vadd.f32 %v6215, %v6253
        %v6296 = vadd.f32 %v6216, %v6255
        %v6297 = vadd.f32 %v6217, %v6257
        %v6298 = vadd.f32 %v6218, %v6259
        %v6299 = vadd.f32 %v6219, %v6261
        %v6300 = vadd.f32 %v6220, %v6263
        %v6301 = vadd.f32 %v6221, %v6265
        %v6302 = vadd.f32 %v6222, %v6267
        %v6303 = vadd.f32 %v6223, %v6269
        %v6304 = vadd.f32 %v6224, %v6271
        %v6305 = vadd.f32 %v6225, %v6273
        %v6306 = vmul.f32 %v6290, 0.0010283801
        %v6307 = vmul.f32 %v6291, 0.0010283801
        %v6308 = vmul.f32 %v6294, 0.0010283801
        %v6309 = vmul.f32 %v6295, 0.0010283801
        %v6310 = vmul.f32 %v6298, 0.0010283801
        %v6311 = vmul.f32 %v6299, 0.0010283801
        %v6312 = vmul.f32 %v6302, 0.0010283801
        %v6313 = vmul.f32 %v6303, 0.0010283801
        %v6314 = vmul.f32 %v6290, 0.007598758
        %v6315 = vmul.f32 %v6291, 0.007598758
        %v6316 = vmul.f32 %v6292, 0.007598758
        %v6317 = vmul.f32 %v6294, 0.007598758
        %v6318 = vmul.f32 %v6295, 0.007598758
        %v6319 = vmul.f32 %v6296, 0.007598758
        %v6320 = vmul.f32 %v6298, 0.007598758
        %v6321 = vmul.f32 %v6299, 0.007598758
        %v6322 = vmul.f32 %v6300, 0.007598758
        %v6323 = vmul.f32 %v6302, 0.007598758
        %v6324 = vmul.f32 %v6303, 0.007598758
        %v6325 = vmul.f32 %v6304, 0.007598758
        %v6338 = vrot.slane %v6314, 1
        %v6339 = vrot.slane %v6315, 1
        %v6340 = vsel %vm1067, %v6338, %v6339
        %v6341 = vrot.slane %v6316, 1
        %v6342 = vsel %vm1067, %v6339, %v6341
        %v6343 = vrot.slane %v6317, 1
        %v6344 = vrot.slane %v6318, 1
        %v6345 = vsel %vm1067, %v6343, %v6344
        %v6346 = vrot.slane %v6319, 1
        %v6347 = vsel %vm1067, %v6344, %v6346
        %v6348 = vrot.slane %v6320, 1
        %v6349 = vrot.slane %v6321, 1
        %v6350 = vsel %vm1067, %v6348, %v6349
        %v6351 = vrot.slane %v6322, 1
        %v6352 = vsel %vm1067, %v6349, %v6351
        %v6353 = vrot.slane %v6323, 1
        %v6354 = vrot.slane %v6324, 1
        %v6355 = vsel %vm1067, %v6353, %v6354
        %v6356 = vrot.slane %v6325, 1
        %v6357 = vsel %vm1067, %v6354, %v6356
        %v6366 = vadd.f32 %v6306, %v6340
        %v6367 = vadd.f32 %v6307, %v6342
        %v6368 = vadd.f32 %v6308, %v6345
        %v6369 = vadd.f32 %v6309, %v6347
        %v6370 = vadd.f32 %v6310, %v6350
        %v6371 = vadd.f32 %v6311, %v6352
        %v6372 = vadd.f32 %v6312, %v6355
        %v6373 = vadd.f32 %v6313, %v6357
        %v6374 = vmul.f32 %v6290, 0.036000773
        %v6375 = vmul.f32 %v6291, 0.036000773
        %v6376 = vmul.f32 %v6292, 0.036000773
        %v6377 = vmul.f32 %v6294, 0.036000773
        %v6378 = vmul.f32 %v6295, 0.036000773
        %v6379 = vmul.f32 %v6296, 0.036000773
        %v6380 = vmul.f32 %v6298, 0.036000773
        %v6381 = vmul.f32 %v6299, 0.036000773
        %v6382 = vmul.f32 %v6300, 0.036000773
        %v6383 = vmul.f32 %v6302, 0.036000773
        %v6384 = vmul.f32 %v6303, 0.036000773
        %v6385 = vmul.f32 %v6304, 0.036000773
        %v6398 = vrot.slane %v6374, 2
        %v6399 = vrot.slane %v6375, 2
        %v6400 = vsel %vm1128, %v6398, %v6399
        %v6401 = vrot.slane %v6376, 2
        %v6402 = vsel %vm1128, %v6399, %v6401
        %v6403 = vrot.slane %v6377, 2
        %v6404 = vrot.slane %v6378, 2
        %v6405 = vsel %vm1128, %v6403, %v6404
        %v6406 = vrot.slane %v6379, 2
        %v6407 = vsel %vm1128, %v6404, %v6406
        %v6408 = vrot.slane %v6380, 2
        %v6409 = vrot.slane %v6381, 2
        %v6410 = vsel %vm1128, %v6408, %v6409
        %v6411 = vrot.slane %v6382, 2
        %v6412 = vsel %vm1128, %v6409, %v6411
        %v6413 = vrot.slane %v6383, 2
        %v6414 = vrot.slane %v6384, 2
        %v6415 = vsel %vm1128, %v6413, %v6414
        %v6416 = vrot.slane %v6385, 2
        %v6417 = vsel %vm1128, %v6414, %v6416
        %v6426 = vadd.f32 %v6366, %v6400
        %v6427 = vadd.f32 %v6367, %v6402
        %v6428 = vadd.f32 %v6368, %v6405
        %v6429 = vadd.f32 %v6369, %v6407
        %v6430 = vadd.f32 %v6370, %v6410
        %v6431 = vadd.f32 %v6371, %v6412
        %v6432 = vadd.f32 %v6372, %v6415
        %v6433 = vadd.f32 %v6373, %v6417
        %v6434 = vmul.f32 %v6290, 0.10936069
        %v6435 = vmul.f32 %v6291, 0.10936069
        %v6436 = vmul.f32 %v6292, 0.10936069
        %v6437 = vmul.f32 %v6294, 0.10936069
        %v6438 = vmul.f32 %v6295, 0.10936069
        %v6439 = vmul.f32 %v6296, 0.10936069
        %v6440 = vmul.f32 %v6298, 0.10936069
        %v6441 = vmul.f32 %v6299, 0.10936069
        %v6442 = vmul.f32 %v6300, 0.10936069
        %v6443 = vmul.f32 %v6302, 0.10936069
        %v6444 = vmul.f32 %v6303, 0.10936069
        %v6445 = vmul.f32 %v6304, 0.10936069
        %v6458 = vrot.slane %v6434, 3
        %v6459 = vrot.slane %v6435, 3
        %v6460 = vsel %vm1189, %v6458, %v6459
        %v6461 = vrot.slane %v6436, 3
        %v6462 = vsel %vm1189, %v6459, %v6461
        %v6463 = vrot.slane %v6437, 3
        %v6464 = vrot.slane %v6438, 3
        %v6465 = vsel %vm1189, %v6463, %v6464
        %v6466 = vrot.slane %v6439, 3
        %v6467 = vsel %vm1189, %v6464, %v6466
        %v6468 = vrot.slane %v6440, 3
        %v6469 = vrot.slane %v6441, 3
        %v6470 = vsel %vm1189, %v6468, %v6469
        %v6471 = vrot.slane %v6442, 3
        %v6472 = vsel %vm1189, %v6469, %v6471
        %v6473 = vrot.slane %v6443, 3
        %v6474 = vrot.slane %v6444, 3
        %v6475 = vsel %vm1189, %v6473, %v6474
        %v6476 = vrot.slane %v6445, 3
        %v6477 = vsel %vm1189, %v6474, %v6476
        %v6486 = vadd.f32 %v6426, %v6460
        %v6487 = vadd.f32 %v6427, %v6462
        %v6488 = vadd.f32 %v6428, %v6465
        %v6489 = vadd.f32 %v6429, %v6467
        %v6490 = vadd.f32 %v6430, %v6470
        %v6491 = vadd.f32 %v6431, %v6472
        %v6492 = vadd.f32 %v6432, %v6475
        %v6493 = vadd.f32 %v6433, %v6477
        %v6494 = vmul.f32 %v6290, 0.21300554
        %v6495 = vmul.f32 %v6291, 0.21300554
        %v6496 = vmul.f32 %v6292, 0.21300554
        %v6497 = vmul.f32 %v6294, 0.21300554
        %v6498 = vmul.f32 %v6295, 0.21300554
        %v6499 = vmul.f32 %v6296, 0.21300554
        %v6500 = vmul.f32 %v6298, 0.21300554
        %v6501 = vmul.f32 %v6299, 0.21300554
        %v6502 = vmul.f32 %v6300, 0.21300554
        %v6503 = vmul.f32 %v6302, 0.21300554
        %v6504 = vmul.f32 %v6303, 0.21300554
        %v6505 = vmul.f32 %v6304, 0.21300554
        %v6518 = vrot.slane %v6494, 4
        %v6519 = vrot.slane %v6495, 4
        %v6520 = vsel %vm1250, %v6518, %v6519
        %v6521 = vrot.slane %v6496, 4
        %v6522 = vsel %vm1250, %v6519, %v6521
        %v6523 = vrot.slane %v6497, 4
        %v6524 = vrot.slane %v6498, 4
        %v6525 = vsel %vm1250, %v6523, %v6524
        %v6526 = vrot.slane %v6499, 4
        %v6527 = vsel %vm1250, %v6524, %v6526
        %v6528 = vrot.slane %v6500, 4
        %v6529 = vrot.slane %v6501, 4
        %v6530 = vsel %vm1250, %v6528, %v6529
        %v6531 = vrot.slane %v6502, 4
        %v6532 = vsel %vm1250, %v6529, %v6531
        %v6533 = vrot.slane %v6503, 4
        %v6534 = vrot.slane %v6504, 4
        %v6535 = vsel %vm1250, %v6533, %v6534
        %v6536 = vrot.slane %v6505, 4
        %v6537 = vsel %vm1250, %v6534, %v6536
        %v6546 = vadd.f32 %v6486, %v6520
        %v6547 = vadd.f32 %v6487, %v6522
        %v6548 = vadd.f32 %v6488, %v6525
        %v6549 = vadd.f32 %v6489, %v6527
        %v6550 = vadd.f32 %v6490, %v6530
        %v6551 = vadd.f32 %v6491, %v6532
        %v6552 = vadd.f32 %v6492, %v6535
        %v6553 = vadd.f32 %v6493, %v6537
        %v6554 = vmul.f32 %v6290, 0.26601171
        %v6555 = vmul.f32 %v6291, 0.26601171
        %v6556 = vmul.f32 %v6292, 0.26601171
        %v6557 = vmul.f32 %v6294, 0.26601171
        %v6558 = vmul.f32 %v6295, 0.26601171
        %v6559 = vmul.f32 %v6296, 0.26601171
        %v6560 = vmul.f32 %v6298, 0.26601171
        %v6561 = vmul.f32 %v6299, 0.26601171
        %v6562 = vmul.f32 %v6300, 0.26601171
        %v6563 = vmul.f32 %v6302, 0.26601171
        %v6564 = vmul.f32 %v6303, 0.26601171
        %v6565 = vmul.f32 %v6304, 0.26601171
        %v6578 = vrot.slane %v6554, 5
        %v6579 = vrot.slane %v6555, 5
        %v6580 = vsel %vm1311, %v6578, %v6579
        %v6581 = vrot.slane %v6556, 5
        %v6582 = vsel %vm1311, %v6579, %v6581
        %v6583 = vrot.slane %v6557, 5
        %v6584 = vrot.slane %v6558, 5
        %v6585 = vsel %vm1311, %v6583, %v6584
        %v6586 = vrot.slane %v6559, 5
        %v6587 = vsel %vm1311, %v6584, %v6586
        %v6588 = vrot.slane %v6560, 5
        %v6589 = vrot.slane %v6561, 5
        %v6590 = vsel %vm1311, %v6588, %v6589
        %v6591 = vrot.slane %v6562, 5
        %v6592 = vsel %vm1311, %v6589, %v6591
        %v6593 = vrot.slane %v6563, 5
        %v6594 = vrot.slane %v6564, 5
        %v6595 = vsel %vm1311, %v6593, %v6594
        %v6596 = vrot.slane %v6565, 5
        %v6597 = vsel %vm1311, %v6594, %v6596
        %v6606 = vadd.f32 %v6546, %v6580
        %v6607 = vadd.f32 %v6547, %v6582
        %v6608 = vadd.f32 %v6548, %v6585
        %v6609 = vadd.f32 %v6549, %v6587
        %v6610 = vadd.f32 %v6550, %v6590
        %v6611 = vadd.f32 %v6551, %v6592
        %v6612 = vadd.f32 %v6552, %v6595
        %v6613 = vadd.f32 %v6553, %v6597
        %v6614 = vrot.slane %v6494, 6
        %v6615 = vrot.slane %v6495, 6
        %v6616 = vsel %vm1348, %v6614, %v6615
        %v6617 = vrot.slane %v6496, 6
        %v6618 = vsel %vm1348, %v6615, %v6617
        %v6619 = vrot.slane %v6497, 6
        %v6620 = vrot.slane %v6498, 6
        %v6621 = vsel %vm1348, %v6619, %v6620
        %v6622 = vrot.slane %v6499, 6
        %v6623 = vsel %vm1348, %v6620, %v6622
        %v6624 = vrot.slane %v6500, 6
        %v6625 = vrot.slane %v6501, 6
        %v6626 = vsel %vm1348, %v6624, %v6625
        %v6627 = vrot.slane %v6502, 6
        %v6628 = vsel %vm1348, %v6625, %v6627
        %v6629 = vrot.slane %v6503, 6
        %v6630 = vrot.slane %v6504, 6
        %v6631 = vsel %vm1348, %v6629, %v6630
        %v6632 = vrot.slane %v6505, 6
        %v6633 = vsel %vm1348, %v6630, %v6632
        %v6642 = vadd.f32 %v6606, %v6616
        %v6643 = vadd.f32 %v6607, %v6618
        %v6644 = vadd.f32 %v6608, %v6621
        %v6645 = vadd.f32 %v6609, %v6623
        %v6646 = vadd.f32 %v6610, %v6626
        %v6647 = vadd.f32 %v6611, %v6628
        %v6648 = vadd.f32 %v6612, %v6631
        %v6649 = vadd.f32 %v6613, %v6633
        %v6650 = vrot.slane %v6434, 7
        %v6651 = vrot.slane %v6435, 7
        %v6652 = vsel %vm1385, %v6650, %v6651
        %v6653 = vrot.slane %v6436, 7
        %v6654 = vsel %vm1385, %v6651, %v6653
        %v6655 = vrot.slane %v6437, 7
        %v6656 = vrot.slane %v6438, 7
        %v6657 = vsel %vm1385, %v6655, %v6656
        %v6658 = vrot.slane %v6439, 7
        %v6659 = vsel %vm1385, %v6656, %v6658
        %v6660 = vrot.slane %v6440, 7
        %v6661 = vrot.slane %v6441, 7
        %v6662 = vsel %vm1385, %v6660, %v6661
        %v6663 = vrot.slane %v6442, 7
        %v6664 = vsel %vm1385, %v6661, %v6663
        %v6665 = vrot.slane %v6443, 7
        %v6666 = vrot.slane %v6444, 7
        %v6667 = vsel %vm1385, %v6665, %v6666
        %v6668 = vrot.slane %v6445, 7
        %v6669 = vsel %vm1385, %v6666, %v6668
        %v6678 = vadd.f32 %v6642, %v6652
        %v6679 = vadd.f32 %v6643, %v6654
        %v6680 = vadd.f32 %v6644, %v6657
        %v6681 = vadd.f32 %v6645, %v6659
        %v6682 = vadd.f32 %v6646, %v6662
        %v6683 = vadd.f32 %v6647, %v6664
        %v6684 = vadd.f32 %v6648, %v6667
        %v6685 = vadd.f32 %v6649, %v6669
        %v6686 = vadd.f32 %v6678, %v6375
        %v6687 = vadd.f32 %v6679, %v6376
        %v6688 = vadd.f32 %v6680, %v6378
        %v6689 = vadd.f32 %v6681, %v6379
        %v6690 = vadd.f32 %v6682, %v6381
        %v6691 = vadd.f32 %v6683, %v6382
        %v6692 = vadd.f32 %v6684, %v6384
        %v6693 = vadd.f32 %v6685, %v6385
        %v6694 = vmul.f32 %v6293, 0.007598758
        %v6695 = vmul.f32 %v6297, 0.007598758
        %v6696 = vmul.f32 %v6301, 0.007598758
        %v6697 = vmul.f32 %v6305, 0.007598758
        %v6702 = vrot.slane %v6694, 1
        %v6703 = vsel %vm1067, %v6341, %v6702
        %v6704 = vrot.slane %v6695, 1
        %v6705 = vsel %vm1067, %v6346, %v6704
        %v6706 = vrot.slane %v6696, 1
        %v6707 = vsel %vm1067, %v6351, %v6706
        %v6708 = vrot.slane %v6697, 1
        %v6709 = vsel %vm1067, %v6356, %v6708
        %v6714 = vadd.f32 %v6686, %v6342
        %v6715 = vadd.f32 %v6687, %v6703
        %v6716 = vadd.f32 %v6688, %v6347
        %v6717 = vadd.f32 %v6689, %v6705
        %v6718 = vadd.f32 %v6690, %v6352
        %v6719 = vadd.f32 %v6691, %v6707
        %v6720 = vadd.f32 %v6692, %v6357
        %v6721 = vadd.f32 %v6693, %v6709
        %v6722 = vmul.f32 %v6292, 0.0010283801
        %v6723 = vmul.f32 %v6293, 0.0010283801
        %v6724 = vmul.f32 %v6296, 0.0010283801
        %v6725 = vmul.f32 %v6297, 0.0010283801
        %v6726 = vmul.f32 %v6300, 0.0010283801
        %v6727 = vmul.f32 %v6301, 0.0010283801
        %v6728 = vmul.f32 %v6304, 0.0010283801
        %v6729 = vmul.f32 %v6305, 0.0010283801
        %v6742 = vrot.slane %v6307, 2
        %v6743 = vrot.slane %v6722, 2
        %v6744 = vsel %vm1128, %v6742, %v6743
        %v6745 = vrot.slane %v6723, 2
        %v6746 = vsel %vm1128, %v6743, %v6745
        %v6747 = vrot.slane %v6309, 2
        %v6748 = vrot.slane %v6724, 2
        %v6749 = vsel %vm1128, %v6747, %v6748
        %v6750 = vrot.slane %v6725, 2
        %v6751 = vsel %vm1128, %v6748, %v6750
        %v6752 = vrot.slane %v6311, 2
        %v6753 = vrot.slane %v6726, 2
        %v6754 = vsel %vm1128, %v6752, %v6753
        %v6755 = vrot.slane %v6727, 2
        %v6756 = vsel %vm1128, %v6753, %v6755
        %v6757 = vrot.slane %v6313, 2
        %v6758 = vrot.slane %v6728, 2
        %v6759 = vsel %vm1128, %v6757, %v6758
        %v6760 = vrot.slane %v6729, 2
        %v6761 = vsel %vm1128, %v6758, %v6760
        %v6770 = vadd.f32 %v6714, %v6744
        %v6771 = vadd.f32 %v6715, %v6746
        %v6772 = vadd.f32 %v6716, %v6749
        %v6773 = vadd.f32 %v6717, %v6751
        %v6774 = vadd.f32 %v6718, %v6754
        %v6775 = vadd.f32 %v6719, %v6756
        %v6776 = vadd.f32 %v6720, %v6759
        %v6777 = vadd.f32 %v6721, %v6761
        %v6778 = vmul.f32 %v1506, %v1506
        %v6779 = vmul.f32 %v1507, %v1507
        %v6780 = vmul.f32 %v1508, %v1508
        %v6781 = vmul.f32 %v1509, %v1509
        %v6782 = vmul.f32 %v1510, %v1510
        %v6783 = vmul.f32 %v1511, %v1511
        %v6784 = vmul.f32 %v1512, %v1512
        %v6785 = vmul.f32 %v1513, %v1513
        %v6786 = vmul.f32 %v2810, %v2810
        %v6787 = vmul.f32 %v2811, %v2811
        %v6788 = vmul.f32 %v2812, %v2812
        %v6789 = vmul.f32 %v2813, %v2813
        %v6790 = vmul.f32 %v2814, %v2814
        %v6791 = vmul.f32 %v2815, %v2815
        %v6792 = vmul.f32 %v2816, %v2816
        %v6793 = vmul.f32 %v2817, %v2817
        %v6794 = vmul.f32 %v1506, %v2810
        %v6795 = vmul.f32 %v1507, %v2811
        %v6796 = vmul.f32 %v1508, %v2812
        %v6797 = vmul.f32 %v1509, %v2813
        %v6798 = vmul.f32 %v1510, %v2814
        %v6799 = vmul.f32 %v1511, %v2815
        %v6800 = vmul.f32 %v1512, %v2816
        %v6801 = vmul.f32 %v1513, %v2817
        %v6802 = vsub.f32 %v4130, %v6778
        %v6803 = vsub.f32 %v4131, %v6779
        %v6804 = vsub.f32 %v4132, %v6780
        %v6805 = vsub.f32 %v4133, %v6781
        %v6806 = vsub.f32 %v4134, %v6782
        %v6807 = vsub.f32 %v4135, %v6783
        %v6808 = vsub.f32 %v4136, %v6784
        %v6809 = vsub.f32 %v4137, %v6785
        %v6810 = vsub.f32 %v5450, %v6786
        %v6811 = vsub.f32 %v5451, %v6787
        %v6812 = vsub.f32 %v5452, %v6788
        %v6813 = vsub.f32 %v5453, %v6789
        %v6814 = vsub.f32 %v5454, %v6790
        %v6815 = vsub.f32 %v5455, %v6791
        %v6816 = vsub.f32 %v5456, %v6792
        %v6817 = vsub.f32 %v5457, %v6793
        %v6818 = vsub.f32 %v6770, %v6794
        %v6819 = vsub.f32 %v6771, %v6795
        %v6820 = vsub.f32 %v6772, %v6796
        %v6821 = vsub.f32 %v6773, %v6797
        %v6822 = vsub.f32 %v6774, %v6798
        %v6823 = vsub.f32 %v6775, %v6799
        %v6824 = vsub.f32 %v6776, %v6800
        %v6825 = vsub.f32 %v6777, %v6801
        %v6826 = vmul.f32 %v6794, 2.0
        %v6827 = vmul.f32 %v6795, 2.0
        %v6828 = vmul.f32 %v6796, 2.0
        %v6829 = vmul.f32 %v6797, 2.0
        %v6830 = vmul.f32 %v6798, 2.0
        %v6831 = vmul.f32 %v6799, 2.0
        %v6832 = vmul.f32 %v6800, 2.0
        %v6833 = vmul.f32 %v6801, 2.0
        %v6834 = vadd.f32 %v6826, 0.0001
        %v6835 = vadd.f32 %v6827, 0.0001
        %v6836 = vadd.f32 %v6828, 0.0001
        %v6837 = vadd.f32 %v6829, 0.0001
        %v6838 = vadd.f32 %v6830, 0.0001
        %v6839 = vadd.f32 %v6831, 0.0001
        %v6840 = vadd.f32 %v6832, 0.0001
        %v6841 = vadd.f32 %v6833, 0.0001
        %v6842 = vmul.f32 %v6818, 2.0
        %v6843 = vmul.f32 %v6819, 2.0
        %v6844 = vmul.f32 %v6820, 2.0
        %v6845 = vmul.f32 %v6821, 2.0
        %v6846 = vmul.f32 %v6822, 2.0
        %v6847 = vmul.f32 %v6823, 2.0
        %v6848 = vmul.f32 %v6824, 2.0
        %v6849 = vmul.f32 %v6825, 2.0
        %v6850 = vadd.f32 %v6842, 0.0009
        %v6851 = vadd.f32 %v6843, 0.0009
        %v6852 = vadd.f32 %v6844, 0.0009
        %v6853 = vadd.f32 %v6845, 0.0009
        %v6854 = vadd.f32 %v6846, 0.0009
        %v6855 = vadd.f32 %v6847, 0.0009
        %v6856 = vadd.f32 %v6848, 0.0009
        %v6857 = vadd.f32 %v6849, 0.0009
        %v6858 = vmul.f32 %v6834, %v6850
        %v6859 = vmul.f32 %v6835, %v6851
        %v6860 = vmul.f32 %v6836, %v6852
        %v6861 = vmul.f32 %v6837, %v6853
        %v6862 = vmul.f32 %v6838, %v6854
        %v6863 = vmul.f32 %v6839, %v6855
        %v6864 = vmul.f32 %v6840, %v6856
        %v6865 = vmul.f32 %v6841, %v6857
        %v6866 = vadd.f32 %v6778, %v6786
        %v6867 = vadd.f32 %v6779, %v6787
        %v6868 = vadd.f32 %v6780, %v6788
        %v6869 = vadd.f32 %v6781, %v6789
        %v6870 = vadd.f32 %v6782, %v6790
        %v6871 = vadd.f32 %v6783, %v6791
        %v6872 = vadd.f32 %v6784, %v6792
        %v6873 = vadd.f32 %v6785, %v6793
        %v6874 = vadd.f32 %v6866, 0.0001
        %v6875 = vadd.f32 %v6867, 0.0001
        %v6876 = vadd.f32 %v6868, 0.0001
        %v6877 = vadd.f32 %v6869, 0.0001
        %v6878 = vadd.f32 %v6870, 0.0001
        %v6879 = vadd.f32 %v6871, 0.0001
        %v6880 = vadd.f32 %v6872, 0.0001
        %v6881 = vadd.f32 %v6873, 0.0001
        %v6882 = vadd.f32 %v6802, %v6810
        %v6883 = vadd.f32 %v6803, %v6811
        %v6884 = vadd.f32 %v6804, %v6812
        %v6885 = vadd.f32 %v6805, %v6813
        %v6886 = vadd.f32 %v6806, %v6814
        %v6887 = vadd.f32 %v6807, %v6815
        %v6888 = vadd.f32 %v6808, %v6816
        %v6889 = vadd.f32 %v6809, %v6817
        %v6890 = vadd.f32 %v6882, 0.0009
        %v6891 = vadd.f32 %v6883, 0.0009
        %v6892 = vadd.f32 %v6884, 0.0009
        %v6893 = vadd.f32 %v6885, 0.0009
        %v6894 = vadd.f32 %v6886, 0.0009
        %v6895 = vadd.f32 %v6887, 0.0009
        %v6896 = vadd.f32 %v6888, 0.0009
        %v6897 = vadd.f32 %v6889, 0.0009
        %v6898 = vmul.f32 %v6874, %v6890
        %v6899 = vmul.f32 %v6875, %v6891
        %v6900 = vmul.f32 %v6876, %v6892
        %v6901 = vmul.f32 %v6877, %v6893
        %v6902 = vmul.f32 %v6878, %v6894
        %v6903 = vmul.f32 %v6879, %v6895
        %v6904 = vmul.f32 %v6880, %v6896
        %v6905 = vmul.f32 %v6881, %v6897
        %v6906 = vrcp.pop %v6898
        %v6907 = vmul.f32 %v6858, %v6906
        %v6908 = vrcp.pop %v6899
        %v6909 = vmul.f32 %v6859, %v6908
        %v6910 = vrcp.pop %v6900
        %v6911 = vmul.f32 %v6860, %v6910
        %v6912 = vrcp.pop %v6901
        %v6913 = vmul.f32 %v6861, %v6912
        %v6914 = vrcp.pop %v6902
        %v6915 = vmul.f32 %v6862, %v6914
        %v6916 = vrcp.pop %v6903
        %v6917 = vmul.f32 %v6863, %v6916
        %v6918 = vrcp.pop %v6904
        %v6919 = vmul.f32 %v6864, %v6918
        %v6920 = vrcp.pop %v6905
        %v6921 = vmul.f32 %v6865, %v6920
        %vm6922 = vcmask 130048
        %v6923 = vsel %vm6922, %v6907, 0.0
        %v6924 = vsel %vm6922, %v6909, 0.0
        %v6925 = vadd.f32 %v6923, %v6924
        %v6926 = vsel %vm6922, %v6911, 0.0
        %v6927 = vadd.f32 %v6925, %v6926
        %v6928 = vsel %vm6922, %v6913, 0.0
        %v6929 = vadd.f32 %v6927, %v6928
        %v6930 = vsel %vm6922, %v6915, 0.0
        %v6931 = vadd.f32 %v6929, %v6930
        %v6932 = vsel %vm6922, %v6917, 0.0
        %v6933 = vadd.f32 %v6931, %v6932
        %v6934 = vsel %vm6922, %v6919, 0.0
        %v6935 = vadd.f32 %v6933, %v6934
        %v6936 = vsel %vm6922, %v6921, 0.0
        %v6937 = vadd.f32 %v6935, %v6936
        %6938 = vadd.xlane.f32.xlu0 %v6937
        %v6939 = vpop.xlane.xlu0 %6938
        %v6940 = vrot.slane %v6939, 4
        %v6941 = vadd.f32 %v6939, %v6940
        %v6942 = vrot.slane %v6941, 2
        %v6943 = vadd.f32 %v6941, %v6942
        %v6944 = vrot.slane %v6943, 1
        %v6945 = vadd.f32 %v6943, %v6944
        %s6946 = vtos %v6945
        %v6947 = vstv %s6946
        %6948 = vst [vmem:[%s156] sm:$0x1] %v6947
        %s6949 = sand.u32 %s76, 1
        %s6950 = scalar_lea.sflag [#allocation3], %s6949
        %s6951 = sand.u32 %s76, 1
        %s6952 = scalar_lea.vmem [#allocation2], %s6951
        // Predicated region
        $region29: #{tpu_custom_call.1} parent=27 // pred_check
          %p6953 = pneg %p86
        $region30: #{tpu_custom_call.1} parent=27 // pred_check_branch
          %6955 = sbr.rel (%p6953) target = $region32
        $region31: #{tpu_custom_call.1} parent=27 // pred_region
          %s6957 = ssub.s32 16, 16
          %6958 = vsyncadd %s6950, %s6957
          %s6959 = smul.addr %s16, 16
          %s6960 = scalar_lea.hbm %s2, %s6959
          %s6962 = sshll.u32 %s6952, 4
          %s6963 = int_to_ptr.vmem [resolvable:$true] %s6962
          %6965 = dma.vmem_to_hbm [thread:$0]  %s6963, 16, %s6960, %s6950
        $region32: #{tpu_custom_call.1} parent=27 // pred_fallthru
          _
      $region28: #{tpu_custom_call.1} parent=5 // pred_fallthru
        _
      %p6966 = scmp.le.s32.totalorder 2, %s11
      // Predicated region
      $region33: #{tpu_custom_call.1} parent=5 // pred_check
        %p6967 = pneg %p6966
      $region34: #{tpu_custom_call.1} parent=5 // pred_check_branch
        %6969 = sbr.rel (%p6967) target = $region36
      $region35: #{tpu_custom_call.1} parent=5 // pred_region
        %s6970 = ssub.s32 %s11, 2
        // Predicated region
        $region37: #{tpu_custom_call.1} parent=35 // pred_check
          %p6971 = pneg %p92
        $region38: #{tpu_custom_call.1} parent=35 // pred_check_branch
          %6973 = sbr.rel (%p6971) target = $region40
        $region39: #{tpu_custom_call.1} parent=35 // pred_region
          %s6974 = sand.u32 %s77, 1
          %s6975 = scalar_lea.sflag [#allocation3], %s6974
          %s6976 = sand.u32 %s77, 1
          %s6977 = scalar_lea.vmem [#allocation2], %s6976
          %6978 = dma.done %s6975, 16
        $region40: #{tpu_custom_call.1} parent=35 // pred_fallthru
          _
      $region36: #{tpu_custom_call.1} parent=5 // pred_fallthru
        _
    $region6: #{tpu_custom_call.1} parent=1 // loop_footer
      %s15 = sadd.s32 1, %s11
    $region7: #{tpu_custom_call.1} parent=1 // loop_footer_branch
      %10 = sbr.rel target = $region3
    $region8: #{tpu_custom_call.1} parent=1 // loop_exit
      _
    %6979 = vsyncpa [#allocation3], 1
    %s6980 = scalar_lea.sflag [#allocation3], 1
    %6981 = vsyncpa %s6980, 1

</llo_original>
